<compile_context>
chip_gen: v7x
topology: tpu7x:2x2x1
jax: 0.10.0
libtpu: 0.0.40
codegen_flags: <defaults>
</compile_context>

<pallas_src>
import functools

import jax
import jax.numpy as jnp
from jax.experimental import pallas as pl
from jax.experimental.pallas import tpu as pltpu


# -----------------------------------------------------------------------------
# Fused Pallas kernel (one batch element per grid step, everything lane-packed)
# -----------------------------------------------------------------------------
def _fused_rpn_kernel(zx_ref, wc_ref, wh1_ref, wh2_ref, aff_ref, o_ref,
                      *, Hz, Wz, Hx, Wx, W, C):
    """Fused DepthwiseRPN forward for one batch element.

    zx_ref : (1, (Hz+Hx)*W, C) bf16  z rows at [h*W+w, w<Wz], x rows at [Hz*W+h*W+w, w<Wx]
    wc_ref : (9*C, LANES)      bf16  3x3 conv weight, tap-major rows, lanes [ck|lk|cs|ls]
    wh1_ref: (LANES, LANES)    bf16  head 1x1 #1 (zero rows kill garbage lanes)
    wh2_ref: (LANES, LANES)    bf16  head 1x1 #2 (cls | loc | zero-padded outputs)
    aff_ref: (8, LANES)        f32   rows: conv scale, conv shift, h scale, h shift, bias
    o_ref  : (1, M_corr, LANES) f32  flat xcorr rows (row = iy*W + jx)
    """
    Hzc, Wzc = Hz - 2, Wz - 2
    Hxc, Wxc = Hx - 2, Wx - 2
    Ho, Wo = Hxc - Hzc + 1, Wxc - Wzc + 1
    x0 = Hz * W                                   # first flat row of the search region
    M_corr = (Ho - 1) * W + Wo                    # flat rows holding the xcorr output
    off_max = x0 + (Hzc - 1) * W + (Wzc - 1)      # largest xcorr window offset
    M_feat = off_max + M_corr                     # conv rows that are ever read
    Kr = (Hzc - 1) * W + Wzc                      # rows covering every template tap
    LANES = wc_ref.shape[1]
    CH = LANES // 2
    # Static safety checks for the flat-row "garbage rows never read" trick.
    assert Hz >= 3 and Wz >= 3 and Hx >= 3 and Wx >= 3 and Ho >= 1 and Wo >= 1
    assert 2 * W + 2 + M_feat <= (Hz + Hx) * W    # tap windows stay in-bounds

    aff = aff_ref[...]                            # (8, LANES) f32, one vreg tile

    # ---- fused 3x3 "valid" convs (kernel & search branch, cls & loc heads):
    #      one (M_feat, C) x (C, LANES) bf16 MXU dot per tap, streamed directly
    #      from the refs; f32 accumulation initialized from tap 0.  Rows whose
    #      flat index wraps across a spatial row or the z|x seam are garbage,
    #      but they are never read below.
    acc = jnp.dot(zx_ref[0, 0:M_feat, :], wc_ref[0:C, :],
                  preferred_element_type=jnp.float32)
    for t in range(1, 9):
        du, dv = divmod(t, 3)
        s = du * W + dv
        acc = acc + jnp.dot(zx_ref[0, s:s + M_feat, :],
                            wc_ref[t * C:(t + 1) * C, :],
                            preferred_element_type=jnp.float32)

    # folded BN + ReLU: one uniform LANES-wide affine (kernel-branch lanes
    # [0, CH), search-branch lanes [CH, 2*CH)); garbage lanes/rows don't matter.
    feat = jnp.maximum(acc * aff[0:1, :] + aff[1:2, :], 0.0)

    # lane-align the template features with the search features for the
    # depthwise correlation: one cheap XLU half-rotate of the first Kr rows.
    k_blk = pltpu.roll(feat[0:Kr, :], shift=CH, axis=1)

    # ---- depthwise cross-correlation: 25 broadcast MACs over flat-row windows.
    corr = feat[x0:x0 + M_corr, :] * k_blk[0:1, :]
    for r in range(1, Hzc * Wzc):
        u, v = divmod(r, Wzc)
        off = x0 + u * W + v
        kr = u * W + v
        corr = corr + feat[off:off + M_corr, :] * k_blk[kr:kr + 1, :]

    # ---- head: 1x1 conv + BN + ReLU, then 1x1 conv + bias (cls‖loc lane-packed;
    #      zero rows/cols of wh1/wh2 null out the garbage lanes of corr / h).
    h = jnp.dot(corr.astype(jnp.bfloat16), wh1_ref[...],
                preferred_element_type=jnp.float32)
    h = jnp.maximum(h * aff[2:3, :] + aff[3:4, :], 0.0)
    out = jnp.dot(h.astype(jnp.bfloat16), wh2_ref[...],
                  preferred_element_type=jnp.float32) + aff[4:5, :]

    # single lane-dense store; de-striding happens in the XLA wrapper.
    o_ref[0, :, :] = out


# -----------------------------------------------------------------------------
# Wrapper: NCHW in / NCHW out, single pallas_call
# -----------------------------------------------------------------------------
@functools.partial(jax.jit, static_argnames=("cls_ch", "loc_ch"))
def rpn_forward(z_f_nchw, x_f_nchw, packed, *, cls_ch, loc_ch):
    """DepthwiseRPN forward.  Inputs NCHW (PyTorch), outputs (cls, loc) NCHW."""
    B, C, Hz, Wz = z_f_nchw.shape
    Bx, Cx, Hx, Wx = x_f_nchw.shape
    assert B == Bx and C == Cx
    assert Hz >= 3 and Wz >= 3 and Hx >= Hz and Wx >= Wz
    Hzc, Wzc = Hz - 2, Wz - 2
    Ho, Wo = (Hx - 2) - Hzc + 1, (Wx - 2) - Wzc + 1
    assert Ho >= 1 and Wo >= 1

    LANES = packed["wh2"].shape[1]
    assert packed["wc"].shape == (9 * C, LANES)
    assert cls_ch + loc_ch <= LANES

    # Common flat-row stride, padded to a multiple of 16 so every du/u row
    # shift inside the kernel is sublane-aligned (bf16 inputs & f32 accum).
    W = ((max(Wz, Wx) + 15) // 16) * 16
    R_in = (Hz + Hx) * W
    M_corr = (Ho - 1) * W + Wo
    M_feat = Hz * W + (Hzc - 1) * W + (Wzc - 1) + M_corr
    assert 2 * W + 2 + M_feat <= R_in            # tap windows stay inside the buffer

    # One layout pass in XLA: NCHW -> NHWC, zero-pad width to W, stack the
    # template above the search image, flatten rows, cast once to bf16.
    z = jnp.pad(jnp.transpose(z_f_nchw, (0, 2, 3, 1)),
                ((0, 0), (0, 0), (0, W - Wz), (0, 0)))
    x = jnp.pad(jnp.transpose(x_f_nchw, (0, 2, 3, 1)),
                ((0, 0), (0, 0), (0, W - Wx), (0, 0)))
    zx = jnp.concatenate([z, x], axis=1).reshape(B, R_in, C).astype(jnp.bfloat16)

    kernel = functools.partial(_fused_rpn_kernel,
                               Hz=Hz, Wz=Wz, Hx=Hx, Wx=Wx, W=W, C=C)

    flops = B * (2 * 9 * M_feat * C * LANES           # 3x3 convs (both branches)
                 + 2 * Hzc * Wzc * M_corr * LANES     # depthwise xcorr
                 + 2 * 2 * M_corr * LANES * LANES)    # head 1x1 convs
    bytes_accessed = (B * (R_in * C * 2 + M_corr * LANES * 4)
                      + (9 * C + 2 * LANES) * LANES * 2 + 8 * LANES * 4)

    out = pl.pallas_call(
        kernel,
        out_shape=jax.ShapeDtypeStruct((B, M_corr, LANES), jnp.float32),
        grid=(B,),
        in_specs=[
            pl.BlockSpec((1, R_in, C), lambda b: (b, 0, 0)),
            pl.BlockSpec((9 * C, LANES), lambda b: (0, 0)),
            pl.BlockSpec((LANES, LANES), lambda b: (0, 0)),
            pl.BlockSpec((LANES, LANES), lambda b: (0, 0)),
            pl.BlockSpec((8, LANES), lambda b: (0, 0)),
        ],
        out_specs=pl.BlockSpec((1, M_corr, LANES), lambda b: (b, 0, 0)),
        compiler_params=pltpu.CompilerParams(dimension_semantics=("parallel",)),
        cost_estimate=pl.CostEstimate(flops=flops, transcendentals=0,
                                      bytes_accessed=bytes_accessed),
    )(zx, packed["wc"], packed["wh1"], packed["wh2"], packed["aff"])

    # De-stride the flat rows (row = iy*W + jx), then NCHW + channel split.
    out = jnp.pad(out, ((0, 0), (0, Ho * W - M_corr), (0, 0)))
    out = out.reshape(B, Ho, W, LANES)[:, :, :Wo, :]
    out = jnp.transpose(out, (0, 3, 1, 2))            # (B, LANES, Ho, Wo)
    return out[:, :cls_ch], out[:, cls_ch:cls_ch + loc_ch]


# -----------------------------------------------------------------------------
# Deterministic synthetic parameters (+ packing cls‖loc‖kernel‖search lanes)
# -----------------------------------------------------------------------------
def _bn_affine(key, n, eps=1e-5):
    kg, kb = jax.random.split(key)
    gamma = 1.0 + 0.1 * jax.random.normal(kg, (n,), jnp.float32)
    beta = 0.1 * jax.random.normal(kb, (n,), jnp.float32)
    mean = jnp.zeros((n,), jnp.float32)
    var = jnp.ones((n,), jnp.float32)
    scale = gamma / jnp.sqrt(var + eps)
    shift = beta - mean * scale
    return scale, shift


def _branch_params(key, c_in, hidden, out_ch):
    ks = jax.random.split(key, 8)

    def w(k, shape):
        return jax.random.normal(k, shape, jnp.float32) / jnp.sqrt(shape[0])

    sk, bk = _bn_affine(ks[4], hidden)
    ss, bs = _bn_affine(ks[5], hidden)
    sh1, bh1 = _bn_affine(ks[6], hidden)
    return dict(
        wk=w(ks[0], (9 * c_in, hidden)), sk=sk, bk=bk,
        ws=w(ks[1], (9 * c_in, hidden)), ss=ss, bs=bs,
        wh1=w(ks[2], (hidden, hidden)), sh1=sh1, bh1=bh1,
        wh2=w(ks[3], (hidden, out_ch)),
        bh2=0.1 * jax.random.normal(ks[7], (out_ch,), jnp.float32),
    )


def init_params(key, in_channels, hidden, anchor_num):
    kc, kl = jax.random.split(key)
    return dict(
        cls=_branch_params(kc, in_channels, hidden, 2 * anchor_num),
        loc=_branch_params(kl, in_channels, hidden, 4 * anchor_num),
    )


def pack_params(params, hidden, anchor_num):
    """Pack cls/loc x kernel/search weights lane-wise for the fused kernel.

    Lane layout of the fused hidden axis (LANES = 4*hidden):
        [0, hidden)          cls, kernel branch   (and cls head channels)
        [hidden, 2*hidden)   loc, kernel branch   (and loc head channels)
        [2*hidden, 3*hidden) cls, search branch
        [3*hidden, 4*hidden) loc, search branch

    NOTE (porting): conv weight rows are tap-major ((du, dv) row-major, then
    Cin).  Real pysot weights (Cout, Cin, kh, kw) must be permuted as
    w.transpose(2, 3, 1, 0).reshape(9 * Cin, Cout) before packing.
    """
    c, l = params["cls"], params["loc"]
    CH = 2 * hidden                      # packed hidden width per branch
    LANES = 2 * CH                       # full lane width
    cls_ch, loc_ch = 2 * anchor_num, 4 * anchor_num
    assert cls_ch + loc_ch <= LANES

    # 3x3 conv: both branches, both heads, one (9*Cin, LANES) bf16 matrix.
    wc = jnp.concatenate([c["wk"], l["wk"], c["ws"], l["ws"]],
                         axis=1).astype(jnp.bfloat16)

    # head 1x1 #1: after the in-kernel roll, corr lanes [CH, CH+hidden) hold the
    # cls hidden channels and [CH+hidden, 2*CH) the loc hidden channels; rows
    # [0, CH) stay zero so corr's garbage lanes contribute nothing.
    wh1 = jnp.zeros((LANES, LANES), jnp.float32)
    wh1 = wh1.at[CH:CH + hidden, 0:hidden].set(c["wh1"])
    wh1 = wh1.at[CH + hidden:LANES, hidden:CH].set(l["wh1"])
    wh1 = wh1.astype(jnp.bfloat16)

    # head 1x1 #2 (+ bias): outputs packed as [cls logits | loc deltas | zeros].
    wh2 = jnp.zeros((LANES, LANES), jnp.float32)
    wh2 = wh2.at[0:hidden, 0:cls_ch].set(c["wh2"])
    wh2 = wh2.at[hidden:CH, cls_ch:cls_ch + loc_ch].set(l["wh2"])
    wh2 = wh2.astype(jnp.bfloat16)

    b2 = jnp.zeros((LANES,), jnp.float32)
    b2 = b2.at[0:cls_ch].set(c["bh2"]).at[cls_ch:cls_ch + loc_ch].set(l["bh2"])

    zeros_ch = jnp.zeros((CH,), jnp.float32)
    aff = jnp.zeros((8, LANES), jnp.float32)
    aff = aff.at[0].set(jnp.concatenate([c["sk"], l["sk"], c["ss"], l["ss"]]))
    aff = aff.at[1].set(jnp.concatenate([c["bk"], l["bk"], c["bs"], l["bs"]]))
    aff = aff.at[2].set(jnp.concatenate([c["sh1"], l["sh1"], zeros_ch]))
    aff = aff.at[3].set(jnp.concatenate([c["bh1"], l["bh1"], zeros_ch]))
    aff = aff.at[4].set(b2)
    return dict(wc=wc, wh1=wh1, wh2=wh2, aff=aff)


# -----------------------------------------------------------------------------
# Plain-JAX references for numerical validation
# -----------------------------------------------------------------------------
def _ref_branch(z_nhwc, x_nhwc, p, mm_dtype=jnp.bfloat16):
    def conv3x3(x, w, scale, bias):
        B, H, Wd, C = x.shape
        Ho, Wo = H - 2, Wd - 2
        pats = [x[:, du:du + Ho, dv:dv + Wo, :]
                for du in range(3) for dv in range(3)]
        pat = jnp.concatenate(pats, -1).astype(mm_dtype)
        out = jnp.einsum("bhwk,kn->bhwn", pat, w.astype(mm_dtype),
                         preferred_element_type=jnp.float32)
        return jnp.maximum(out * scale + bias, 0.0)

    kf = conv3x3(z_nhwc, p["wk"], p["sk"], p["bk"])
    sf = conv3x3(x_nhwc, p["ws"], p["ss"], p["bs"])
    Hk, Wk = kf.shape[1], kf.shape[2]
    Ho = sf.shape[1] - Hk + 1
    Wo = sf.shape[2] - Wk + 1
    corr = jnp.zeros((sf.shape[0], Ho, Wo, sf.shape[3]), jnp.float32)
    for u in range(Hk):
        for v in range(Wk):
            corr = corr + sf[:, u:u + Ho, v:v + Wo, :] * kf[:, u:u + 1, v:v + 1, :]
    h = jnp.einsum("bhwc,cn->bhwn", corr.astype(mm_dtype),
                   p["wh1"].astype(mm_dtype), preferred_element_type=jnp.float32)
    h = jnp.maximum(h * p["sh1"] + p["bh1"], 0.0)
    out = jnp.einsum("bhwc,cn->bhwn", h.astype(mm_dtype),
                     p["wh2"].astype(mm_dtype), preferred_element_type=jnp.float32)
    return out + p["bh2"]


def rpn_reference(z_f_nchw, x_f_nchw, params, mm_dtype=jnp.bfloat16):
    z = jnp.transpose(z_f_nchw, (0, 2, 3, 1))
    x = jnp.transpose(x_f_nchw, (0, 2, 3, 1))
    cls = _ref_branch(z, x, params["cls"], mm_dtype)
    loc = _ref_branch(z, x, params["loc"], mm_dtype)
    return (jnp.transpose(cls, (0, 3, 1, 2)), jnp.transpose(loc, (0, 3, 1, 2)))


# -----------------------------------------------------------------------------
if __name__ == "__main__":
    key = jax.random.PRNGKey(0)
    kz, kx, kp = jax.random.split(key, 3)

    B, C = 2, 32
    anchor_num, hidden = 5, 32
    z_f = jax.random.normal(kz, (B, C, 7, 7), jnp.float32)     # template feat
    x_f = jax.random.normal(kx, (B, C, 13, 13), jnp.float32)   # search feat

    params = init_params(kp, in_channels=C, hidden=hidden, anchor_num=anchor_num)
    packed = pack_params(params, hidden=hidden, anchor_num=anchor_num)

    cls, loc = rpn_forward(z_f, x_f, packed,
                           cls_ch=2 * anchor_num, loc_ch=4 * anchor_num)
    jax.block_until_ready((cls, loc))

    # conv3x3: z -> 5x5, x -> 11x11; depthwise xcorr -> 7x7
    assert cls.shape == (B, 2 * anchor_num, 7, 7), cls.shape
    assert loc.shape == (B, 4 * anchor_num, 7, 7), loc.shape
    assert bool(jnp.all(jnp.isfinite(cls))) and bool(jnp.all(jnp.isfinite(loc)))

    # numerical check #1: bf16-matched plain-JAX reference (tight tolerance)
    cls_ref, loc_ref = rpn_reference(z_f, x_f, params)
    scale = float(jnp.maximum(jnp.max(jnp.abs(cls_ref)), jnp.max(jnp.abs(loc_ref))))
    tol = 5e-3 * max(scale, 1.0)
    assert float(jnp.max(jnp.abs(cls - cls_ref))) <= tol, "cls mismatch (bf16 ref)"
    assert float(jnp.max(jnp.abs(loc - loc_ref))) <= tol, "loc mismatch (bf16 ref)"

    # numerical check #2: pure-f32 reference (sanity bound on bf16 quantization)
    cls32, loc32 = rpn_reference(z_f, x_f, params, mm_dtype=jnp.float32)
    tol32 = 8e-2 * max(scale, 1.0)
    assert float(jnp.max(jnp.abs(cls - cls32))) <= tol32, "cls mismatch (f32 ref)"
    assert float(jnp.max(jnp.abs(loc - loc32))) <= tol32, "loc mismatch (f32 ref)"

    print("KERNEL_OK")
</pallas_src>

<mosaic_0001>
module attributes {stable_mosaic.version = 11 : i64} {
  func.func @_fused_rpn_kernel(%arg0: i32, %arg1: memref<1x320x32xbf16, #tpu.memory_space<vmem>>, %arg2: memref<288x128xbf16, #tpu.memory_space<vmem>>, %arg3: memref<128x128xbf16, #tpu.memory_space<vmem>>, %arg4: memref<128x128xbf16, #tpu.memory_space<vmem>>, %arg5: memref<8x128xf32, #tpu.memory_space<vmem>>, %arg6: memref<1x103x128xf32, #tpu.memory_space<vmem>>) attributes {dimension_semantics = [#tpu.dimension_semantics<parallel>], iteration_bounds = array<i64: 2>, scalar_prefetch = 0 : i64, scratch_operands = 0 : i64, tpu.core_type = #tpu.core_type<tc>, window_params = [{transform_indices = @transform_0, window_bounds = array<i64: 1, 320, 32>}, {pipeline_mode = #tpu.pipeline_mode<synchronous>, transform_indices = @transform_1, window_bounds = array<i64: 288, 128>}, {pipeline_mode = #tpu.pipeline_mode<synchronous>, transform_indices = @transform_2, window_bounds = array<i64: 128, 128>}, {pipeline_mode = #tpu.pipeline_mode<synchronous>, transform_indices = @transform_3, window_bounds = array<i64: 128, 128>}, {pipeline_mode = #tpu.pipeline_mode<synchronous>, transform_indices = @transform_4, window_bounds = array<i64: 8, 128>}, {transform_indices = @transform_5, window_bounds = array<i64: 1, 103, 128>}]} {
    %c0 = arith.constant 0 : index
    %c0_0 = arith.constant 0 : index
    %0 = vector.load %arg5[%c0, %c0_0] : memref<8x128xf32, #tpu.memory_space<vmem>>, vector<8x128xf32>
    %c0_1 = arith.constant 0 : index
    %c0_2 = arith.constant 0 : index
    %c0_3 = arith.constant 0 : index
    %1 = vector.load %arg1[%c0_1, %c0_2, %c0_3] : memref<1x320x32xbf16, #tpu.memory_space<vmem>>, vector<1x283x32xbf16>
    %2 = vector.shape_cast %1 : vector<1x283x32xbf16> to vector<283x32xbf16>
    %c0_4 = arith.constant 0 : index
    %c0_5 = arith.constant 0 : index
    %3 = vector.load %arg2[%c0_4, %c0_5] : memref<288x128xbf16, #tpu.memory_space<vmem>>, vector<32x128xbf16>
    %cst = arith.constant dense<0.000000e+00> : vector<283x128xf32>
    %4 = tpu.matmul %2, %3, %cst {dimension_numbers = #tpu.dot_dimension_numbers<[1], [0], [0], [1], [0, 0, 1, 1], [], []>} : vector<283x32xbf16>, vector<32x128xbf16>, vector<283x128xf32> -> vector<283x128xf32>
    %c0_6 = arith.constant 0 : index
    %c1 = arith.constant 1 : index
    %c0_7 = arith.constant 0 : index
    %5 = vector.load %arg1[%c0_6, %c1, %c0_7] : memref<1x320x32xbf16, #tpu.memory_space<vmem>>, vector<1x283x32xbf16>
    %6 = vector.shape_cast %5 : vector<1x283x32xbf16> to vector<283x32xbf16>
    %c32 = arith.constant 32 : index
    %c0_8 = arith.constant 0 : index
    %7 = vector.load %arg2[%c32, %c0_8] : memref<288x128xbf16, #tpu.memory_space<vmem>>, vector<32x128xbf16>
    %cst_9 = arith.constant dense<0.000000e+00> : vector<283x128xf32>
    %8 = tpu.matmul %6, %7, %cst_9 {dimension_numbers = #tpu.dot_dimension_numbers<[1], [0], [0], [1], [0, 0, 1, 1], [], []>} : vector<283x32xbf16>, vector<32x128xbf16>, vector<283x128xf32> -> vector<283x128xf32>
    %9 = arith.addf %4, %8 : vector<283x128xf32>
    %c0_10 = arith.constant 0 : index
    %c2 = arith.constant 2 : index
    %c0_11 = arith.constant 0 : index
    %10 = vector.load %arg1[%c0_10, %c2, %c0_11] : memref<1x320x32xbf16, #tpu.memory_space<vmem>>, vector<1x283x32xbf16>
    %11 = vector.shape_cast %10 : vector<1x283x32xbf16> to vector<283x32xbf16>
    %c64 = arith.constant 64 : index
    %c0_12 = arith.constant 0 : index
    %12 = vector.load %arg2[%c64, %c0_12] : memref<288x128xbf16, #tpu.memory_space<vmem>>, vector<32x128xbf16>
    %cst_13 = arith.constant dense<0.000000e+00> : vector<283x128xf32>
    %13 = tpu.matmul %11, %12, %cst_13 {dimension_numbers = #tpu.dot_dimension_numbers<[1], [0], [0], [1], [0, 0, 1, 1], [], []>} : vector<283x32xbf16>, vector<32x128xbf16>, vector<283x128xf32> -> vector<283x128xf32>
    %14 = arith.addf %9, %13 : vector<283x128xf32>
    %c0_14 = arith.constant 0 : index
    %c16 = arith.constant 16 : index
    %c0_15 = arith.constant 0 : index
    %15 = vector.load %arg1[%c0_14, %c16, %c0_15] : memref<1x320x32xbf16, #tpu.memory_space<vmem>>, vector<1x283x32xbf16>
    %16 = vector.shape_cast %15 : vector<1x283x32xbf16> to vector<283x32xbf16>
    %c96 = arith.constant 96 : index
    %c0_16 = arith.constant 0 : index
    %17 = vector.load %arg2[%c96, %c0_16] : memref<288x128xbf16, #tpu.memory_space<vmem>>, vector<32x128xbf16>
    %cst_17 = arith.constant dense<0.000000e+00> : vector<283x128xf32>
    %18 = tpu.matmul %16, %17, %cst_17 {dimension_numbers = #tpu.dot_dimension_numbers<[1], [0], [0], [1], [0, 0, 1, 1], [], []>} : vector<283x32xbf16>, vector<32x128xbf16>, vector<283x128xf32> -> vector<283x128xf32>
    %19 = arith.addf %14, %18 : vector<283x128xf32>
    %c0_18 = arith.constant 0 : index
    %c17 = arith.constant 17 : index
    %c0_19 = arith.constant 0 : index
    %20 = vector.load %arg1[%c0_18, %c17, %c0_19] : memref<1x320x32xbf16, #tpu.memory_space<vmem>>, vector<1x283x32xbf16>
    %21 = vector.shape_cast %20 : vector<1x283x32xbf16> to vector<283x32xbf16>
    %c128 = arith.constant 128 : index
    %c0_20 = arith.constant 0 : index
    %22 = vector.load %arg2[%c128, %c0_20] : memref<288x128xbf16, #tpu.memory_space<vmem>>, vector<32x128xbf16>
    %cst_21 = arith.constant dense<0.000000e+00> : vector<283x128xf32>
    %23 = tpu.matmul %21, %22, %cst_21 {dimension_numbers = #tpu.dot_dimension_numbers<[1], [0], [0], [1], [0, 0, 1, 1], [], []>} : vector<283x32xbf16>, vector<32x128xbf16>, vector<283x128xf32> -> vector<283x128xf32>
    %24 = arith.addf %19, %23 : vector<283x128xf32>
    %c0_22 = arith.constant 0 : index
    %c18 = arith.constant 18 : index
    %c0_23 = arith.constant 0 : index
    %25 = vector.load %arg1[%c0_22, %c18, %c0_23] : memref<1x320x32xbf16, #tpu.memory_space<vmem>>, vector<1x283x32xbf16>
    %26 = vector.shape_cast %25 : vector<1x283x32xbf16> to vector<283x32xbf16>
    %c160 = arith.constant 160 : index
    %c0_24 = arith.constant 0 : index
    %27 = vector.load %arg2[%c160, %c0_24] : memref<288x128xbf16, #tpu.memory_space<vmem>>, vector<32x128xbf16>
    %cst_25 = arith.constant dense<0.000000e+00> : vector<283x128xf32>
    %28 = tpu.matmul %26, %27, %cst_25 {dimension_numbers = #tpu.dot_dimension_numbers<[1], [0], [0], [1], [0, 0, 1, 1], [], []>} : vector<283x32xbf16>, vector<32x128xbf16>, vector<283x128xf32> -> vector<283x128xf32>
    %29 = arith.addf %24, %28 : vector<283x128xf32>
    %c0_26 = arith.constant 0 : index
    %c32_27 = arith.constant 32 : index
    %c0_28 = arith.constant 0 : index
    %30 = vector.load %arg1[%c0_26, %c32_27, %c0_28] : memref<1x320x32xbf16, #tpu.memory_space<vmem>>, vector<1x283x32xbf16>
    %31 = vector.shape_cast %30 : vector<1x283x32xbf16> to vector<283x32xbf16>
    %c192 = arith.constant 192 : index
    %c0_29 = arith.constant 0 : index
    %32 = vector.load %arg2[%c192, %c0_29] : memref<288x128xbf16, #tpu.memory_space<vmem>>, vector<32x128xbf16>
    %cst_30 = arith.constant dense<0.000000e+00> : vector<283x128xf32>
    %33 = tpu.matmul %31, %32, %cst_30 {dimension_numbers = #tpu.dot_dimension_numbers<[1], [0], [0], [1], [0, 0, 1, 1], [], []>} : vector<283x32xbf16>, vector<32x128xbf16>, vector<283x128xf32> -> vector<283x128xf32>
    %34 = arith.addf %29, %33 : vector<283x128xf32>
    %c0_31 = arith.constant 0 : index
    %c33 = arith.constant 33 : index
    %c0_32 = arith.constant 0 : index
    %35 = vector.load %arg1[%c0_31, %c33, %c0_32] : memref<1x320x32xbf16, #tpu.memory_space<vmem>>, vector<1x283x32xbf16>
    %36 = vector.shape_cast %35 : vector<1x283x32xbf16> to vector<283x32xbf16>
    %c224 = arith.constant 224 : index
    %c0_33 = arith.constant 0 : index
    %37 = vector.load %arg2[%c224, %c0_33] : memref<288x128xbf16, #tpu.memory_space<vmem>>, vector<32x128xbf16>
    %cst_34 = arith.constant dense<0.000000e+00> : vector<283x128xf32>
    %38 = tpu.matmul %36, %37, %cst_34 {dimension_numbers = #tpu.dot_dimension_numbers<[1], [0], [0], [1], [0, 0, 1, 1], [], []>} : vector<283x32xbf16>, vector<32x128xbf16>, vector<283x128xf32> -> vector<283x128xf32>
    %39 = arith.addf %34, %38 : vector<283x128xf32>
    %c0_35 = arith.constant 0 : index
    %c34 = arith.constant 34 : index
    %c0_36 = arith.constant 0 : index
    %40 = vector.load %arg1[%c0_35, %c34, %c0_36] : memref<1x320x32xbf16, #tpu.memory_space<vmem>>, vector<1x283x32xbf16>
    %41 = vector.shape_cast %40 : vector<1x283x32xbf16> to vector<283x32xbf16>
    %c256 = arith.constant 256 : index
    %c0_37 = arith.constant 0 : index
    %42 = vector.load %arg2[%c256, %c0_37] : memref<288x128xbf16, #tpu.memory_space<vmem>>, vector<32x128xbf16>
    %cst_38 = arith.constant dense<0.000000e+00> : vector<283x128xf32>
    %43 = tpu.matmul %41, %42, %cst_38 {dimension_numbers = #tpu.dot_dimension_numbers<[1], [0], [0], [1], [0, 0, 1, 1], [], []>} : vector<283x32xbf16>, vector<32x128xbf16>, vector<283x128xf32> -> vector<283x128xf32>
    %44 = arith.addf %39, %43 : vector<283x128xf32>
    %45 = vector.extract_strided_slice %0 {offsets = [0, 0], sizes = [1, 128], strides = [1, 1]} : vector<8x128xf32> to vector<1x128xf32>
    %46 = vector.broadcast %45 : vector<1x128xf32> to vector<283x128xf32>
    %47 = arith.mulf %44, %46 : vector<283x128xf32>
    %48 = vector.extract_strided_slice %0 {offsets = [1, 0], sizes = [1, 128], strides = [1, 1]} : vector<8x128xf32> to vector<1x128xf32>
    %49 = vector.broadcast %48 : vector<1x128xf32> to vector<283x128xf32>
    %50 = arith.addf %47, %49 : vector<283x128xf32>
    %cst_39 = arith.constant 0.000000e+00 : f32
    %51 = vector.broadcast %cst_39 : f32 to vector<283x128xf32>
    %52 = arith.maximumf %50, %51 : vector<283x128xf32>
    %53 = vector.extract_strided_slice %52 {offsets = [0, 0], sizes = [69, 128], strides = [1, 1]} : vector<283x128xf32> to vector<69x128xf32>
    %c64_i32 = arith.constant 64 : i32
    %54 = tpu.dynamic_rotate %53 by %c64_i32 dim 1 : vector<69x128xf32>, i32 -> vector<69x128xf32>
    %55 = vector.extract_strided_slice %52 {offsets = [112, 0], sizes = [103, 128], strides = [1, 1]} : vector<283x128xf32> to vector<103x128xf32>
    %56 = vector.extract_strided_slice %54 {offsets = [0, 0], sizes = [1, 128], strides = [1, 1]} : vector<69x128xf32> to vector<1x128xf32>
    %57 = vector.broadcast %56 : vector<1x128xf32> to vector<103x128xf32>
    %58 = arith.mulf %55, %57 : vector<103x128xf32>
    %59 = vector.extract_strided_slice %52 {offsets = [113, 0], sizes = [103, 128], strides = [1, 1]} : vector<283x128xf32> to vector<103x128xf32>
    %60 = vector.extract_strided_slice %54 {offsets = [1, 0], sizes = [1, 128], strides = [1, 1]} : vector<69x128xf32> to vector<1x128xf32>
    %61 = vector.broadcast %60 : vector<1x128xf32> to vector<103x128xf32>
    %62 = arith.mulf %59, %61 : vector<103x128xf32>
    %63 = arith.addf %58, %62 : vector<103x128xf32>
    %64 = vector.extract_strided_slice %52 {offsets = [114, 0], sizes = [103, 128], strides = [1, 1]} : vector<283x128xf32> to vector<103x128xf32>
    %65 = vector.extract_strided_slice %54 {offsets = [2, 0], sizes = [1, 128], strides = [1, 1]} : vector<69x128xf32> to vector<1x128xf32>
    %66 = vector.broadcast %65 : vector<1x128xf32> to vector<103x128xf32>
    %67 = arith.mulf %64, %66 : vector<103x128xf32>
    %68 = arith.addf %63, %67 : vector<103x128xf32>
    %69 = vector.extract_strided_slice %52 {offsets = [115, 0], sizes = [103, 128], strides = [1, 1]} : vector<283x128xf32> to vector<103x128xf32>
    %70 = vector.extract_strided_slice %54 {offsets = [3, 0], sizes = [1, 128], strides = [1, 1]} : vector<69x128xf32> to vector<1x128xf32>
    %71 = vector.broadcast %70 : vector<1x128xf32> to vector<103x128xf32>
    %72 = arith.mulf %69, %71 : vector<103x128xf32>
    %73 = arith.addf %68, %72 : vector<103x128xf32>
    %74 = vector.extract_strided_slice %52 {offsets = [116, 0], sizes = [103, 128], strides = [1, 1]} : vector<283x128xf32> to vector<103x128xf32>
    %75 = vector.extract_strided_slice %54 {offsets = [4, 0], sizes = [1, 128], strides = [1, 1]} : vector<69x128xf32> to vector<1x128xf32>
    %76 = vector.broadcast %75 : vector<1x128xf32> to vector<103x128xf32>
    %77 = arith.mulf %74, %76 : vector<103x128xf32>
    %78 = arith.addf %73, %77 : vector<103x128xf32>
    %79 = vector.extract_strided_slice %52 {offsets = [128, 0], sizes = [103, 128], strides = [1, 1]} : vector<283x128xf32> to vector<103x128xf32>
    %80 = vector.extract_strided_slice %54 {offsets = [16, 0], sizes = [1, 128], strides = [1, 1]} : vector<69x128xf32> to vector<1x128xf32>
    %81 = vector.broadcast %80 : vector<1x128xf32> to vector<103x128xf32>
    %82 = arith.mulf %79, %81 : vector<103x128xf32>
    %83 = arith.addf %78, %82 : vector<103x128xf32>
    %84 = vector.extract_strided_slice %52 {offsets = [129, 0], sizes = [103, 128], strides = [1, 1]} : vector<283x128xf32> to vector<103x128xf32>
    %85 = vector.extract_strided_slice %54 {offsets = [17, 0], sizes = [1, 128], strides = [1, 1]} : vector<69x128xf32> to vector<1x128xf32>
    %86 = vector.broadcast %85 : vector<1x128xf32> to vector<103x128xf32>
    %87 = arith.mulf %84, %86 : vector<103x128xf32>
    %88 = arith.addf %83, %87 : vector<103x128xf32>
    %89 = vector.extract_strided_slice %52 {offsets = [130, 0], sizes = [103, 128], strides = [1, 1]} : vector<283x128xf32> to vector<103x128xf32>
    %90 = vector.extract_strided_slice %54 {offsets = [18, 0], sizes = [1, 128], strides = [1, 1]} : vector<69x128xf32> to vector<1x128xf32>
    %91 = vector.broadcast %90 : vector<1x128xf32> to vector<103x128xf32>
    %92 = arith.mulf %89, %91 : vector<103x128xf32>
    %93 = arith.addf %88, %92 : vector<103x128xf32>
    %94 = vector.extract_strided_slice %52 {offsets = [131, 0], sizes = [103, 128], strides = [1, 1]} : vector<283x128xf32> to vector<103x128xf32>
    %95 = vector.extract_strided_slice %54 {offsets = [19, 0], sizes = [1, 128], strides = [1, 1]} : vector<69x128xf32> to vector<1x128xf32>
    %96 = vector.broadcast %95 : vector<1x128xf32> to vector<103x128xf32>
    %97 = arith.mulf %94, %96 : vector<103x128xf32>
    %98 = arith.addf %93, %97 : vector<103x128xf32>
    %99 = vector.extract_strided_slice %52 {offsets = [132, 0], sizes = [103, 128], strides = [1, 1]} : vector<283x128xf32> to vector<103x128xf32>
    %100 = vector.extract_strided_slice %54 {offsets = [20, 0], sizes = [1, 128], strides = [1, 1]} : vector<69x128xf32> to vector<1x128xf32>
    %101 = vector.broadcast %100 : vector<1x128xf32> to vector<103x128xf32>
    %102 = arith.mulf %99, %101 : vector<103x128xf32>
    %103 = arith.addf %98, %102 : vector<103x128xf32>
    %104 = vector.extract_strided_slice %52 {offsets = [144, 0], sizes = [103, 128], strides = [1, 1]} : vector<283x128xf32> to vector<103x128xf32>
    %105 = vector.extract_strided_slice %54 {offsets = [32, 0], sizes = [1, 128], strides = [1, 1]} : vector<69x128xf32> to vector<1x128xf32>
    %106 = vector.broadcast %105 : vector<1x128xf32> to vector<103x128xf32>
    %107 = arith.mulf %104, %106 : vector<103x128xf32>
    %108 = arith.addf %103, %107 : vector<103x128xf32>
    %109 = vector.extract_strided_slice %52 {offsets = [145, 0], sizes = [103, 128], strides = [1, 1]} : vector<283x128xf32> to vector<103x128xf32>
    %110 = vector.extract_strided_slice %54 {offsets = [33, 0], sizes = [1, 128], strides = [1, 1]} : vector<69x128xf32> to vector<1x128xf32>
    %111 = vector.broadcast %110 : vector<1x128xf32> to vector<103x128xf32>
    %112 = arith.mulf %109, %111 : vector<103x128xf32>
    %113 = arith.addf %108, %112 : vector<103x128xf32>
    %114 = vector.extract_strided_slice %52 {offsets = [146, 0], sizes = [103, 128], strides = [1, 1]} : vector<283x128xf32> to vector<103x128xf32>
    %115 = vector.extract_strided_slice %54 {offsets = [34, 0], sizes = [1, 128], strides = [1, 1]} : vector<69x128xf32> to vector<1x128xf32>
    %116 = vector.broadcast %115 : vector<1x128xf32> to vector<103x128xf32>
    %117 = arith.mulf %114, %116 : vector<103x128xf32>
    %118 = arith.addf %113, %117 : vector<103x128xf32>
    %119 = vector.extract_strided_slice %52 {offsets = [147, 0], sizes = [103, 128], strides = [1, 1]} : vector<283x128xf32> to vector<103x128xf32>
    %120 = vector.extract_strided_slice %54 {offsets = [35, 0], sizes = [1, 128], strides = [1, 1]} : vector<69x128xf32> to vector<1x128xf32>
    %121 = vector.broadcast %120 : vector<1x128xf32> to vector<103x128xf32>
    %122 = arith.mulf %119, %121 : vector<103x128xf32>
    %123 = arith.addf %118, %122 : vector<103x128xf32>
    %124 = vector.extract_strided_slice %52 {offsets = [148, 0], sizes = [103, 128], strides = [1, 1]} : vector<283x128xf32> to vector<103x128xf32>
    %125 = vector.extract_strided_slice %54 {offsets = [36, 0], sizes = [1, 128], strides = [1, 1]} : vector<69x128xf32> to vector<1x128xf32>
    %126 = vector.broadcast %125 : vector<1x128xf32> to vector<103x128xf32>
    %127 = arith.mulf %124, %126 : vector<103x128xf32>
    %128 = arith.addf %123, %127 : vector<103x128xf32>
    %129 = vector.extract_strided_slice %52 {offsets = [160, 0], sizes = [103, 128], strides = [1, 1]} : vector<283x128xf32> to vector<103x128xf32>
    %130 = vector.extract_strided_slice %54 {offsets = [48, 0], sizes = [1, 128], strides = [1, 1]} : vector<69x128xf32> to vector<1x128xf32>
    %131 = vector.broadcast %130 : vector<1x128xf32> to vector<103x128xf32>
    %132 = arith.mulf %129, %131 : vector<103x128xf32>
    %133 = arith.addf %128, %132 : vector<103x128xf32>
    %134 = vector.extract_strided_slice %52 {offsets = [161, 0], sizes = [103, 128], strides = [1, 1]} : vector<283x128xf32> to vector<103x128xf32>
    %135 = vector.extract_strided_slice %54 {offsets = [49, 0], sizes = [1, 128], strides = [1, 1]} : vector<69x128xf32> to vector<1x128xf32>
    %136 = vector.broadcast %135 : vector<1x128xf32> to vector<103x128xf32>
    %137 = arith.mulf %134, %136 : vector<103x128xf32>
    %138 = arith.addf %133, %137 : vector<103x128xf32>
    %139 = vector.extract_strided_slice %52 {offsets = [162, 0], sizes = [103, 128], strides = [1, 1]} : vector<283x128xf32> to vector<103x128xf32>
    %140 = vector.extract_strided_slice %54 {offsets = [50, 0], sizes = [1, 128], strides = [1, 1]} : vector<69x128xf32> to vector<1x128xf32>
    %141 = vector.broadcast %140 : vector<1x128xf32> to vector<103x128xf32>
    %142 = arith.mulf %139, %141 : vector<103x128xf32>
    %143 = arith.addf %138, %142 : vector<103x128xf32>
    %144 = vector.extract_strided_slice %52 {offsets = [163, 0], sizes = [103, 128], strides = [1, 1]} : vector<283x128xf32> to vector<103x128xf32>
    %145 = vector.extract_strided_slice %54 {offsets = [51, 0], sizes = [1, 128], strides = [1, 1]} : vector<69x128xf32> to vector<1x128xf32>
    %146 = vector.broadcast %145 : vector<1x128xf32> to vector<103x128xf32>
    %147 = arith.mulf %144, %146 : vector<103x128xf32>
    %148 = arith.addf %143, %147 : vector<103x128xf32>
    %149 = vector.extract_strided_slice %52 {offsets = [164, 0], sizes = [103, 128], strides = [1, 1]} : vector<283x128xf32> to vector<103x128xf32>
    %150 = vector.extract_strided_slice %54 {offsets = [52, 0], sizes = [1, 128], strides = [1, 1]} : vector<69x128xf32> to vector<1x128xf32>
    %151 = vector.broadcast %150 : vector<1x128xf32> to vector<103x128xf32>
    %152 = arith.mulf %149, %151 : vector<103x128xf32>
    %153 = arith.addf %148, %152 : vector<103x128xf32>
    %154 = vector.extract_strided_slice %52 {offsets = [176, 0], sizes = [103, 128], strides = [1, 1]} : vector<283x128xf32> to vector<103x128xf32>
    %155 = vector.extract_strided_slice %54 {offsets = [64, 0], sizes = [1, 128], strides = [1, 1]} : vector<69x128xf32> to vector<1x128xf32>
    %156 = vector.broadcast %155 : vector<1x128xf32> to vector<103x128xf32>
    %157 = arith.mulf %154, %156 : vector<103x128xf32>
    %158 = arith.addf %153, %157 : vector<103x128xf32>
    %159 = vector.extract_strided_slice %52 {offsets = [177, 0], sizes = [103, 128], strides = [1, 1]} : vector<283x128xf32> to vector<103x128xf32>
    %160 = vector.extract_strided_slice %54 {offsets = [65, 0], sizes = [1, 128], strides = [1, 1]} : vector<69x128xf32> to vector<1x128xf32>
    %161 = vector.broadcast %160 : vector<1x128xf32> to vector<103x128xf32>
    %162 = arith.mulf %159, %161 : vector<103x128xf32>
    %163 = arith.addf %158, %162 : vector<103x128xf32>
    %164 = vector.extract_strided_slice %52 {offsets = [178, 0], sizes = [103, 128], strides = [1, 1]} : vector<283x128xf32> to vector<103x128xf32>
    %165 = vector.extract_strided_slice %54 {offsets = [66, 0], sizes = [1, 128], strides = [1, 1]} : vector<69x128xf32> to vector<1x128xf32>
    %166 = vector.broadcast %165 : vector<1x128xf32> to vector<103x128xf32>
    %167 = arith.mulf %164, %166 : vector<103x128xf32>
    %168 = arith.addf %163, %167 : vector<103x128xf32>
    %169 = vector.extract_strided_slice %52 {offsets = [179, 0], sizes = [103, 128], strides = [1, 1]} : vector<283x128xf32> to vector<103x128xf32>
    %170 = vector.extract_strided_slice %54 {offsets = [67, 0], sizes = [1, 128], strides = [1, 1]} : vector<69x128xf32> to vector<1x128xf32>
    %171 = vector.broadcast %170 : vector<1x128xf32> to vector<103x128xf32>
    %172 = arith.mulf %169, %171 : vector<103x128xf32>
    %173 = arith.addf %168, %172 : vector<103x128xf32>
    %174 = vector.extract_strided_slice %52 {offsets = [180, 0], sizes = [103, 128], strides = [1, 1]} : vector<283x128xf32> to vector<103x128xf32>
    %175 = vector.extract_strided_slice %54 {offsets = [68, 0], sizes = [1, 128], strides = [1, 1]} : vector<69x128xf32> to vector<1x128xf32>
    %176 = vector.broadcast %175 : vector<1x128xf32> to vector<103x128xf32>
    %177 = arith.mulf %174, %176 : vector<103x128xf32>
    %178 = arith.addf %173, %177 : vector<103x128xf32>
    %179 = arith.truncf %178 : vector<103x128xf32> to vector<103x128xbf16>
    %c0_40 = arith.constant 0 : index
    %c0_41 = arith.constant 0 : index
    %180 = vector.load %arg3[%c0_40, %c0_41] : memref<128x128xbf16, #tpu.memory_space<vmem>>, vector<128x128xbf16>
    %cst_42 = arith.constant dense<0.000000e+00> : vector<103x128xf32>
    %181 = tpu.matmul %179, %180, %cst_42 {dimension_numbers = #tpu.dot_dimension_numbers<[1], [0], [0], [1], [0, 0, 1, 1], [], []>} : vector<103x128xbf16>, vector<128x128xbf16>, vector<103x128xf32> -> vector<103x128xf32>
    %182 = vector.extract_strided_slice %0 {offsets = [2, 0], sizes = [1, 128], strides = [1, 1]} : vector<8x128xf32> to vector<1x128xf32>
    %183 = vector.broadcast %182 : vector<1x128xf32> to vector<103x128xf32>
    %184 = arith.mulf %181, %183 : vector<103x128xf32>
    %185 = vector.extract_strided_slice %0 {offsets = [3, 0], sizes = [1, 128], strides = [1, 1]} : vector<8x128xf32> to vector<1x128xf32>
    %186 = vector.broadcast %185 : vector<1x128xf32> to vector<103x128xf32>
    %187 = arith.addf %184, %186 : vector<103x128xf32>
    %cst_43 = arith.constant 0.000000e+00 : f32
    %188 = vector.broadcast %cst_43 : f32 to vector<103x128xf32>
    %189 = arith.maximumf %187, %188 : vector<103x128xf32>
    %190 = arith.truncf %189 : vector<103x128xf32> to vector<103x128xbf16>
    %c0_44 = arith.constant 0 : index
    %c0_45 = arith.constant 0 : index
    %191 = vector.load %arg4[%c0_44, %c0_45] : memref<128x128xbf16, #tpu.memory_space<vmem>>, vector<128x128xbf16>
    %cst_46 = arith.constant dense<0.000000e+00> : vector<103x128xf32>
    %192 = tpu.matmul %190, %191, %cst_46 {dimension_numbers = #tpu.dot_dimension_numbers<[1], [0], [0], [1], [0, 0, 1, 1], [], []>} : vector<103x128xbf16>, vector<128x128xbf16>, vector<103x128xf32> -> vector<103x128xf32>
    %193 = vector.extract_strided_slice %0 {offsets = [4, 0], sizes = [1, 128], strides = [1, 1]} : vector<8x128xf32> to vector<1x128xf32>
    %194 = vector.broadcast %193 : vector<1x128xf32> to vector<103x128xf32>
    %195 = arith.addf %192, %194 : vector<103x128xf32>
    %c0_47 = arith.constant 0 : index
    %c0_48 = arith.constant 0 : index
    %c0_49 = arith.constant 0 : index
    %196 = vector.load %arg6[%c0_47, %c0_48, %c0_49] : memref<1x103x128xf32, #tpu.memory_space<vmem>>, vector<1x103x128xf32>
    %197 = vector.shape_cast %196 : vector<1x103x128xf32> to vector<103x128xf32>
    %198 = vector.shape_cast %195 : vector<103x128xf32> to vector<1x103x128xf32>
    tpu.vector_store %arg6[%c0_47, %c0_48, %c0_49], %198 {strides = array<i32>} : memref<1x103x128xf32, #tpu.memory_space<vmem>>, vector<1x103x128xf32>,
    return
  }
  func.func @transform_0(%arg0: i32) -> (i32, i32, i32) {
    %c0_i32 = arith.constant 0 : i32
    %c0_i32_0 = arith.constant 0 : i32
    %c0_i32_1 = arith.constant 0 : i32
    return %arg0, %c0_i32, %c0_i32_0 : i32, i32, i32
  }
  func.func @transform_1(%arg0: i32) -> (i32, i32) {
    %c0_i32 = arith.constant 0 : i32
    %c0_i32_0 = arith.constant 0 : i32
    %c0_i32_1 = arith.constant 0 : i32
    return %c0_i32, %c0_i32_0 : i32, i32
  }
  func.func @transform_2(%arg0: i32) -> (i32, i32) {
    %c0_i32 = arith.constant 0 : i32
    %c0_i32_0 = arith.constant 0 : i32
    %c0_i32_1 = arith.constant 0 : i32
    return %c0_i32, %c0_i32_0 : i32, i32
  }
  func.func @transform_3(%arg0: i32) -> (i32, i32) {
    %c0_i32 = arith.constant 0 : i32
    %c0_i32_0 = arith.constant 0 : i32
    %c0_i32_1 = arith.constant 0 : i32
    return %c0_i32, %c0_i32_0 : i32, i32
  }
  func.func @transform_4(%arg0: i32) -> (i32, i32) {
    %c0_i32 = arith.constant 0 : i32
    %c0_i32_0 = arith.constant 0 : i32
    %c0_i32_1 = arith.constant 0 : i32
    return %c0_i32, %c0_i32_0 : i32, i32
  }
  func.func @transform_5(%arg0: i32) -> (i32, i32, i32) {
    %c0_i32 = arith.constant 0 : i32
    %c0_i32_0 = arith.constant 0 : i32
    %c0_i32_1 = arith.constant 0 : i32
    return %arg0, %c0_i32, %c0_i32_0 : i32, i32, i32
  }
}

</mosaic_0001>

<llo_original>
// kernel: rpn_forward.1
$region0: #{rpn_forward.1}
  #allocation0 [shape = 'u32[]', space=smem, size = 0x4, offset = 0x4, fixed_abs, tag = 'smem constant byte address 0x4 - core index']
  #allocation1 [shape = 'u32[144,128]{1,0:T(1,128)}', space=vmem, size = 0x12000, scoped, tag = 'internal scratch']
  %s0 = inlined_call_operand.vmem [shape: bf16[2,320,32], index: 0, kind: input, shape index: {}]
  %s1 = inlined_call_operand.vmem [shape: bf16[288,128], index: 1, kind: input, shape index: {}]
  %s2 = inlined_call_operand.vmem [shape: bf16[128,128], index: 2, kind: input, shape index: {}]
  %s3 = inlined_call_operand.vmem [shape: bf16[128,128], index: 3, kind: input, shape index: {}]
  %s4 = inlined_call_operand.vmem [shape: f32[8,128], index: 4, kind: input, shape index: {}]
  %s5 = inlined_call_operand.vmem [shape: f32[2,103,128], index: 5, kind: output, shape index: {}]
  %s6 = sld [smem:[#allocation0]]
  $region53: #{rpn_forward.1} parent=0
    _
  %s8 = ssub.s32 1, %s6
  %s9 = scalar_select 0, %s8, %s6
  loop: start=0, step=1, limit=4
  $region2: #{rpn_forward.1} parent=0 // loop_pre_header
    _
  $region3: #{rpn_forward.1} parent=0 // loop_header
    %s11 = sphi 0, %s15
    %p12 = scmp.ge.s32.totalorder %s11, 4
    %s21 = sphi 0, %s23
    %s24 = sphi 0, %s21
    %s25 = sphi 0, %s24
    %s41 = sphi 0, %s25
    %s45 = sphi 0, %s45
    %s47 = sphi 0, %s45
    %s48 = sphi 0, %s47
    %s62 = sphi 0, %s48
    %s66 = sphi 0, %s66
    %s68 = sphi 0, %s66
    %s69 = sphi 0, %s68
    %s83 = sphi 0, %s69
    %s87 = sphi 0, %s87
    %s89 = sphi 0, %s87
    %s90 = sphi 0, %s89
    %s104 = sphi 0, %s90
    %s108 = sphi 0, %s108
    %s110 = sphi 0, %s108
    %s111 = sphi 0, %s110
    %s125 = sphi 0, %s111
    %s131 = sphi 0, %s133
    %s134 = sphi 0, %s131
    %s135 = sphi 0, %s134
    %s151 = sphi 0, %s135
  $region4: #{rpn_forward.1} parent=0 // loop_header_branch
    %14 = sbr.rel (%p12) target = $region8
  $region5: #{rpn_forward.1} parent=0 // loop_body
    %s16 = ssub.s32 %s11, 1
    %s17 = ssub.s32 %s11, 2
    %s18 = sadd.s32 %s11, 1
    %s19 = ssub.s32 %s11, %s18
    %p20 = scmp.eq.s32.totalorder %s19, 0
    %s22 = sadd.s32 %s21, 1
    %s23 = scalar_select %p20, %s21, %s22
    %p26 = pneg %p20
    %p27 = scmp.eq.s32.totalorder %s11, 1
    %p28 = por %p26, %p27
    %p29 = scmp.ne.s32.totalorder %s21, %s24
    %p30 = scmp.eq.s32.totalorder %s11, 0
    %p31 = por %p29, %p30
    %p32 = scmp.ne.s32.totalorder %s21, %s24
    %p33 = scmp.eq.s32.totalorder %s16, 1
    %p34 = por %p32, %p33
    %p35 = scmp.ne.s32.totalorder %s24, %s25
    %p36 = scmp.eq.s32.totalorder %s16, 0
    %p37 = por %p35, %p36
    %p38 = scmp.ne.s32.totalorder %s24, %s25
    %p39 = scmp.eq.s32.totalorder %s17, 1
    %p40 = por %p38, %p39
    %p42 = scmp.ne.s32.totalorder %s25, %s41
    %p43 = scmp.eq.s32.totalorder %s17, 0
    %p44 = por %p42, %p43
    %s46 = sadd.s32 %s45, 1
    %p49 = scmp.eq.s32.totalorder %s11, 1
    %p50 = scmp.ne.s32.totalorder %s45, %s47
    %p51 = scmp.eq.s32.totalorder %s11, 0
    %p52 = por %p50, %p51
    %p53 = scmp.ne.s32.totalorder %s45, %s47
    %p54 = scmp.eq.s32.totalorder %s16, 1
    %p55 = por %p53, %p54
    %p56 = scmp.ne.s32.totalorder %s47, %s48
    %p57 = scmp.eq.s32.totalorder %s16, 0
    %p58 = por %p56, %p57
    %p59 = scmp.ne.s32.totalorder %s47, %s48
    %p60 = scmp.eq.s32.totalorder %s17, 1
    %p61 = por %p59, %p60
    %p63 = scmp.ne.s32.totalorder %s48, %s62
    %p64 = scmp.eq.s32.totalorder %s17, 0
    %p65 = por %p63, %p64
    %s67 = sadd.s32 %s66, 1
    %p70 = scmp.eq.s32.totalorder %s11, 1
    %p71 = scmp.ne.s32.totalorder %s66, %s68
    %p72 = scmp.eq.s32.totalorder %s11, 0
    %p73 = por %p71, %p72
    %p74 = scmp.ne.s32.totalorder %s66, %s68
    %p75 = scmp.eq.s32.totalorder %s16, 1
    %p76 = por %p74, %p75
    %p77 = scmp.ne.s32.totalorder %s68, %s69
    %p78 = scmp.eq.s32.totalorder %s16, 0
    %p79 = por %p77, %p78
    %p80 = scmp.ne.s32.totalorder %s68, %s69
    %p81 = scmp.eq.s32.totalorder %s17, 1
    %p82 = por %p80, %p81
    %p84 = scmp.ne.s32.totalorder %s69, %s83
    %p85 = scmp.eq.s32.totalorder %s17, 0
    %p86 = por %p84, %p85
    %s88 = sadd.s32 %s87, 1
    %p91 = scmp.eq.s32.totalorder %s11, 1
    %p92 = scmp.ne.s32.totalorder %s87, %s89
    %p93 = scmp.eq.s32.totalorder %s11, 0
    %p94 = por %p92, %p93
    %p95 = scmp.ne.s32.totalorder %s87, %s89
    %p96 = scmp.eq.s32.totalorder %s16, 1
    %p97 = por %p95, %p96
    %p98 = scmp.ne.s32.totalorder %s89, %s90
    %p99 = scmp.eq.s32.totalorder %s16, 0
    %p100 = por %p98, %p99
    %p101 = scmp.ne.s32.totalorder %s89, %s90
    %p102 = scmp.eq.s32.totalorder %s17, 1
    %p103 = por %p101, %p102
    %p105 = scmp.ne.s32.totalorder %s90, %s104
    %p106 = scmp.eq.s32.totalorder %s17, 0
    %p107 = por %p105, %p106
    %s109 = sadd.s32 %s108, 1
    %p112 = scmp.eq.s32.totalorder %s11, 1
    %p113 = scmp.ne.s32.totalorder %s108, %s110
    %p114 = scmp.eq.s32.totalorder %s11, 0
    %p115 = por %p113, %p114
    %p116 = scmp.ne.s32.totalorder %s108, %s110
    %p117 = scmp.eq.s32.totalorder %s16, 1
    %p118 = por %p116, %p117
    %p119 = scmp.ne.s32.totalorder %s110, %s111
    %p120 = scmp.eq.s32.totalorder %s16, 0
    %p121 = por %p119, %p120
    %p122 = scmp.ne.s32.totalorder %s110, %s111
    %p123 = scmp.eq.s32.totalorder %s17, 1
    %p124 = por %p122, %p123
    %p126 = scmp.ne.s32.totalorder %s111, %s125
    %p127 = scmp.eq.s32.totalorder %s17, 0
    %p128 = por %p126, %p127
    %s129 = ssub.s32 %s11, %s18
    %p130 = scmp.eq.s32.totalorder %s129, 0
    %s132 = sadd.s32 %s131, 1
    %s133 = scalar_select %p130, %s131, %s132
    %p136 = pneg %p130
    %p137 = scmp.eq.s32.totalorder %s11, 1
    %p138 = por %p136, %p137
    %p139 = scmp.ne.s32.totalorder %s131, %s134
    %p140 = scmp.eq.s32.totalorder %s11, 0
    %p141 = por %p139, %p140
    %p142 = scmp.ne.s32.totalorder %s131, %s134
    %p143 = scmp.eq.s32.totalorder %s16, 1
    %p144 = por %p142, %p143
    %p145 = scmp.ne.s32.totalorder %s134, %s135
    %p146 = scmp.eq.s32.totalorder %s16, 0
    %p147 = por %p145, %p146
    %p148 = scmp.ne.s32.totalorder %s134, %s135
    %p149 = scmp.eq.s32.totalorder %s17, 1
    %p150 = por %p148, %p149
    %p152 = scmp.ne.s32.totalorder %s135, %s151
    %p153 = scmp.eq.s32.totalorder %s17, 0
    %p154 = por %p152, %p153
    %p155 = scmp.le.s32.totalorder 1, %s11
    %p156 = scmp.lt.s32.totalorder %s11, 3
    %p157 = pnand %p155, %p156
    %p158 = pneg %p157
    // Predicated region
    $region9: #{rpn_forward.1} parent=5 // pred_check
      _
    $region10: #{rpn_forward.1} parent=5 // pred_check_branch
      %160 = sbr.rel (%p157) target = $region12
    $region11: #{rpn_forward.1} parent=5 // pred_region
      %s161 = ssub.s32 %s11, 1
      // Predicated region
      $region13: #{rpn_forward.1} parent=11 // pred_check
        %p162 = pneg %p58
      $region14: #{rpn_forward.1} parent=11 // pred_check_branch
        %164 = sbr.rel (%p162) target = $region16
      $region15: #{rpn_forward.1} parent=11 // pred_region
        _
      $region16: #{rpn_forward.1} parent=11 // pred_fallthru
        _
      // Predicated region
      $region17: #{rpn_forward.1} parent=11 // pred_check
        %p165 = pneg %p79
      $region18: #{rpn_forward.1} parent=11 // pred_check_branch
        %167 = sbr.rel (%p165) target = $region20
      $region19: #{rpn_forward.1} parent=11 // pred_region
        _
      $region20: #{rpn_forward.1} parent=11 // pred_fallthru
        _
      // Predicated region
      $region21: #{rpn_forward.1} parent=11 // pred_check
        %p168 = pneg %p100
      $region22: #{rpn_forward.1} parent=11 // pred_check_branch
        %170 = sbr.rel (%p168) target = $region24
      $region23: #{rpn_forward.1} parent=11 // pred_region
        _
      $region24: #{rpn_forward.1} parent=11 // pred_fallthru
        _
      // Predicated region
      $region25: #{rpn_forward.1} parent=11 // pred_check
        %p171 = pneg %p121
      $region26: #{rpn_forward.1} parent=11 // pred_check_branch
        %173 = sbr.rel (%p171) target = $region28
      $region27: #{rpn_forward.1} parent=11 // pred_region
        _
      $region28: #{rpn_forward.1} parent=11 // pred_fallthru
        _
    $region12: #{rpn_forward.1} parent=5 // pred_fallthru
      _
    %p174 = scmp.lt.s32.totalorder %s11, 2
    // Predicated region
    $region29: #{rpn_forward.1} parent=5 // pred_check
      %p175 = pneg %p174
    $region30: #{rpn_forward.1} parent=5 // pred_check_branch
      %177 = sbr.rel (%p175) target = $region32
    $region31: #{rpn_forward.1} parent=5 // pred_region
      // Predicated region
      $region33: #{rpn_forward.1} parent=31 // pred_check
        %p178 = pneg %p31
      $region34: #{rpn_forward.1} parent=31 // pred_check_branch
        %180 = sbr.rel (%p178) target = $region36
      $region35: #{rpn_forward.1} parent=31 // pred_region
        %p181 = scmp.lt.s32.totalorder %s11, 1
        %s182 = scalar_select %p181, %s11, 1
        %s183 = smul.addr %s182, 40
        %s184 = smul.addr %s183, 4
        %s185 = scalar_lea.vmem %s0, %s184
      $region36: #{rpn_forward.1} parent=31 // pred_fallthru
        _
    $region32: #{rpn_forward.1} parent=5 // pred_fallthru
      _
    %p186 = scmp.le.s32.totalorder 1, %s11
    %p187 = scmp.lt.s32.totalorder %s11, 3
    %p188 = pnand %p186, %p187
    %p189 = pneg %p188
    // Predicated region
    $region37: #{rpn_forward.1} parent=5 // pred_check
      _
    $region38: #{rpn_forward.1} parent=5 // pred_check_branch
      %191 = sbr.rel (%p188) target = $region40
    $region39: #{rpn_forward.1} parent=5 // pred_region
      %s192 = ssub.s32 %s11, 1
      %p193 = scmp.lt.s32.totalorder %s16, 1
      %s194 = scalar_select %p193, %s16, 1
      %s195 = smul.addr %s194, 40
      %s196 = smul.addr %s195, 4
      %s197 = scalar_lea.vmem %s0, %s196
      %p198 = pneg %p37
      %p199 = pneg %p34
      %p200 = pneg %p58
      %p201 = pneg %p55
      %p202 = pneg %p79
      %p203 = pneg %p76
      %p204 = pneg %p100
      %p205 = pneg %p97
      %p206 = pneg %p121
      %p207 = pneg %p118
      %p208 = pneg %p147
      %p209 = pneg %p144
      %p210 = scmp.lt.s32.totalorder %s16, 1
      %s211 = scalar_select %p210, %s16, 1
      %s212 = smul.addr %s211, 13
      %s213 = smul.addr %s212, 8
      %s214 = scalar_lea.vmem %s5, %s213
      %p215 = scmp.lt.s32.totalorder %s16, 1
      %s216 = scalar_select %p215, %s16, 1
      %s217 = smul.addr %s216, 40
      %s218 = smul.addr %s217, 4
      %s219 = scalar_lea.vmem %s0, %s218
      %p220 = scmp.lt.s32.totalorder %s16, 1
      %s221 = scalar_select %p220, %s16, 1
      %s222 = smul.addr %s221, 13
      %s223 = smul.addr %s222, 8
      %s224 = scalar_lea.vmem %s5, %s223
      %v226 = vld [vmem:[%s4] sm:$0xff]
      %v227 = vld [vmem:[%s219] sm:$0xf]
      %v228 = vld [vmem:[%s219 + $0x4] sm:$0xf]
      %v229 = vld [vmem:[%s219 + $0x8] sm:$0xf]
      %v230 = vld [vmem:[%s219 + $0xc] sm:$0xf]
      %v231 = vld [vmem:[%s219 + $0x10] sm:$0xf]
      %v232 = vld [vmem:[%s219 + $0x14] sm:$0xf]
      %v233 = vld [vmem:[%s219 + $0x18] sm:$0xf]
      %v234 = vld [vmem:[%s219 + $0x1c] sm:$0xf]
      %v235 = vld [vmem:[%s219 + $0x20] sm:$0xf]
      %v236 = vld [vmem:[%s219 + $0x24] sm:$0xf]
      %v237 = vld [vmem:[%s219 + $0x28] sm:$0xf]
      %v238 = vld [vmem:[%s219 + $0x2c] sm:$0xf]
      %v239 = vld [vmem:[%s219 + $0x30] sm:$0xf]
      %v240 = vld [vmem:[%s219 + $0x34] sm:$0xf]
      %v241 = vld [vmem:[%s219 + $0x38] sm:$0xf]
      %v242 = vld [vmem:[%s219 + $0x3c] sm:$0xf]
      %v243 = vld [vmem:[%s219 + $0x40] sm:$0xf]
      %v244 = vld [vmem:[%s219 + $0x44] sm:$0xf]
      %v245 = vld [vmem:[%s219 + $0x48] sm:$0xf]
      %v246 = vld [vmem:[%s219 + $0x4c] sm:$0xf]
      %v247 = vld [vmem:[%s219 + $0x50] sm:$0xf]
      %v248 = vld [vmem:[%s219 + $0x54] sm:$0xf]
      %v249 = vld [vmem:[%s219 + $0x58] sm:$0xf]
      %v250 = vld [vmem:[%s219 + $0x5c] sm:$0xf]
      %v251 = vld [vmem:[%s219 + $0x60] sm:$0xf]
      %v252 = vld [vmem:[%s219 + $0x64] sm:$0xf]
      %v253 = vld [vmem:[%s219 + $0x68] sm:$0xf]
      %v254 = vld [vmem:[%s219 + $0x6c] sm:$0xf]
      %v255 = vld [vmem:[%s219 + $0x70] sm:$0xf]
      %v256 = vld [vmem:[%s219 + $0x74] sm:$0xf]
      %v257 = vld [vmem:[%s219 + $0x78] sm:$0xf]
      %v258 = vld [vmem:[%s219 + $0x7c] sm:$0xf]
      %v259 = vld [vmem:[%s219 + $0x80] sm:$0xf]
      %v260 = vld [vmem:[%s219 + $0x84] sm:$0xf]
      %v261 = vld [vmem:[%s219 + $0x88] sm:$0xf]
      %v262 = vld [vmem:[%s219 + $0x8c] sm:$0x3]
      %v263 = vld [vmem:[%s1] sm:$0xf]
      %v264 = vld [vmem:[%s1 + $0x4] sm:$0xf]
      %v265 = vld [vmem:[%s1 + $0x8] sm:$0xf]
      %v266 = vld [vmem:[%s1 + $0xc] sm:$0xf]
      %v267 = vld [vmem:[%s1 + $0x10] sm:$0xf]
      %v268 = vld [vmem:[%s1 + $0x14] sm:$0xf]
      %v269 = vld [vmem:[%s1 + $0x18] sm:$0xf]
      %v270 = vld [vmem:[%s1 + $0x1c] sm:$0xf]
      %v307 = vunpack.c.l.b16 %v227
      %v308 = vunpack.c.l.b16 %v228
      %v309 = vunpack.c.l.b16 %v229
      %v310 = vunpack.c.l.b16 %v230
      %v311 = vunpack.c.l.b16 %v231
      %v312 = vunpack.c.l.b16 %v232
      %v313 = vunpack.c.l.b16 %v233
      %v314 = vunpack.c.l.b16 %v234
      %v315 = vunpack.c.l.b16 %v235
      %v316 = vunpack.c.l.b16 %v236
      %v317 = vunpack.c.l.b16 %v237
      %v318 = vunpack.c.l.b16 %v238
      %v319 = vunpack.c.l.b16 %v239
      %v320 = vunpack.c.l.b16 %v240
      %v321 = vunpack.c.l.b16 %v241
      %v322 = vunpack.c.l.b16 %v242
      %v323 = vunpack.c.l.b16 %v243
      %v324 = vunpack.c.l.b16 %v244
      %v325 = vunpack.c.l.b16 %v245
      %v326 = vunpack.c.l.b16 %v246
      %v327 = vunpack.c.l.b16 %v247
      %v328 = vunpack.c.l.b16 %v248
      %v329 = vunpack.c.l.b16 %v249
      %v330 = vunpack.c.l.b16 %v250
      %v331 = vunpack.c.l.b16 %v251
      %v332 = vunpack.c.l.b16 %v252
      %v333 = vunpack.c.l.b16 %v253
      %v334 = vunpack.c.l.b16 %v254
      %v335 = vunpack.c.l.b16 %v255
      %v336 = vunpack.c.l.b16 %v256
      %v337 = vunpack.c.l.b16 %v257
      %v338 = vunpack.c.l.b16 %v258
      %v339 = vunpack.c.l.b16 %v259
      %v340 = vunpack.c.l.b16 %v260
      %v341 = vunpack.c.l.b16 %v261
      %v342 = vunpack.c.l.b16 %v262
      %v343 = vpack.c.b16 %v308, %v307
      %v344 = vpack.c.b16 %v310, %v309
      %v345 = vpack.c.b16 %v312, %v311
      %v346 = vpack.c.b16 %v314, %v313
      %v347 = vpack.c.b16 %v316, %v315
      %v348 = vpack.c.b16 %v318, %v317
      %v349 = vpack.c.b16 %v320, %v319
      %v350 = vpack.c.b16 %v322, %v321
      %v351 = vpack.c.b16 %v324, %v323
      %v352 = vpack.c.b16 %v326, %v325
      %v353 = vpack.c.b16 %v328, %v327
      %v354 = vpack.c.b16 %v330, %v329
      %v355 = vpack.c.b16 %v332, %v331
      %v356 = vpack.c.b16 %v334, %v333
      %v357 = vpack.c.b16 %v336, %v335
      %v358 = vpack.c.b16 %v338, %v337
      %v359 = vpack.c.b16 %v340, %v339
      %v360 = vpack.c.b16 %v342, %v341
      %vm361 = vsmask.f32 7424
      %v363 = vshrl.u32 %v343, 16
      %v365 = vshll.u32 %v343, 16
      %v367 = vrot.slane %v365, 1
      %v368 = vor.u32 %v363, %v367
      %v370 = vshll.u32 %v344, 16
      %v372 = vrot.slane %v370, 1
      %v373 = vsel %vm361, %v368, %v372
      %v374 = vshrl.u32 %v344, 16
      %v376 = vor.u32 %v374, %v372
      %v378 = vshll.u32 %v345, 16
      %v380 = vrot.slane %v378, 1
      %v381 = vsel %vm361, %v376, %v380
      %v382 = vshrl.u32 %v345, 16
      %v384 = vor.u32 %v382, %v380
      %v386 = vshll.u32 %v346, 16
      %v388 = vrot.slane %v386, 1
      %v389 = vsel %vm361, %v384, %v388
      %v390 = vshrl.u32 %v346, 16
      %v392 = vor.u32 %v390, %v388
      %v394 = vshll.u32 %v347, 16
      %v396 = vrot.slane %v394, 1
      %v397 = vsel %vm361, %v392, %v396
      %v398 = vshrl.u32 %v347, 16
      %v400 = vor.u32 %v398, %v396
      %v402 = vshll.u32 %v348, 16
      %v404 = vrot.slane %v402, 1
      %v405 = vsel %vm361, %v400, %v404
      %v406 = vshrl.u32 %v348, 16
      %v408 = vor.u32 %v406, %v404
      %v410 = vshll.u32 %v349, 16
      %v412 = vrot.slane %v410, 1
      %v413 = vsel %vm361, %v408, %v412
      %v414 = vshrl.u32 %v349, 16
      %v416 = vor.u32 %v414, %v412
      %v418 = vshll.u32 %v350, 16
      %v420 = vrot.slane %v418, 1
      %v421 = vsel %vm361, %v416, %v420
      %v422 = vshrl.u32 %v350, 16
      %v424 = vor.u32 %v422, %v420
      %v426 = vshll.u32 %v351, 16
      %v428 = vrot.slane %v426, 1
      %v429 = vsel %vm361, %v424, %v428
      %v430 = vshrl.u32 %v351, 16
      %v432 = vor.u32 %v430, %v428
      %v434 = vshll.u32 %v352, 16
      %v436 = vrot.slane %v434, 1
      %v437 = vsel %vm361, %v432, %v436
      %v438 = vshrl.u32 %v352, 16
      %v440 = vor.u32 %v438, %v436
      %v442 = vshll.u32 %v353, 16
      %v444 = vrot.slane %v442, 1
      %v445 = vsel %vm361, %v440, %v444
      %v446 = vshrl.u32 %v353, 16
      %v448 = vor.u32 %v446, %v444
      %v450 = vshll.u32 %v354, 16
      %v452 = vrot.slane %v450, 1
      %v453 = vsel %vm361, %v448, %v452
      %v454 = vshrl.u32 %v354, 16
      %v456 = vor.u32 %v454, %v452
      %v458 = vshll.u32 %v355, 16
      %v460 = vrot.slane %v458, 1
      %v461 = vsel %vm361, %v456, %v460
      %v462 = vshrl.u32 %v355, 16
      %v464 = vor.u32 %v462, %v460
      %v466 = vshll.u32 %v356, 16
      %v468 = vrot.slane %v466, 1
      %v469 = vsel %vm361, %v464, %v468
      %v470 = vshrl.u32 %v356, 16
      %v472 = vor.u32 %v470, %v468
      %v474 = vshll.u32 %v357, 16
      %v476 = vrot.slane %v474, 1
      %v477 = vsel %vm361, %v472, %v476
      %v478 = vshrl.u32 %v357, 16
      %v480 = vor.u32 %v478, %v476
      %v482 = vshll.u32 %v358, 16
      %v484 = vrot.slane %v482, 1
      %v485 = vsel %vm361, %v480, %v484
      %v486 = vshrl.u32 %v358, 16
      %v488 = vor.u32 %v486, %v484
      %v490 = vshll.u32 %v359, 16
      %v492 = vrot.slane %v490, 1
      %v493 = vsel %vm361, %v488, %v492
      %v494 = vshrl.u32 %v359, 16
      %v496 = vor.u32 %v494, %v492
      %v498 = vshll.u32 %v360, 16
      %v500 = vrot.slane %v498, 1
      %v501 = vsel %vm361, %v496, %v500
      %v502 = vshrl.u32 %v360, 16
      %v504 = vor.u32 %v502, %v500
      %v509 = vunpack.c.l.b16 %v267
      %v510 = vunpack.c.l.b16 %v268
      %v511 = vunpack.c.l.b16 %v269
      %v512 = vunpack.c.l.b16 %v270
      %v513 = vpack.c.b16 %v510, %v509
      %v514 = vpack.c.b16 %v512, %v511
      %vm517 = vcmask 261120
      %v519 = vsel %vm517, %v373, 0
      %v522 = vsel %vm517, %v381, 0
      %v525 = vsel %vm517, %v389, 0
      %v528 = vsel %vm517, %v397, 0
      %v531 = vsel %vm517, %v405, 0
      %v534 = vsel %vm517, %v413, 0
      %v537 = vsel %vm517, %v421, 0
      %v540 = vsel %vm517, %v429, 0
      %v543 = vsel %vm517, %v437, 0
      %v546 = vsel %vm517, %v445, 0
      %v549 = vsel %vm517, %v453, 0
      %v552 = vsel %vm517, %v461, 0
      %v555 = vsel %vm517, %v469, 0
      %v558 = vsel %vm517, %v477, 0
      %v561 = vsel %vm517, %v485, 0
      %v564 = vsel %vm517, %v493, 0
      %v567 = vsel %vm517, %v501, 0
      %v570 = vsel %vm517, %v504, 0
      %572 = vmatprep.subr.bf16.mxu0 0
      %573 = vmatpush1.bf16.msra.mxu0 %v513
      %574 = vmatprep.subr.bf16.mxu0 0
      %575 = vmatpush1.bf16.msra.mxu0 %v514
      %576 = vmatprep.subr.bf16.mxu0 0
      %577 = vmatpush1.bf16.msra.mxu0 0
      %578 = vmatprep.subr.bf16.mxu0 0
      %579 = vmatpush1.bf16.msra.mxu0 0
      %580 = vmatprep.subr.bf16.mxu0 0
      %581 = vmatpush1.bf16.msra.mxu0 0
      %582 = vmatprep.subr.bf16.mxu0 0
      %583 = vmatpush1.bf16.msra.mxu0 0
      %584 = vmatprep.subr.bf16.mxu0 0
      %585 = vmatpush1.bf16.msra.mxu0 0
      %586 = vmatprep.subr.bf16.mxu0 0
      %587 = vmatpush1.bf16.msra.mxu0 0
      %588 = vmatprep.subr.bf16.mxu0 0
      %589 = vmatpush1.bf16.msra.mxu0 0
      %590 = vmatprep.subr.bf16.mxu0 0
      %591 = vmatpush1.bf16.msra.mxu0 0
      %592 = vmatprep.subr.bf16.mxu0 0
      %593 = vmatpush1.bf16.msra.mxu0 0
      %594 = vmatprep.subr.bf16.mxu0 0
      %595 = vmatpush1.bf16.msra.mxu0 0
      %596 = vmatprep.subr.bf16.mxu0 0
      %597 = vmatpush1.bf16.msra.mxu0 0
      %598 = vmatprep.subr.bf16.mxu0 0
      %599 = vmatpush1.bf16.msra.mxu0 0
      %600 = vmatprep.subr.bf16.mxu0 0
      %601 = vmatpush1.bf16.msra.mxu0 0
      %602 = vmatprep.subr.bf16.mxu0 0
      %603 = vmatpush1.bf16.msra.mxu0 0
      %604 = vmatprep.mubr.bf16.mxu0 0
      %605 = vmatmul.mubr.bf16.gmra.mrb[0].mxu0 %v519
      %v606 = vpop.f32.mrb[0].mxu0
      %v607 = vadd.f32 0.0, %v606
      %v608 = vpop.f32.mrb[0].mxu0
      %v609 = vpop.f32.mrb[0].mxu0
      %v610 = vpop.f32.mrb[0].mxu0
      %611 = vmatprep.mubr.bf16.mxu0 0
      %612 = vmatmul.mubr.bf16.gmra.mrb[0].mxu0 %v522
      %v613 = vpop.f32.mrb[0].mxu0
      %v614 = vadd.f32 0.0, %v613
      %v615 = vpop.f32.mrb[0].mxu0
      %v616 = vpop.f32.mrb[0].mxu0
      %v617 = vpop.f32.mrb[0].mxu0
      %618 = vmatprep.mubr.bf16.mxu0 0
      %619 = vmatmul.mubr.bf16.gmra.mrb[0].mxu0 %v525
      %v620 = vpop.f32.mrb[0].mxu0
      %v621 = vadd.f32 0.0, %v620
      %v622 = vpop.f32.mrb[0].mxu0
      %v623 = vpop.f32.mrb[0].mxu0
      %v624 = vpop.f32.mrb[0].mxu0
      %625 = vmatprep.mubr.bf16.mxu0 0
      %626 = vmatmul.mubr.bf16.gmra.mrb[0].mxu0 %v528
      %v627 = vpop.f32.mrb[0].mxu0
      %v628 = vadd.f32 0.0, %v627
      %v629 = vpop.f32.mrb[0].mxu0
      %v630 = vpop.f32.mrb[0].mxu0
      %v631 = vpop.f32.mrb[0].mxu0
      %632 = vmatprep.mubr.bf16.mxu0 0
      %633 = vmatmul.mubr.bf16.gmra.mrb[0].mxu0 %v531
      %v634 = vpop.f32.mrb[0].mxu0
      %v635 = vadd.f32 0.0, %v634
      %v636 = vpop.f32.mrb[0].mxu0
      %v637 = vpop.f32.mrb[0].mxu0
      %v638 = vpop.f32.mrb[0].mxu0
      %639 = vmatprep.mubr.bf16.mxu0 0
      %640 = vmatmul.mubr.bf16.gmra.mrb[0].mxu0 %v534
      %v641 = vpop.f32.mrb[0].mxu0
      %v642 = vpop.f32.mrb[0].mxu0
      %v643 = vpop.f32.mrb[0].mxu0
      %v644 = vpop.f32.mrb[0].mxu0
      %645 = vmatprep.mubr.bf16.mxu0 0
      %646 = vmatmul.mubr.bf16.gmra.mrb[0].mxu0 %v537
      %v647 = vpop.f32.mrb[0].mxu0
      %v648 = vpop.f32.mrb[0].mxu0
      %v649 = vpop.f32.mrb[0].mxu0
      %v650 = vpop.f32.mrb[0].mxu0
      %651 = vmatprep.mubr.bf16.mxu0 0
      %652 = vmatmul.mubr.bf16.gmra.mrb[0].mxu0 %v540
      %v653 = vpop.f32.mrb[0].mxu0
      %v654 = vadd.f32 0.0, %v653
      %v655 = vpop.f32.mrb[0].mxu0
      %v656 = vpop.f32.mrb[0].mxu0
      %v657 = vadd.f32 0.0, %v656
      %v658 = vpop.f32.mrb[0].mxu0
      %659 = vmatprep.mubr.bf16.mxu0 0
      %660 = vmatmul.mubr.bf16.gmra.mrb[0].mxu0 %v543
      %v661 = vpop.f32.mrb[0].mxu0
      %v662 = vadd.f32 0.0, %v661
      %v663 = vpop.f32.mrb[0].mxu0
      %v664 = vpop.f32.mrb[0].mxu0
      %v665 = vadd.f32 0.0, %v664
      %v666 = vpop.f32.mrb[0].mxu0
      %667 = vmatprep.mubr.bf16.mxu0 0
      %668 = vmatmul.mubr.bf16.gmra.mrb[0].mxu0 %v546
      %v669 = vpop.f32.mrb[0].mxu0
      %v670 = vadd.f32 0.0, %v669
      %v671 = vpop.f32.mrb[0].mxu0
      %v672 = vpop.f32.mrb[0].mxu0
      %v673 = vadd.f32 0.0, %v672
      %v674 = vpop.f32.mrb[0].mxu0
      %675 = vmatprep.mubr.bf16.mxu0 0
      %676 = vmatmul.mubr.bf16.gmra.mrb[0].mxu0 %v549
      %v677 = vpop.f32.mrb[0].mxu0
      %v678 = vadd.f32 0.0, %v677
      %v679 = vpop.f32.mrb[0].mxu0
      %v680 = vpop.f32.mrb[0].mxu0
      %v681 = vadd.f32 0.0, %v680
      %v682 = vpop.f32.mrb[0].mxu0
      %683 = vmatprep.mubr.bf16.mxu0 0
      %684 = vmatmul.mubr.bf16.gmra.mrb[0].mxu0 %v552
      %v685 = vpop.f32.mrb[0].mxu0
      %v686 = vadd.f32 0.0, %v685
      %v687 = vpop.f32.mrb[0].mxu0
      %v688 = vpop.f32.mrb[0].mxu0
      %v689 = vadd.f32 0.0, %v688
      %v690 = vpop.f32.mrb[0].mxu0
      %691 = vmatprep.mubr.bf16.mxu0 0
      %692 = vmatmul.mubr.bf16.gmra.mrb[0].mxu0 %v555
      %v693 = vpop.f32.mrb[0].mxu0
      %v694 = vadd.f32 0.0, %v693
      %v695 = vpop.f32.mrb[0].mxu0
      %v696 = vpop.f32.mrb[0].mxu0
      %v697 = vadd.f32 0.0, %v696
      %v698 = vpop.f32.mrb[0].mxu0
      %699 = vmatprep.mubr.bf16.mxu0 0
      %700 = vmatmul.mubr.bf16.gmra.mrb[0].mxu0 %v558
      %v701 = vpop.f32.mrb[0].mxu0
      %v702 = vadd.f32 0.0, %v701
      %v703 = vpop.f32.mrb[0].mxu0
      %v704 = vpop.f32.mrb[0].mxu0
      %v705 = vadd.f32 0.0, %v704
      %v706 = vpop.f32.mrb[0].mxu0
      %707 = vmatprep.mubr.bf16.mxu0 0
      %708 = vmatmul.mubr.bf16.gmra.mrb[0].mxu0 %v561
      %v709 = vpop.f32.mrb[0].mxu0
      %v710 = vadd.f32 0.0, %v709
      %v711 = vpop.f32.mrb[0].mxu0
      %v712 = vpop.f32.mrb[0].mxu0
      %v713 = vadd.f32 0.0, %v712
      %v714 = vpop.f32.mrb[0].mxu0
      %715 = vmatprep.mubr.bf16.mxu0 0
      %716 = vmatmul.mubr.bf16.gmra.mrb[0].mxu0 %v564
      %v717 = vpop.f32.mrb[0].mxu0
      %v718 = vadd.f32 0.0, %v717
      %v719 = vpop.f32.mrb[0].mxu0
      %v720 = vpop.f32.mrb[0].mxu0
      %v721 = vadd.f32 0.0, %v720
      %v722 = vpop.f32.mrb[0].mxu0
      %723 = vmatprep.mubr.bf16.mxu0 0
      %724 = vmatmul.mubr.bf16.gmra.mrb[0].mxu0 %v567
      %v725 = vpop.f32.mrb[0].mxu0
      %v726 = vadd.f32 0.0, %v725
      %v727 = vpop.f32.mrb[0].mxu0
      %v728 = vpop.f32.mrb[0].mxu0
      %v729 = vadd.f32 0.0, %v728
      %v730 = vpop.f32.mrb[0].mxu0
      %731 = vmatprep.mubr.bf16.mxu0 0
      %732 = vmatmul.mubr.bf16.gmra.mrb[0].mxu0 %v570
      %v733 = vpop.f32.mrb[0].mxu0
      %v734 = vadd.f32 0.0, %v733
      %v735 = vpop.f32.mrb[0].mxu0
      %v736 = vpop.f32.mrb[0].mxu0
      %v737 = vadd.f32 0.0, %v736
      %v738 = vpop.f32.mrb[0].mxu0
      %739 = vdwg.mxu0
      %v744 = vunpack.c.l.b16 %v263
      %v745 = vunpack.c.l.b16 %v264
      %v746 = vunpack.c.l.b16 %v265
      %v747 = vunpack.c.l.b16 %v266
      %v748 = vpack.c.b16 %v745, %v744
      %v749 = vpack.c.b16 %v747, %v746
      %v752 = vsel %vm517, %v343, 0
      %v754 = vsel %vm517, %v344, 0
      %v756 = vsel %vm517, %v345, 0
      %v758 = vsel %vm517, %v346, 0
      %v760 = vsel %vm517, %v347, 0
      %v762 = vsel %vm517, %v348, 0
      %v764 = vsel %vm517, %v349, 0
      %v766 = vsel %vm517, %v350, 0
      %v768 = vsel %vm517, %v351, 0
      %v770 = vsel %vm517, %v352, 0
      %v772 = vsel %vm517, %v353, 0
      %v774 = vsel %vm517, %v354, 0
      %v776 = vsel %vm517, %v355, 0
      %v778 = vsel %vm517, %v356, 0
      %v780 = vsel %vm517, %v357, 0
      %v782 = vsel %vm517, %v358, 0
      %v784 = vsel %vm517, %v359, 0
      %v786 = vsel %vm517, %v360, 0
      %788 = vmatprep.subr.bf16.mxu0 0
      %789 = vmatpush1.bf16.msra.mxu0 %v748
      %790 = vmatprep.subr.bf16.mxu0 0
      %791 = vmatpush1.bf16.msra.mxu0 %v749
      %792 = vmatprep.subr.bf16.mxu0 0
      %793 = vmatpush1.bf16.msra.mxu0 0
      %794 = vmatprep.subr.bf16.mxu0 0
      %795 = vmatpush1.bf16.msra.mxu0 0
      %796 = vmatprep.subr.bf16.mxu0 0
      %797 = vmatpush1.bf16.msra.mxu0 0
      %798 = vmatprep.subr.bf16.mxu0 0
      %799 = vmatpush1.bf16.msra.mxu0 0
      %800 = vmatprep.subr.bf16.mxu0 0
      %801 = vmatpush1.bf16.msra.mxu0 0
      %802 = vmatprep.subr.bf16.mxu0 0
      %803 = vmatpush1.bf16.msra.mxu0 0
      %804 = vmatprep.subr.bf16.mxu0 0
      %805 = vmatpush1.bf16.msra.mxu0 0
      %806 = vmatprep.subr.bf16.mxu0 0
      %807 = vmatpush1.bf16.msra.mxu0 0
      %808 = vmatprep.subr.bf16.mxu0 0
      %809 = vmatpush1.bf16.msra.mxu0 0
      %810 = vmatprep.subr.bf16.mxu0 0
      %811 = vmatpush1.bf16.msra.mxu0 0
      %812 = vmatprep.subr.bf16.mxu0 0
      %813 = vmatpush1.bf16.msra.mxu0 0
      %814 = vmatprep.subr.bf16.mxu0 0
      %815 = vmatpush1.bf16.msra.mxu0 0
      %816 = vmatprep.subr.bf16.mxu0 0
      %817 = vmatpush1.bf16.msra.mxu0 0
      %818 = vmatprep.subr.bf16.mxu0 0
      %819 = vmatpush1.bf16.msra.mxu0 0
      %820 = vmatprep.mubr.bf16.mxu0 0
      %821 = vmatmul.mubr.bf16.gmra.mrb[0].mxu0 %v752
      %v822 = vpop.f32.mrb[0].mxu0
      %v823 = vadd.f32 %v607, %v822
      %v824 = vpop.f32.mrb[0].mxu0
      %v825 = vpop.f32.mrb[0].mxu0
      %v826 = vpop.f32.mrb[0].mxu0
      %827 = vmatprep.mubr.bf16.mxu0 0
      %828 = vmatmul.mubr.bf16.gmra.mrb[0].mxu0 %v754
      %v829 = vpop.f32.mrb[0].mxu0
      %v830 = vadd.f32 %v614, %v829
      %v831 = vpop.f32.mrb[0].mxu0
      %v832 = vpop.f32.mrb[0].mxu0
      %v833 = vpop.f32.mrb[0].mxu0
      %834 = vmatprep.mubr.bf16.mxu0 0
      %835 = vmatmul.mubr.bf16.gmra.mrb[0].mxu0 %v756
      %v836 = vpop.f32.mrb[0].mxu0
      %v837 = vadd.f32 %v621, %v836
      %v838 = vpop.f32.mrb[0].mxu0
      %v839 = vpop.f32.mrb[0].mxu0
      %v840 = vpop.f32.mrb[0].mxu0
      %841 = vmatprep.mubr.bf16.mxu0 0
      %842 = vmatmul.mubr.bf16.gmra.mrb[0].mxu0 %v758
      %v843 = vpop.f32.mrb[0].mxu0
      %v844 = vadd.f32 %v628, %v843
      %v845 = vpop.f32.mrb[0].mxu0
      %v846 = vpop.f32.mrb[0].mxu0
      %v847 = vpop.f32.mrb[0].mxu0
      %848 = vmatprep.mubr.bf16.mxu0 0
      %849 = vmatmul.mubr.bf16.gmra.mrb[0].mxu0 %v760
      %v850 = vpop.f32.mrb[0].mxu0
      %v851 = vadd.f32 %v635, %v850
      %v852 = vpop.f32.mrb[0].mxu0
      %v853 = vpop.f32.mrb[0].mxu0
      %v854 = vpop.f32.mrb[0].mxu0
      %855 = vmatprep.mubr.bf16.mxu0 0
      %856 = vmatmul.mubr.bf16.gmra.mrb[0].mxu0 %v762
      %v857 = vpop.f32.mrb[0].mxu0
      %v858 = vpop.f32.mrb[0].mxu0
      %v859 = vpop.f32.mrb[0].mxu0
      %v860 = vpop.f32.mrb[0].mxu0
      %861 = vmatprep.mubr.bf16.mxu0 0
      %862 = vmatmul.mubr.bf16.gmra.mrb[0].mxu0 %v764
      %v863 = vpop.f32.mrb[0].mxu0
      %v864 = vpop.f32.mrb[0].mxu0
      %v865 = vpop.f32.mrb[0].mxu0
      %v866 = vpop.f32.mrb[0].mxu0
      %867 = vmatprep.mubr.bf16.mxu0 0
      %868 = vmatmul.mubr.bf16.gmra.mrb[0].mxu0 %v766
      %v869 = vpop.f32.mrb[0].mxu0
      %v870 = vadd.f32 %v654, %v869
      %v871 = vpop.f32.mrb[0].mxu0
      %v872 = vpop.f32.mrb[0].mxu0
      %v873 = vadd.f32 %v657, %v872
      %v874 = vpop.f32.mrb[0].mxu0
      %875 = vmatprep.mubr.bf16.mxu0 0
      %876 = vmatmul.mubr.bf16.gmra.mrb[0].mxu0 %v768
      %v877 = vpop.f32.mrb[0].mxu0
      %v878 = vadd.f32 %v662, %v877
      %v879 = vpop.f32.mrb[0].mxu0
      %v880 = vpop.f32.mrb[0].mxu0
      %v881 = vadd.f32 %v665, %v880
      %v882 = vpop.f32.mrb[0].mxu0
      %883 = vmatprep.mubr.bf16.mxu0 0
      %884 = vmatmul.mubr.bf16.gmra.mrb[0].mxu0 %v770
      %v885 = vpop.f32.mrb[0].mxu0
      %v886 = vadd.f32 %v670, %v885
      %v887 = vpop.f32.mrb[0].mxu0
      %v888 = vpop.f32.mrb[0].mxu0
      %v889 = vadd.f32 %v673, %v888
      %v890 = vpop.f32.mrb[0].mxu0
      %891 = vmatprep.mubr.bf16.mxu0 0
      %892 = vmatmul.mubr.bf16.gmra.mrb[0].mxu0 %v772
      %v893 = vpop.f32.mrb[0].mxu0
      %v894 = vadd.f32 %v678, %v893
      %v895 = vpop.f32.mrb[0].mxu0
      %v896 = vpop.f32.mrb[0].mxu0
      %v897 = vadd.f32 %v681, %v896
      %v898 = vpop.f32.mrb[0].mxu0
      %899 = vmatprep.mubr.bf16.mxu0 0
      %900 = vmatmul.mubr.bf16.gmra.mrb[0].mxu0 %v774
      %v901 = vpop.f32.mrb[0].mxu0
      %v902 = vadd.f32 %v686, %v901
      %v903 = vpop.f32.mrb[0].mxu0
      %v904 = vpop.f32.mrb[0].mxu0
      %v905 = vadd.f32 %v689, %v904
      %v906 = vpop.f32.mrb[0].mxu0
      %907 = vmatprep.mubr.bf16.mxu0 0
      %908 = vmatmul.mubr.bf16.gmra.mrb[0].mxu0 %v776
      %v909 = vpop.f32.mrb[0].mxu0
      %v910 = vadd.f32 %v694, %v909
      %v911 = vpop.f32.mrb[0].mxu0
      %v912 = vpop.f32.mrb[0].mxu0
      %v913 = vadd.f32 %v697, %v912
      %v914 = vpop.f32.mrb[0].mxu0
      %915 = vmatprep.mubr.bf16.mxu0 0
      %916 = vmatmul.mubr.bf16.gmra.mrb[0].mxu0 %v778
      %v917 = vpop.f32.mrb[0].mxu0
      %v918 = vadd.f32 %v702, %v917
      %v919 = vpop.f32.mrb[0].mxu0
      %v920 = vpop.f32.mrb[0].mxu0
      %v921 = vadd.f32 %v705, %v920
      %v922 = vpop.f32.mrb[0].mxu0
      %923 = vmatprep.mubr.bf16.mxu0 0
      %924 = vmatmul.mubr.bf16.gmra.mrb[0].mxu0 %v780
      %v925 = vpop.f32.mrb[0].mxu0
      %v926 = vadd.f32 %v710, %v925
      %v927 = vpop.f32.mrb[0].mxu0
      %v928 = vpop.f32.mrb[0].mxu0
      %v929 = vadd.f32 %v713, %v928
      %v930 = vpop.f32.mrb[0].mxu0
      %931 = vmatprep.mubr.bf16.mxu0 0
      %932 = vmatmul.mubr.bf16.gmra.mrb[0].mxu0 %v782
      %v933 = vpop.f32.mrb[0].mxu0
      %v934 = vadd.f32 %v718, %v933
      %v935 = vpop.f32.mrb[0].mxu0
      %v936 = vpop.f32.mrb[0].mxu0
      %v937 = vadd.f32 %v721, %v936
      %v938 = vpop.f32.mrb[0].mxu0
      %939 = vmatprep.mubr.bf16.mxu0 0
      %940 = vmatmul.mubr.bf16.gmra.mrb[0].mxu0 %v784
      %v941 = vpop.f32.mrb[0].mxu0
      %v942 = vadd.f32 %v726, %v941
      %v943 = vpop.f32.mrb[0].mxu0
      %v944 = vpop.f32.mrb[0].mxu0
      %v945 = vadd.f32 %v729, %v944
      %v946 = vpop.f32.mrb[0].mxu0
      %947 = vmatprep.mubr.bf16.mxu0 0
      %948 = vmatmul.mubr.bf16.gmra.mrb[0].mxu0 %v786
      %v949 = vpop.f32.mrb[0].mxu0
      %v950 = vadd.f32 %v734, %v949
      %v951 = vpop.f32.mrb[0].mxu0
      %v952 = vpop.f32.mrb[0].mxu0
      %v953 = vadd.f32 %v737, %v952
      %v954 = vpop.f32.mrb[0].mxu0
      %955 = vdwg.mxu0
      %v956 = vld [vmem:[%s219] sm:$0xe]
      %v957 = vld [vmem:[%s219 + $0x8c] sm:$0x7]
      %v958 = vld [vmem:[%s1 + $0x20] sm:$0xf]
      %v959 = vld [vmem:[%s1 + $0x24] sm:$0xf]
      %v960 = vld [vmem:[%s1 + $0x28] sm:$0xf]
      %v961 = vld [vmem:[%s1 + $0x2c] sm:$0xf]
      %v964 = vunpack.c.l.b16 %v956
      %v965 = vunpack.c.l.b16 %v957
      %v966 = vpack.c.b16 %v308, %v964
      %v967 = vpack.c.b16 %v965, %v341
      %vm968 = vcmask 1046528
      %v969 = vrot.slane %v966, 1
      %v970 = vrot.slane %v344, 1
      %v971 = vsel %vm968, %v969, %v970
      %v972 = vrot.slane %v345, 1
      %v973 = vsel %vm968, %v970, %v972
      %v974 = vrot.slane %v346, 1
      %v975 = vsel %vm968, %v972, %v974
      %v976 = vrot.slane %v347, 1
      %v977 = vsel %vm968, %v974, %v976
      %v978 = vrot.slane %v348, 1
      %v979 = vsel %vm968, %v976, %v978
      %v980 = vrot.slane %v349, 1
      %v981 = vsel %vm968, %v978, %v980
      %v982 = vrot.slane %v350, 1
      %v983 = vsel %vm968, %v980, %v982
      %v984 = vrot.slane %v351, 1
      %v985 = vsel %vm968, %v982, %v984
      %v986 = vrot.slane %v352, 1
      %v987 = vsel %vm968, %v984, %v986
      %v988 = vrot.slane %v353, 1
      %v989 = vsel %vm968, %v986, %v988
      %v990 = vrot.slane %v354, 1
      %v991 = vsel %vm968, %v988, %v990
      %v992 = vrot.slane %v355, 1
      %v993 = vsel %vm968, %v990, %v992
      %v994 = vrot.slane %v356, 1
      %v995 = vsel %vm968, %v992, %v994
      %v996 = vrot.slane %v357, 1
      %v997 = vsel %vm968, %v994, %v996
      %v998 = vrot.slane %v358, 1
      %v999 = vsel %vm968, %v996, %v998
      %v1000 = vrot.slane %v359, 1
      %v1001 = vsel %vm968, %v998, %v1000
      %v1002 = vrot.slane %v967, 1
      %v1003 = vsel %vm968, %v1000, %v1002
      %v1008 = vunpack.c.l.b16 %v958
      %v1009 = vunpack.c.l.b16 %v959
      %v1010 = vunpack.c.l.b16 %v960
      %v1011 = vunpack.c.l.b16 %v961
      %v1012 = vpack.c.b16 %v1009, %v1008
      %v1013 = vpack.c.b16 %v1011, %v1010
      %v1017 = vsel %vm517, %v971, 0
      %v1020 = vsel %vm517, %v973, 0
      %v1023 = vsel %vm517, %v975, 0
      %v1026 = vsel %vm517, %v977, 0
      %v1029 = vsel %vm517, %v979, 0
      %v1032 = vsel %vm517, %v981, 0
      %v1035 = vsel %vm517, %v983, 0
      %v1038 = vsel %vm517, %v985, 0
      %v1041 = vsel %vm517, %v987, 0
      %v1044 = vsel %vm517, %v989, 0
      %v1047 = vsel %vm517, %v991, 0
      %v1050 = vsel %vm517, %v993, 0
      %v1053 = vsel %vm517, %v995, 0
      %v1056 = vsel %vm517, %v997, 0
      %v1059 = vsel %vm517, %v999, 0
      %v1062 = vsel %vm517, %v1001, 0
      %v1065 = vsel %vm517, %v1003, 0
      %v1068 = vsel %vm517, %v1002, 0
      %1070 = vmatprep.subr.bf16.mxu0 0
      %1071 = vmatpush1.bf16.msra.mxu0 %v1012
      %1072 = vmatprep.subr.bf16.mxu0 0
      %1073 = vmatpush1.bf16.msra.mxu0 %v1013
      %1074 = vmatprep.subr.bf16.mxu0 0
      %1075 = vmatpush1.bf16.msra.mxu0 0
      %1076 = vmatprep.subr.bf16.mxu0 0
      %1077 = vmatpush1.bf16.msra.mxu0 0
      %1078 = vmatprep.subr.bf16.mxu0 0
      %1079 = vmatpush1.bf16.msra.mxu0 0
      %1080 = vmatprep.subr.bf16.mxu0 0
      %1081 = vmatpush1.bf16.msra.mxu0 0
      %1082 = vmatprep.subr.bf16.mxu0 0
      %1083 = vmatpush1.bf16.msra.mxu0 0
      %1084 = vmatprep.subr.bf16.mxu0 0
      %1085 = vmatpush1.bf16.msra.mxu0 0
      %1086 = vmatprep.subr.bf16.mxu0 0
      %1087 = vmatpush1.bf16.msra.mxu0 0
      %1088 = vmatprep.subr.bf16.mxu0 0
      %1089 = vmatpush1.bf16.msra.mxu0 0
      %1090 = vmatprep.subr.bf16.mxu0 0
      %1091 = vmatpush1.bf16.msra.mxu0 0
      %1092 = vmatprep.subr.bf16.mxu0 0
      %1093 = vmatpush1.bf16.msra.mxu0 0
      %1094 = vmatprep.subr.bf16.mxu0 0
      %1095 = vmatpush1.bf16.msra.mxu0 0
      %1096 = vmatprep.subr.bf16.mxu0 0
      %1097 = vmatpush1.bf16.msra.mxu0 0
      %1098 = vmatprep.subr.bf16.mxu0 0
      %1099 = vmatpush1.bf16.msra.mxu0 0
      %1100 = vmatprep.subr.bf16.mxu0 0
      %1101 = vmatpush1.bf16.msra.mxu0 0
      %1102 = vmatprep.mubr.bf16.mxu0 0
      %1103 = vmatmul.mubr.bf16.gmra.mrb[0].mxu0 %v1017
      %v1104 = vpop.f32.mrb[0].mxu0
      %v1105 = vadd.f32 0.0, %v1104
      %v1106 = vpop.f32.mrb[0].mxu0
      %v1107 = vpop.f32.mrb[0].mxu0
      %v1108 = vpop.f32.mrb[0].mxu0
      %1109 = vmatprep.mubr.bf16.mxu0 0
      %1110 = vmatmul.mubr.bf16.gmra.mrb[0].mxu0 %v1020
      %v1111 = vpop.f32.mrb[0].mxu0
      %v1112 = vadd.f32 0.0, %v1111
      %v1113 = vpop.f32.mrb[0].mxu0
      %v1114 = vpop.f32.mrb[0].mxu0
      %v1115 = vpop.f32.mrb[0].mxu0
      %1116 = vmatprep.mubr.bf16.mxu0 0
      %1117 = vmatmul.mubr.bf16.gmra.mrb[0].mxu0 %v1023
      %v1118 = vpop.f32.mrb[0].mxu0
      %v1119 = vadd.f32 0.0, %v1118
      %v1120 = vpop.f32.mrb[0].mxu0
      %v1121 = vpop.f32.mrb[0].mxu0
      %v1122 = vpop.f32.mrb[0].mxu0
      %1123 = vmatprep.mubr.bf16.mxu0 0
      %1124 = vmatmul.mubr.bf16.gmra.mrb[0].mxu0 %v1026
      %v1125 = vpop.f32.mrb[0].mxu0
      %v1126 = vadd.f32 0.0, %v1125
      %v1127 = vpop.f32.mrb[0].mxu0
      %v1128 = vpop.f32.mrb[0].mxu0
      %v1129 = vpop.f32.mrb[0].mxu0
      %1130 = vmatprep.mubr.bf16.mxu0 0
      %1131 = vmatmul.mubr.bf16.gmra.mrb[0].mxu0 %v1029
      %v1132 = vpop.f32.mrb[0].mxu0
      %v1133 = vadd.f32 0.0, %v1132
      %v1134 = vpop.f32.mrb[0].mxu0
      %v1135 = vpop.f32.mrb[0].mxu0
      %v1136 = vpop.f32.mrb[0].mxu0
      %1137 = vmatprep.mubr.bf16.mxu0 0
      %1138 = vmatmul.mubr.bf16.gmra.mrb[0].mxu0 %v1032
      %v1139 = vpop.f32.mrb[0].mxu0
      %v1140 = vpop.f32.mrb[0].mxu0
      %v1141 = vpop.f32.mrb[0].mxu0
      %v1142 = vpop.f32.mrb[0].mxu0
      %1143 = vmatprep.mubr.bf16.mxu0 0
      %1144 = vmatmul.mubr.bf16.gmra.mrb[0].mxu0 %v1035
      %v1145 = vpop.f32.mrb[0].mxu0
      %v1146 = vpop.f32.mrb[0].mxu0
      %v1147 = vpop.f32.mrb[0].mxu0
      %v1148 = vpop.f32.mrb[0].mxu0
      %1149 = vmatprep.mubr.bf16.mxu0 0
      %1150 = vmatmul.mubr.bf16.gmra.mrb[0].mxu0 %v1038
      %v1151 = vpop.f32.mrb[0].mxu0
      %v1152 = vadd.f32 0.0, %v1151
      %v1153 = vpop.f32.mrb[0].mxu0
      %v1154 = vpop.f32.mrb[0].mxu0
      %v1155 = vadd.f32 0.0, %v1154
      %v1156 = vpop.f32.mrb[0].mxu0
      %1157 = vmatprep.mubr.bf16.mxu0 0
      %1158 = vmatmul.mubr.bf16.gmra.mrb[0].mxu0 %v1041
      %v1159 = vpop.f32.mrb[0].mxu0
      %v1160 = vadd.f32 0.0, %v1159
      %v1161 = vpop.f32.mrb[0].mxu0
      %v1162 = vpop.f32.mrb[0].mxu0
      %v1163 = vadd.f32 0.0, %v1162
      %v1164 = vpop.f32.mrb[0].mxu0
      %1165 = vmatprep.mubr.bf16.mxu0 0
      %1166 = vmatmul.mubr.bf16.gmra.mrb[0].mxu0 %v1044
      %v1167 = vpop.f32.mrb[0].mxu0
      %v1168 = vadd.f32 0.0, %v1167
      %v1169 = vpop.f32.mrb[0].mxu0
      %v1170 = vpop.f32.mrb[0].mxu0
      %v1171 = vadd.f32 0.0, %v1170
      %v1172 = vpop.f32.mrb[0].mxu0
      %1173 = vmatprep.mubr.bf16.mxu0 0
      %1174 = vmatmul.mubr.bf16.gmra.mrb[0].mxu0 %v1047
      %v1175 = vpop.f32.mrb[0].mxu0
      %v1176 = vadd.f32 0.0, %v1175
      %v1177 = vpop.f32.mrb[0].mxu0
      %v1178 = vpop.f32.mrb[0].mxu0
      %v1179 = vadd.f32 0.0, %v1178
      %v1180 = vpop.f32.mrb[0].mxu0
      %1181 = vmatprep.mubr.bf16.mxu0 0
      %1182 = vmatmul.mubr.bf16.gmra.mrb[0].mxu0 %v1050
      %v1183 = vpop.f32.mrb[0].mxu0
      %v1184 = vadd.f32 0.0, %v1183
      %v1185 = vpop.f32.mrb[0].mxu0
      %v1186 = vpop.f32.mrb[0].mxu0
      %v1187 = vadd.f32 0.0, %v1186
      %v1188 = vpop.f32.mrb[0].mxu0
      %1189 = vmatprep.mubr.bf16.mxu0 0
      %1190 = vmatmul.mubr.bf16.gmra.mrb[0].mxu0 %v1053
      %v1191 = vpop.f32.mrb[0].mxu0
      %v1192 = vadd.f32 0.0, %v1191
      %v1193 = vpop.f32.mrb[0].mxu0
      %v1194 = vpop.f32.mrb[0].mxu0
      %v1195 = vadd.f32 0.0, %v1194
      %v1196 = vpop.f32.mrb[0].mxu0
      %1197 = vmatprep.mubr.bf16.mxu0 0
      %1198 = vmatmul.mubr.bf16.gmra.mrb[0].mxu0 %v1056
      %v1199 = vpop.f32.mrb[0].mxu0
      %v1200 = vadd.f32 0.0, %v1199
      %v1201 = vpop.f32.mrb[0].mxu0
      %v1202 = vpop.f32.mrb[0].mxu0
      %v1203 = vadd.f32 0.0, %v1202
      %v1204 = vpop.f32.mrb[0].mxu0
      %1205 = vmatprep.mubr.bf16.mxu0 0
      %1206 = vmatmul.mubr.bf16.gmra.mrb[0].mxu0 %v1059
      %v1207 = vpop.f32.mrb[0].mxu0
      %v1208 = vadd.f32 0.0, %v1207
      %v1209 = vpop.f32.mrb[0].mxu0
      %v1210 = vpop.f32.mrb[0].mxu0
      %v1211 = vadd.f32 0.0, %v1210
      %v1212 = vpop.f32.mrb[0].mxu0
      %1213 = vmatprep.mubr.bf16.mxu0 0
      %1214 = vmatmul.mubr.bf16.gmra.mrb[0].mxu0 %v1062
      %v1215 = vpop.f32.mrb[0].mxu0
      %v1216 = vadd.f32 0.0, %v1215
      %v1217 = vpop.f32.mrb[0].mxu0
      %v1218 = vpop.f32.mrb[0].mxu0
      %v1219 = vadd.f32 0.0, %v1218
      %v1220 = vpop.f32.mrb[0].mxu0
      %1221 = vmatprep.mubr.bf16.mxu0 0
      %1222 = vmatmul.mubr.bf16.gmra.mrb[0].mxu0 %v1065
      %v1223 = vpop.f32.mrb[0].mxu0
      %v1224 = vadd.f32 0.0, %v1223
      %v1225 = vpop.f32.mrb[0].mxu0
      %v1226 = vpop.f32.mrb[0].mxu0
      %v1227 = vadd.f32 0.0, %v1226
      %v1228 = vpop.f32.mrb[0].mxu0
      %1229 = vmatprep.mubr.bf16.mxu0 0
      %1230 = vmatmul.mubr.bf16.gmra.mrb[0].mxu0 %v1068
      %v1231 = vpop.f32.mrb[0].mxu0
      %v1232 = vadd.f32 0.0, %v1231
      %v1233 = vpop.f32.mrb[0].mxu0
      %v1234 = vpop.f32.mrb[0].mxu0
      %v1235 = vadd.f32 0.0, %v1234
      %v1236 = vpop.f32.mrb[0].mxu0
      %1237 = vdwg.mxu0
      %v1238 = vadd.f32 %v823, %v1105
      %v1239 = vadd.f32 %v830, %v1112
      %v1240 = vadd.f32 %v837, %v1119
      %v1241 = vadd.f32 %v844, %v1126
      %v1242 = vadd.f32 %v851, %v1133
      %v1243 = vadd.f32 %v870, %v1152
      %v1244 = vadd.f32 %v873, %v1155
      %v1245 = vadd.f32 %v878, %v1160
      %v1246 = vadd.f32 %v881, %v1163
      %v1247 = vadd.f32 %v886, %v1168
      %v1248 = vadd.f32 %v889, %v1171
      %v1249 = vadd.f32 %v894, %v1176
      %v1250 = vadd.f32 %v897, %v1179
      %v1251 = vadd.f32 %v902, %v1184
      %v1252 = vadd.f32 %v905, %v1187
      %v1253 = vadd.f32 %v910, %v1192
      %v1254 = vadd.f32 %v913, %v1195
      %v1255 = vadd.f32 %v918, %v1200
      %v1256 = vadd.f32 %v921, %v1203
      %v1257 = vadd.f32 %v926, %v1208
      %v1258 = vadd.f32 %v929, %v1211
      %v1259 = vadd.f32 %v934, %v1216
      %v1260 = vadd.f32 %v937, %v1219
      %v1261 = vadd.f32 %v942, %v1224
      %v1262 = vadd.f32 %v945, %v1227
      %v1263 = vadd.f32 %v950, %v1232
      %v1264 = vadd.f32 %v953, %v1235
      %v1265 = vld [vmem:[%s219 + $0x8] sm:$0xf]
      %v1266 = vld [vmem:[%s219 + $0xc] sm:$0xf]
      %v1267 = vld [vmem:[%s219 + $0x10] sm:$0xf]
      %v1268 = vld [vmem:[%s219 + $0x14] sm:$0xf]
      %v1269 = vld [vmem:[%s219 + $0x18] sm:$0xf]
      %v1270 = vld [vmem:[%s219 + $0x1c] sm:$0xf]
      %v1271 = vld [vmem:[%s219 + $0x20] sm:$0xf]
      %v1272 = vld [vmem:[%s219 + $0x24] sm:$0xf]
      %v1273 = vld [vmem:[%s219 + $0x28] sm:$0xf]
      %v1274 = vld [vmem:[%s219 + $0x2c] sm:$0xf]
      %v1275 = vld [vmem:[%s219 + $0x30] sm:$0xf]
      %v1276 = vld [vmem:[%s219 + $0x34] sm:$0xf]
      %v1277 = vld [vmem:[%s219 + $0x38] sm:$0xf]
      %v1278 = vld [vmem:[%s219 + $0x3c] sm:$0xf]
      %v1279 = vld [vmem:[%s219 + $0x40] sm:$0xf]
      %v1280 = vld [vmem:[%s219 + $0x44] sm:$0xf]
      %v1281 = vld [vmem:[%s219 + $0x48] sm:$0xf]
      %v1282 = vld [vmem:[%s219 + $0x4c] sm:$0xf]
      %v1283 = vld [vmem:[%s219 + $0x50] sm:$0xf]
      %v1284 = vld [vmem:[%s219 + $0x54] sm:$0xf]
      %v1285 = vld [vmem:[%s219 + $0x58] sm:$0xf]
      %v1286 = vld [vmem:[%s219 + $0x5c] sm:$0xf]
      %v1287 = vld [vmem:[%s219 + $0x60] sm:$0xf]
      %v1288 = vld [vmem:[%s219 + $0x64] sm:$0xf]
      %v1289 = vld [vmem:[%s219 + $0x68] sm:$0xf]
      %v1290 = vld [vmem:[%s219 + $0x6c] sm:$0xf]
      %v1291 = vld [vmem:[%s219 + $0x70] sm:$0xf]
      %v1292 = vld [vmem:[%s219 + $0x74] sm:$0xf]
      %v1293 = vld [vmem:[%s219 + $0x78] sm:$0xf]
      %v1294 = vld [vmem:[%s219 + $0x7c] sm:$0xf]
      %v1295 = vld [vmem:[%s219 + $0x80] sm:$0xf]
      %v1296 = vld [vmem:[%s219 + $0x84] sm:$0xf]
      %v1297 = vld [vmem:[%s219 + $0x88] sm:$0xf]
      %v1298 = vld [vmem:[%s219 + $0x8c] sm:$0xf]
      %v1299 = vld [vmem:[%s219 + $0x90] sm:$0xf]
      %v1300 = vld [vmem:[%s219 + $0x94] sm:$0x3]
      %v1301 = vld [vmem:[%s1 + $0x30] sm:$0xf]
      %v1302 = vld [vmem:[%s1 + $0x34] sm:$0xf]
      %v1303 = vld [vmem:[%s1 + $0x38] sm:$0xf]
      %v1304 = vld [vmem:[%s1 + $0x3c] sm:$0xf]
      %v1341 = vunpack.c.l.b16 %v1265
      %v1342 = vunpack.c.l.b16 %v1266
      %v1343 = vunpack.c.l.b16 %v1267
      %v1344 = vunpack.c.l.b16 %v1268
      %v1345 = vunpack.c.l.b16 %v1269
      %v1346 = vunpack.c.l.b16 %v1270
      %v1347 = vunpack.c.l.b16 %v1271
      %v1348 = vunpack.c.l.b16 %v1272
      %v1349 = vunpack.c.l.b16 %v1273
      %v1350 = vunpack.c.l.b16 %v1274
      %v1351 = vunpack.c.l.b16 %v1275
      %v1352 = vunpack.c.l.b16 %v1276
      %v1353 = vunpack.c.l.b16 %v1277
      %v1354 = vunpack.c.l.b16 %v1278
      %v1355 = vunpack.c.l.b16 %v1279
      %v1356 = vunpack.c.l.b16 %v1280
      %v1357 = vunpack.c.l.b16 %v1281
      %v1358 = vunpack.c.l.b16 %v1282
      %v1359 = vunpack.c.l.b16 %v1283
      %v1360 = vunpack.c.l.b16 %v1284
      %v1361 = vunpack.c.l.b16 %v1285
      %v1362 = vunpack.c.l.b16 %v1286
      %v1363 = vunpack.c.l.b16 %v1287
      %v1364 = vunpack.c.l.b16 %v1288
      %v1365 = vunpack.c.l.b16 %v1289
      %v1366 = vunpack.c.l.b16 %v1290
      %v1367 = vunpack.c.l.b16 %v1291
      %v1368 = vunpack.c.l.b16 %v1292
      %v1369 = vunpack.c.l.b16 %v1293
      %v1370 = vunpack.c.l.b16 %v1294
      %v1371 = vunpack.c.l.b16 %v1295
      %v1372 = vunpack.c.l.b16 %v1296
      %v1373 = vunpack.c.l.b16 %v1297
      %v1374 = vunpack.c.l.b16 %v1298
      %v1375 = vunpack.c.l.b16 %v1299
      %v1376 = vunpack.c.l.b16 %v1300
      %v1377 = vpack.c.b16 %v1342, %v1341
      %v1378 = vpack.c.b16 %v1344, %v1343
      %v1379 = vpack.c.b16 %v1346, %v1345
      %v1380 = vpack.c.b16 %v1348, %v1347
      %v1381 = vpack.c.b16 %v1350, %v1349
      %v1382 = vpack.c.b16 %v1352, %v1351
      %v1383 = vpack.c.b16 %v1354, %v1353
      %v1384 = vpack.c.b16 %v1356, %v1355
      %v1385 = vpack.c.b16 %v1358, %v1357
      %v1386 = vpack.c.b16 %v1360, %v1359
      %v1387 = vpack.c.b16 %v1362, %v1361
      %v1388 = vpack.c.b16 %v1364, %v1363
      %v1389 = vpack.c.b16 %v1366, %v1365
      %v1390 = vpack.c.b16 %v1368, %v1367
      %v1391 = vpack.c.b16 %v1370, %v1369
      %v1392 = vpack.c.b16 %v1372, %v1371
      %v1393 = vpack.c.b16 %v1374, %v1373
      %v1394 = vpack.c.b16 %v1376, %v1375
      %v1399 = vunpack.c.l.b16 %v1301
      %v1400 = vunpack.c.l.b16 %v1302
      %v1401 = vunpack.c.l.b16 %v1303
      %v1402 = vunpack.c.l.b16 %v1304
      %v1403 = vpack.c.b16 %v1400, %v1399
      %v1404 = vpack.c.b16 %v1402, %v1401
      %v1408 = vsel %vm517, %v1377, 0
      %v1411 = vsel %vm517, %v1378, 0
      %v1414 = vsel %vm517, %v1379, 0
      %v1417 = vsel %vm517, %v1380, 0
      %v1420 = vsel %vm517, %v1381, 0
      %v1423 = vsel %vm517, %v1382, 0
      %v1426 = vsel %vm517, %v1383, 0
      %v1429 = vsel %vm517, %v1384, 0
      %v1432 = vsel %vm517, %v1385, 0
      %v1435 = vsel %vm517, %v1386, 0
      %v1438 = vsel %vm517, %v1387, 0
      %v1441 = vsel %vm517, %v1388, 0
      %v1444 = vsel %vm517, %v1389, 0
      %v1447 = vsel %vm517, %v1390, 0
      %v1450 = vsel %vm517, %v1391, 0
      %v1453 = vsel %vm517, %v1392, 0
      %v1456 = vsel %vm517, %v1393, 0
      %v1459 = vsel %vm517, %v1394, 0
      %1461 = vmatprep.subr.bf16.mxu0 0
      %1462 = vmatpush1.bf16.msra.mxu0 %v1403
      %1463 = vmatprep.subr.bf16.mxu0 0
      %1464 = vmatpush1.bf16.msra.mxu0 %v1404
      %1465 = vmatprep.subr.bf16.mxu0 0
      %1466 = vmatpush1.bf16.msra.mxu0 0
      %1467 = vmatprep.subr.bf16.mxu0 0
      %1468 = vmatpush1.bf16.msra.mxu0 0
      %1469 = vmatprep.subr.bf16.mxu0 0
      %1470 = vmatpush1.bf16.msra.mxu0 0
      %1471 = vmatprep.subr.bf16.mxu0 0
      %1472 = vmatpush1.bf16.msra.mxu0 0
      %1473 = vmatprep.subr.bf16.mxu0 0
      %1474 = vmatpush1.bf16.msra.mxu0 0
      %1475 = vmatprep.subr.bf16.mxu0 0
      %1476 = vmatpush1.bf16.msra.mxu0 0
      %1477 = vmatprep.subr.bf16.mxu0 0
      %1478 = vmatpush1.bf16.msra.mxu0 0
      %1479 = vmatprep.subr.bf16.mxu0 0
      %1480 = vmatpush1.bf16.msra.mxu0 0
      %1481 = vmatprep.subr.bf16.mxu0 0
      %1482 = vmatpush1.bf16.msra.mxu0 0
      %1483 = vmatprep.subr.bf16.mxu0 0
      %1484 = vmatpush1.bf16.msra.mxu0 0
      %1485 = vmatprep.subr.bf16.mxu0 0
      %1486 = vmatpush1.bf16.msra.mxu0 0
      %1487 = vmatprep.subr.bf16.mxu0 0
      %1488 = vmatpush1.bf16.msra.mxu0 0
      %1489 = vmatprep.subr.bf16.mxu0 0
      %1490 = vmatpush1.bf16.msra.mxu0 0
      %1491 = vmatprep.subr.bf16.mxu0 0
      %1492 = vmatpush1.bf16.msra.mxu0 0
      %1493 = vmatprep.mubr.bf16.mxu0 0
      %1494 = vmatmul.mubr.bf16.gmra.mrb[0].mxu0 %v1408
      %v1495 = vpop.f32.mrb[0].mxu0
      %v1496 = vadd.f32 0.0, %v1495
      %v1497 = vpop.f32.mrb[0].mxu0
      %v1498 = vpop.f32.mrb[0].mxu0
      %v1499 = vpop.f32.mrb[0].mxu0
      %1500 = vmatprep.mubr.bf16.mxu0 0
      %1501 = vmatmul.mubr.bf16.gmra.mrb[0].mxu0 %v1411
      %v1502 = vpop.f32.mrb[0].mxu0
      %v1503 = vadd.f32 0.0, %v1502
      %v1504 = vpop.f32.mrb[0].mxu0
      %v1505 = vpop.f32.mrb[0].mxu0
      %v1506 = vpop.f32.mrb[0].mxu0
      %1507 = vmatprep.mubr.bf16.mxu0 0
      %1508 = vmatmul.mubr.bf16.gmra.mrb[0].mxu0 %v1414
      %v1509 = vpop.f32.mrb[0].mxu0
      %v1510 = vadd.f32 0.0, %v1509
      %v1511 = vpop.f32.mrb[0].mxu0
      %v1512 = vpop.f32.mrb[0].mxu0
      %v1513 = vpop.f32.mrb[0].mxu0
      %1514 = vmatprep.mubr.bf16.mxu0 0
      %1515 = vmatmul.mubr.bf16.gmra.mrb[0].mxu0 %v1417
      %v1516 = vpop.f32.mrb[0].mxu0
      %v1517 = vadd.f32 0.0, %v1516
      %v1518 = vpop.f32.mrb[0].mxu0
      %v1519 = vpop.f32.mrb[0].mxu0
      %v1520 = vpop.f32.mrb[0].mxu0
      %1521 = vmatprep.mubr.bf16.mxu0 0
      %1522 = vmatmul.mubr.bf16.gmra.mrb[0].mxu0 %v1420
      %v1523 = vpop.f32.mrb[0].mxu0
      %v1524 = vadd.f32 0.0, %v1523
      %v1525 = vpop.f32.mrb[0].mxu0
      %v1526 = vpop.f32.mrb[0].mxu0
      %v1527 = vpop.f32.mrb[0].mxu0
      %1528 = vmatprep.mubr.bf16.mxu0 0
      %1529 = vmatmul.mubr.bf16.gmra.mrb[0].mxu0 %v1423
      %v1530 = vpop.f32.mrb[0].mxu0
      %v1531 = vpop.f32.mrb[0].mxu0
      %v1532 = vpop.f32.mrb[0].mxu0
      %v1533 = vpop.f32.mrb[0].mxu0
      %1534 = vmatprep.mubr.bf16.mxu0 0
      %1535 = vmatmul.mubr.bf16.gmra.mrb[0].mxu0 %v1426
      %v1536 = vpop.f32.mrb[0].mxu0
      %v1537 = vpop.f32.mrb[0].mxu0
      %v1538 = vpop.f32.mrb[0].mxu0
      %v1539 = vpop.f32.mrb[0].mxu0
      %1540 = vmatprep.mubr.bf16.mxu0 0
      %1541 = vmatmul.mubr.bf16.gmra.mrb[0].mxu0 %v1429
      %v1542 = vpop.f32.mrb[0].mxu0
      %v1543 = vadd.f32 0.0, %v1542
      %v1544 = vpop.f32.mrb[0].mxu0
      %v1545 = vpop.f32.mrb[0].mxu0
      %v1546 = vadd.f32 0.0, %v1545
      %v1547 = vpop.f32.mrb[0].mxu0
      %1548 = vmatprep.mubr.bf16.mxu0 0
      %1549 = vmatmul.mubr.bf16.gmra.mrb[0].mxu0 %v1432
      %v1550 = vpop.f32.mrb[0].mxu0
      %v1551 = vadd.f32 0.0, %v1550
      %v1552 = vpop.f32.mrb[0].mxu0
      %v1553 = vpop.f32.mrb[0].mxu0
      %v1554 = vadd.f32 0.0, %v1553
      %v1555 = vpop.f32.mrb[0].mxu0
      %1556 = vmatprep.mubr.bf16.mxu0 0
      %1557 = vmatmul.mubr.bf16.gmra.mrb[0].mxu0 %v1435
      %v1558 = vpop.f32.mrb[0].mxu0
      %v1559 = vadd.f32 0.0, %v1558
      %v1560 = vpop.f32.mrb[0].mxu0
      %v1561 = vpop.f32.mrb[0].mxu0
      %v1562 = vadd.f32 0.0, %v1561
      %v1563 = vpop.f32.mrb[0].mxu0
      %1564 = vmatprep.mubr.bf16.mxu0 0
      %1565 = vmatmul.mubr.bf16.gmra.mrb[0].mxu0 %v1438
      %v1566 = vpop.f32.mrb[0].mxu0
      %v1567 = vadd.f32 0.0, %v1566
      %v1568 = vpop.f32.mrb[0].mxu0
      %v1569 = vpop.f32.mrb[0].mxu0
      %v1570 = vadd.f32 0.0, %v1569
      %v1571 = vpop.f32.mrb[0].mxu0
      %1572 = vmatprep.mubr.bf16.mxu0 0
      %1573 = vmatmul.mubr.bf16.gmra.mrb[0].mxu0 %v1441
      %v1574 = vpop.f32.mrb[0].mxu0
      %v1575 = vadd.f32 0.0, %v1574
      %v1576 = vpop.f32.mrb[0].mxu0
      %v1577 = vpop.f32.mrb[0].mxu0
      %v1578 = vadd.f32 0.0, %v1577
      %v1579 = vpop.f32.mrb[0].mxu0
      %1580 = vmatprep.mubr.bf16.mxu0 0
      %1581 = vmatmul.mubr.bf16.gmra.mrb[0].mxu0 %v1444
      %v1582 = vpop.f32.mrb[0].mxu0
      %v1583 = vadd.f32 0.0, %v1582
      %v1584 = vpop.f32.mrb[0].mxu0
      %v1585 = vpop.f32.mrb[0].mxu0
      %v1586 = vadd.f32 0.0, %v1585
      %v1587 = vpop.f32.mrb[0].mxu0
      %1588 = vmatprep.mubr.bf16.mxu0 0
      %1589 = vmatmul.mubr.bf16.gmra.mrb[0].mxu0 %v1447
      %v1590 = vpop.f32.mrb[0].mxu0
      %v1591 = vadd.f32 0.0, %v1590
      %v1592 = vpop.f32.mrb[0].mxu0
      %v1593 = vpop.f32.mrb[0].mxu0
      %v1594 = vadd.f32 0.0, %v1593
      %v1595 = vpop.f32.mrb[0].mxu0
      %1596 = vmatprep.mubr.bf16.mxu0 0
      %1597 = vmatmul.mubr.bf16.gmra.mrb[0].mxu0 %v1450
      %v1598 = vpop.f32.mrb[0].mxu0
      %v1599 = vadd.f32 0.0, %v1598
      %v1600 = vpop.f32.mrb[0].mxu0
      %v1601 = vpop.f32.mrb[0].mxu0
      %v1602 = vadd.f32 0.0, %v1601
      %v1603 = vpop.f32.mrb[0].mxu0
      %1604 = vmatprep.mubr.bf16.mxu0 0
      %1605 = vmatmul.mubr.bf16.gmra.mrb[0].mxu0 %v1453
      %v1606 = vpop.f32.mrb[0].mxu0
      %v1607 = vadd.f32 0.0, %v1606
      %v1608 = vpop.f32.mrb[0].mxu0
      %v1609 = vpop.f32.mrb[0].mxu0
      %v1610 = vadd.f32 0.0, %v1609
      %v1611 = vpop.f32.mrb[0].mxu0
      %1612 = vmatprep.mubr.bf16.mxu0 0
      %1613 = vmatmul.mubr.bf16.gmra.mrb[0].mxu0 %v1456
      %v1614 = vpop.f32.mrb[0].mxu0
      %v1615 = vadd.f32 0.0, %v1614
      %v1616 = vpop.f32.mrb[0].mxu0
      %v1617 = vpop.f32.mrb[0].mxu0
      %v1618 = vadd.f32 0.0, %v1617
      %v1619 = vpop.f32.mrb[0].mxu0
      %1620 = vmatprep.mubr.bf16.mxu0 0
      %1621 = vmatmul.mubr.bf16.gmra.mrb[0].mxu0 %v1459
      %v1622 = vpop.f32.mrb[0].mxu0
      %v1623 = vadd.f32 0.0, %v1622
      %v1624 = vpop.f32.mrb[0].mxu0
      %v1625 = vpop.f32.mrb[0].mxu0
      %v1626 = vadd.f32 0.0, %v1625
      %v1627 = vpop.f32.mrb[0].mxu0
      %1628 = vdwg.mxu0
      %v1629 = vadd.f32 %v1238, %v1496
      %v1630 = vadd.f32 %v1239, %v1503
      %v1631 = vadd.f32 %v1240, %v1510
      %v1632 = vadd.f32 %v1241, %v1517
      %v1633 = vadd.f32 %v1242, %v1524
      %v1634 = vadd.f32 %v1243, %v1543
      %v1635 = vadd.f32 %v1244, %v1546
      %v1636 = vadd.f32 %v1245, %v1551
      %v1637 = vadd.f32 %v1246, %v1554
      %v1638 = vadd.f32 %v1247, %v1559
      %v1639 = vadd.f32 %v1248, %v1562
      %v1640 = vadd.f32 %v1249, %v1567
      %v1641 = vadd.f32 %v1250, %v1570
      %v1642 = vadd.f32 %v1251, %v1575
      %v1643 = vadd.f32 %v1252, %v1578
      %v1644 = vadd.f32 %v1253, %v1583
      %v1645 = vadd.f32 %v1254, %v1586
      %v1646 = vadd.f32 %v1255, %v1591
      %v1647 = vadd.f32 %v1256, %v1594
      %v1648 = vadd.f32 %v1257, %v1599
      %v1649 = vadd.f32 %v1258, %v1602
      %v1650 = vadd.f32 %v1259, %v1607
      %v1651 = vadd.f32 %v1260, %v1610
      %v1652 = vadd.f32 %v1261, %v1615
      %v1653 = vadd.f32 %v1262, %v1618
      %v1654 = vadd.f32 %v1263, %v1623
      %v1655 = vadd.f32 %v1264, %v1626
      %v1656 = vld [vmem:[%s1 + $0x40] sm:$0xf]
      %v1657 = vld [vmem:[%s1 + $0x44] sm:$0xf]
      %v1658 = vld [vmem:[%s1 + $0x48] sm:$0xf]
      %v1659 = vld [vmem:[%s1 + $0x4c] sm:$0xf]
      %v1660 = vshrl.u32 %v1377, 16
      %v1662 = vshll.u32 %v1377, 16
      %v1664 = vrot.slane %v1662, 1
      %v1665 = vor.u32 %v1660, %v1664
      %v1666 = vshll.u32 %v1378, 16
      %v1668 = vrot.slane %v1666, 1
      %v1669 = vsel %vm361, %v1665, %v1668
      %v1670 = vshrl.u32 %v1378, 16
      %v1672 = vor.u32 %v1670, %v1668
      %v1673 = vshll.u32 %v1379, 16
      %v1675 = vrot.slane %v1673, 1
      %v1676 = vsel %vm361, %v1672, %v1675
      %v1677 = vshrl.u32 %v1379, 16
      %v1679 = vor.u32 %v1677, %v1675
      %v1680 = vshll.u32 %v1380, 16
      %v1682 = vrot.slane %v1680, 1
      %v1683 = vsel %vm361, %v1679, %v1682
      %v1684 = vshrl.u32 %v1380, 16
      %v1686 = vor.u32 %v1684, %v1682
      %v1687 = vshll.u32 %v1381, 16
      %v1689 = vrot.slane %v1687, 1
      %v1690 = vsel %vm361, %v1686, %v1689
      %v1691 = vshrl.u32 %v1381, 16
      %v1693 = vor.u32 %v1691, %v1689
      %v1694 = vshll.u32 %v1382, 16
      %v1696 = vrot.slane %v1694, 1
      %v1697 = vsel %vm361, %v1693, %v1696
      %v1698 = vshrl.u32 %v1382, 16
      %v1700 = vor.u32 %v1698, %v1696
      %v1701 = vshll.u32 %v1383, 16
      %v1703 = vrot.slane %v1701, 1
      %v1704 = vsel %vm361, %v1700, %v1703
      %v1705 = vshrl.u32 %v1383, 16
      %v1707 = vor.u32 %v1705, %v1703
      %v1708 = vshll.u32 %v1384, 16
      %v1710 = vrot.slane %v1708, 1
      %v1711 = vsel %vm361, %v1707, %v1710
      %v1712 = vshrl.u32 %v1384, 16
      %v1714 = vor.u32 %v1712, %v1710
      %v1715 = vshll.u32 %v1385, 16
      %v1717 = vrot.slane %v1715, 1
      %v1718 = vsel %vm361, %v1714, %v1717
      %v1719 = vshrl.u32 %v1385, 16
      %v1721 = vor.u32 %v1719, %v1717
      %v1722 = vshll.u32 %v1386, 16
      %v1724 = vrot.slane %v1722, 1
      %v1725 = vsel %vm361, %v1721, %v1724
      %v1726 = vshrl.u32 %v1386, 16
      %v1728 = vor.u32 %v1726, %v1724
      %v1729 = vshll.u32 %v1387, 16
      %v1731 = vrot.slane %v1729, 1
      %v1732 = vsel %vm361, %v1728, %v1731
      %v1733 = vshrl.u32 %v1387, 16
      %v1735 = vor.u32 %v1733, %v1731
      %v1736 = vshll.u32 %v1388, 16
      %v1738 = vrot.slane %v1736, 1
      %v1739 = vsel %vm361, %v1735, %v1738
      %v1740 = vshrl.u32 %v1388, 16
      %v1742 = vor.u32 %v1740, %v1738
      %v1743 = vshll.u32 %v1389, 16
      %v1745 = vrot.slane %v1743, 1
      %v1746 = vsel %vm361, %v1742, %v1745
      %v1747 = vshrl.u32 %v1389, 16
      %v1749 = vor.u32 %v1747, %v1745
      %v1750 = vshll.u32 %v1390, 16
      %v1752 = vrot.slane %v1750, 1
      %v1753 = vsel %vm361, %v1749, %v1752
      %v1754 = vshrl.u32 %v1390, 16
      %v1756 = vor.u32 %v1754, %v1752
      %v1757 = vshll.u32 %v1391, 16
      %v1759 = vrot.slane %v1757, 1
      %v1760 = vsel %vm361, %v1756, %v1759
      %v1761 = vshrl.u32 %v1391, 16
      %v1763 = vor.u32 %v1761, %v1759
      %v1764 = vshll.u32 %v1392, 16
      %v1766 = vrot.slane %v1764, 1
      %v1767 = vsel %vm361, %v1763, %v1766
      %v1768 = vshrl.u32 %v1392, 16
      %v1770 = vor.u32 %v1768, %v1766
      %v1771 = vshll.u32 %v1393, 16
      %v1773 = vrot.slane %v1771, 1
      %v1774 = vsel %vm361, %v1770, %v1773
      %v1775 = vshrl.u32 %v1393, 16
      %v1777 = vor.u32 %v1775, %v1773
      %v1778 = vshll.u32 %v1394, 16
      %v1780 = vrot.slane %v1778, 1
      %v1781 = vsel %vm361, %v1777, %v1780
      %v1782 = vshrl.u32 %v1394, 16
      %v1784 = vor.u32 %v1782, %v1780
      %v1789 = vunpack.c.l.b16 %v1656
      %v1790 = vunpack.c.l.b16 %v1657
      %v1791 = vunpack.c.l.b16 %v1658
      %v1792 = vunpack.c.l.b16 %v1659
      %v1793 = vpack.c.b16 %v1790, %v1789
      %v1794 = vpack.c.b16 %v1792, %v1791
      %v1798 = vsel %vm517, %v1669, 0
      %v1801 = vsel %vm517, %v1676, 0
      %v1804 = vsel %vm517, %v1683, 0
      %v1807 = vsel %vm517, %v1690, 0
      %v1810 = vsel %vm517, %v1697, 0
      %v1813 = vsel %vm517, %v1704, 0
      %v1816 = vsel %vm517, %v1711, 0
      %v1819 = vsel %vm517, %v1718, 0
      %v1822 = vsel %vm517, %v1725, 0
      %v1825 = vsel %vm517, %v1732, 0
      %v1828 = vsel %vm517, %v1739, 0
      %v1831 = vsel %vm517, %v1746, 0
      %v1834 = vsel %vm517, %v1753, 0
      %v1837 = vsel %vm517, %v1760, 0
      %v1840 = vsel %vm517, %v1767, 0
      %v1843 = vsel %vm517, %v1774, 0
      %v1846 = vsel %vm517, %v1781, 0
      %v1849 = vsel %vm517, %v1784, 0
      %1851 = vmatprep.subr.bf16.mxu0 0
      %1852 = vmatpush1.bf16.msra.mxu0 %v1793
      %1853 = vmatprep.subr.bf16.mxu0 0
      %1854 = vmatpush1.bf16.msra.mxu0 %v1794
      %1855 = vmatprep.subr.bf16.mxu0 0
      %1856 = vmatpush1.bf16.msra.mxu0 0
      %1857 = vmatprep.subr.bf16.mxu0 0
      %1858 = vmatpush1.bf16.msra.mxu0 0
      %1859 = vmatprep.subr.bf16.mxu0 0
      %1860 = vmatpush1.bf16.msra.mxu0 0
      %1861 = vmatprep.subr.bf16.mxu0 0
      %1862 = vmatpush1.bf16.msra.mxu0 0
      %1863 = vmatprep.subr.bf16.mxu0 0
      %1864 = vmatpush1.bf16.msra.mxu0 0
      %1865 = vmatprep.subr.bf16.mxu0 0
      %1866 = vmatpush1.bf16.msra.mxu0 0
      %1867 = vmatprep.subr.bf16.mxu0 0
      %1868 = vmatpush1.bf16.msra.mxu0 0
      %1869 = vmatprep.subr.bf16.mxu0 0
      %1870 = vmatpush1.bf16.msra.mxu0 0
      %1871 = vmatprep.subr.bf16.mxu0 0
      %1872 = vmatpush1.bf16.msra.mxu0 0
      %1873 = vmatprep.subr.bf16.mxu0 0
      %1874 = vmatpush1.bf16.msra.mxu0 0
      %1875 = vmatprep.subr.bf16.mxu0 0
      %1876 = vmatpush1.bf16.msra.mxu0 0
      %1877 = vmatprep.subr.bf16.mxu0 0
      %1878 = vmatpush1.bf16.msra.mxu0 0
      %1879 = vmatprep.subr.bf16.mxu0 0
      %1880 = vmatpush1.bf16.msra.mxu0 0
      %1881 = vmatprep.subr.bf16.mxu0 0
      %1882 = vmatpush1.bf16.msra.mxu0 0
      %1883 = vmatprep.mubr.bf16.mxu0 0
      %1884 = vmatmul.mubr.bf16.gmra.mrb[0].mxu0 %v1798
      %v1885 = vpop.f32.mrb[0].mxu0
      %v1886 = vadd.f32 0.0, %v1885
      %v1887 = vpop.f32.mrb[0].mxu0
      %v1888 = vpop.f32.mrb[0].mxu0
      %v1889 = vpop.f32.mrb[0].mxu0
      %1890 = vmatprep.mubr.bf16.mxu0 0
      %1891 = vmatmul.mubr.bf16.gmra.mrb[0].mxu0 %v1801
      %v1892 = vpop.f32.mrb[0].mxu0
      %v1893 = vadd.f32 0.0, %v1892
      %v1894 = vpop.f32.mrb[0].mxu0
      %v1895 = vpop.f32.mrb[0].mxu0
      %v1896 = vpop.f32.mrb[0].mxu0
      %1897 = vmatprep.mubr.bf16.mxu0 0
      %1898 = vmatmul.mubr.bf16.gmra.mrb[0].mxu0 %v1804
      %v1899 = vpop.f32.mrb[0].mxu0
      %v1900 = vadd.f32 0.0, %v1899
      %v1901 = vpop.f32.mrb[0].mxu0
      %v1902 = vpop.f32.mrb[0].mxu0
      %v1903 = vpop.f32.mrb[0].mxu0
      %1904 = vmatprep.mubr.bf16.mxu0 0
      %1905 = vmatmul.mubr.bf16.gmra.mrb[0].mxu0 %v1807
      %v1906 = vpop.f32.mrb[0].mxu0
      %v1907 = vadd.f32 0.0, %v1906
      %v1908 = vpop.f32.mrb[0].mxu0
      %v1909 = vpop.f32.mrb[0].mxu0
      %v1910 = vpop.f32.mrb[0].mxu0
      %1911 = vmatprep.mubr.bf16.mxu0 0
      %1912 = vmatmul.mubr.bf16.gmra.mrb[0].mxu0 %v1810
      %v1913 = vpop.f32.mrb[0].mxu0
      %v1914 = vadd.f32 0.0, %v1913
      %v1915 = vpop.f32.mrb[0].mxu0
      %v1916 = vpop.f32.mrb[0].mxu0
      %v1917 = vpop.f32.mrb[0].mxu0
      %1918 = vmatprep.mubr.bf16.mxu0 0
      %1919 = vmatmul.mubr.bf16.gmra.mrb[0].mxu0 %v1813
      %v1920 = vpop.f32.mrb[0].mxu0
      %v1921 = vpop.f32.mrb[0].mxu0
      %v1922 = vpop.f32.mrb[0].mxu0
      %v1923 = vpop.f32.mrb[0].mxu0
      %1924 = vmatprep.mubr.bf16.mxu0 0
      %1925 = vmatmul.mubr.bf16.gmra.mrb[0].mxu0 %v1816
      %v1926 = vpop.f32.mrb[0].mxu0
      %v1927 = vpop.f32.mrb[0].mxu0
      %v1928 = vpop.f32.mrb[0].mxu0
      %v1929 = vpop.f32.mrb[0].mxu0
      %1930 = vmatprep.mubr.bf16.mxu0 0
      %1931 = vmatmul.mubr.bf16.gmra.mrb[0].mxu0 %v1819
      %v1932 = vpop.f32.mrb[0].mxu0
      %v1933 = vadd.f32 0.0, %v1932
      %v1934 = vpop.f32.mrb[0].mxu0
      %v1935 = vpop.f32.mrb[0].mxu0
      %v1936 = vadd.f32 0.0, %v1935
      %v1937 = vpop.f32.mrb[0].mxu0
      %1938 = vmatprep.mubr.bf16.mxu0 0
      %1939 = vmatmul.mubr.bf16.gmra.mrb[0].mxu0 %v1822
      %v1940 = vpop.f32.mrb[0].mxu0
      %v1941 = vadd.f32 0.0, %v1940
      %v1942 = vpop.f32.mrb[0].mxu0
      %v1943 = vpop.f32.mrb[0].mxu0
      %v1944 = vadd.f32 0.0, %v1943
      %v1945 = vpop.f32.mrb[0].mxu0
      %1946 = vmatprep.mubr.bf16.mxu0 0
      %1947 = vmatmul.mubr.bf16.gmra.mrb[0].mxu0 %v1825
      %v1948 = vpop.f32.mrb[0].mxu0
      %v1949 = vadd.f32 0.0, %v1948
      %v1950 = vpop.f32.mrb[0].mxu0
      %v1951 = vpop.f32.mrb[0].mxu0
      %v1952 = vadd.f32 0.0, %v1951
      %v1953 = vpop.f32.mrb[0].mxu0
      %1954 = vmatprep.mubr.bf16.mxu0 0
      %1955 = vmatmul.mubr.bf16.gmra.mrb[0].mxu0 %v1828
      %v1956 = vpop.f32.mrb[0].mxu0
      %v1957 = vadd.f32 0.0, %v1956
      %v1958 = vpop.f32.mrb[0].mxu0
      %v1959 = vpop.f32.mrb[0].mxu0
      %v1960 = vadd.f32 0.0, %v1959
      %v1961 = vpop.f32.mrb[0].mxu0
      %1962 = vmatprep.mubr.bf16.mxu0 0
      %1963 = vmatmul.mubr.bf16.gmra.mrb[0].mxu0 %v1831
      %v1964 = vpop.f32.mrb[0].mxu0
      %v1965 = vadd.f32 0.0, %v1964
      %v1966 = vpop.f32.mrb[0].mxu0
      %v1967 = vpop.f32.mrb[0].mxu0
      %v1968 = vadd.f32 0.0, %v1967
      %v1969 = vpop.f32.mrb[0].mxu0
      %1970 = vmatprep.mubr.bf16.mxu0 0
      %1971 = vmatmul.mubr.bf16.gmra.mrb[0].mxu0 %v1834
      %v1972 = vpop.f32.mrb[0].mxu0
      %v1973 = vadd.f32 0.0, %v1972
      %v1974 = vpop.f32.mrb[0].mxu0
      %v1975 = vpop.f32.mrb[0].mxu0
      %v1976 = vadd.f32 0.0, %v1975
      %v1977 = vpop.f32.mrb[0].mxu0
      %1978 = vmatprep.mubr.bf16.mxu0 0
      %1979 = vmatmul.mubr.bf16.gmra.mrb[0].mxu0 %v1837
      %v1980 = vpop.f32.mrb[0].mxu0
      %v1981 = vadd.f32 0.0, %v1980
      %v1982 = vpop.f32.mrb[0].mxu0
      %v1983 = vpop.f32.mrb[0].mxu0
      %v1984 = vadd.f32 0.0, %v1983
      %v1985 = vpop.f32.mrb[0].mxu0
      %1986 = vmatprep.mubr.bf16.mxu0 0
      %1987 = vmatmul.mubr.bf16.gmra.mrb[0].mxu0 %v1840
      %v1988 = vpop.f32.mrb[0].mxu0
      %v1989 = vadd.f32 0.0, %v1988
      %v1990 = vpop.f32.mrb[0].mxu0
      %v1991 = vpop.f32.mrb[0].mxu0
      %v1992 = vadd.f32 0.0, %v1991
      %v1993 = vpop.f32.mrb[0].mxu0
      %1994 = vmatprep.mubr.bf16.mxu0 0
      %1995 = vmatmul.mubr.bf16.gmra.mrb[0].mxu0 %v1843
      %v1996 = vpop.f32.mrb[0].mxu0
      %v1997 = vadd.f32 0.0, %v1996
      %v1998 = vpop.f32.mrb[0].mxu0
      %v1999 = vpop.f32.mrb[0].mxu0
      %v2000 = vadd.f32 0.0, %v1999
      %v2001 = vpop.f32.mrb[0].mxu0
      %2002 = vmatprep.mubr.bf16.mxu0 0
      %2003 = vmatmul.mubr.bf16.gmra.mrb[0].mxu0 %v1846
      %v2004 = vpop.f32.mrb[0].mxu0
      %v2005 = vadd.f32 0.0, %v2004
      %v2006 = vpop.f32.mrb[0].mxu0
      %v2007 = vpop.f32.mrb[0].mxu0
      %v2008 = vadd.f32 0.0, %v2007
      %v2009 = vpop.f32.mrb[0].mxu0
      %2010 = vmatprep.mubr.bf16.mxu0 0
      %2011 = vmatmul.mubr.bf16.gmra.mrb[0].mxu0 %v1849
      %v2012 = vpop.f32.mrb[0].mxu0
      %v2013 = vadd.f32 0.0, %v2012
      %v2014 = vpop.f32.mrb[0].mxu0
      %v2015 = vpop.f32.mrb[0].mxu0
      %v2016 = vadd.f32 0.0, %v2015
      %v2017 = vpop.f32.mrb[0].mxu0
      %2018 = vdwg.mxu0
      %v2019 = vadd.f32 %v1629, %v1886
      %v2020 = vadd.f32 %v1630, %v1893
      %v2021 = vadd.f32 %v1631, %v1900
      %v2022 = vadd.f32 %v1632, %v1907
      %v2023 = vadd.f32 %v1633, %v1914
      %v2024 = vadd.f32 %v1634, %v1933
      %v2025 = vadd.f32 %v1635, %v1936
      %v2026 = vadd.f32 %v1636, %v1941
      %v2027 = vadd.f32 %v1637, %v1944
      %v2028 = vadd.f32 %v1638, %v1949
      %v2029 = vadd.f32 %v1639, %v1952
      %v2030 = vadd.f32 %v1640, %v1957
      %v2031 = vadd.f32 %v1641, %v1960
      %v2032 = vadd.f32 %v1642, %v1965
      %v2033 = vadd.f32 %v1643, %v1968
      %v2034 = vadd.f32 %v1644, %v1973
      %v2035 = vadd.f32 %v1645, %v1976
      %v2036 = vadd.f32 %v1646, %v1981
      %v2037 = vadd.f32 %v1647, %v1984
      %v2038 = vadd.f32 %v1648, %v1989
      %v2039 = vadd.f32 %v1649, %v1992
      %v2040 = vadd.f32 %v1650, %v1997
      %v2041 = vadd.f32 %v1651, %v2000
      %v2042 = vadd.f32 %v1652, %v2005
      %v2043 = vadd.f32 %v1653, %v2008
      %v2044 = vadd.f32 %v1654, %v2013
      %v2045 = vadd.f32 %v1655, %v2016
      %v2046 = vld [vmem:[%s219 + $0x8] sm:$0xe]
      %v2047 = vld [vmem:[%s219 + $0x94] sm:$0x7]
      %v2048 = vld [vmem:[%s1 + $0x50] sm:$0xf]
      %v2049 = vld [vmem:[%s1 + $0x54] sm:$0xf]
      %v2050 = vld [vmem:[%s1 + $0x58] sm:$0xf]
      %v2051 = vld [vmem:[%s1 + $0x5c] sm:$0xf]
      %v2054 = vunpack.c.l.b16 %v2046
      %v2055 = vunpack.c.l.b16 %v2047
      %v2056 = vpack.c.b16 %v1342, %v2054
      %v2057 = vpack.c.b16 %v2055, %v1375
      %v2058 = vrot.slane %v2056, 1
      %v2059 = vrot.slane %v1378, 1
      %v2060 = vsel %vm968, %v2058, %v2059
      %v2061 = vrot.slane %v1379, 1
      %v2062 = vsel %vm968, %v2059, %v2061
      %v2063 = vrot.slane %v1380, 1
      %v2064 = vsel %vm968, %v2061, %v2063
      %v2065 = vrot.slane %v1381, 1
      %v2066 = vsel %vm968, %v2063, %v2065
      %v2067 = vrot.slane %v1382, 1
      %v2068 = vsel %vm968, %v2065, %v2067
      %v2069 = vrot.slane %v1383, 1
      %v2070 = vsel %vm968, %v2067, %v2069
      %v2071 = vrot.slane %v1384, 1
      %v2072 = vsel %vm968, %v2069, %v2071
      %v2073 = vrot.slane %v1385, 1
      %v2074 = vsel %vm968, %v2071, %v2073
      %v2075 = vrot.slane %v1386, 1
      %v2076 = vsel %vm968, %v2073, %v2075
      %v2077 = vrot.slane %v1387, 1
      %v2078 = vsel %vm968, %v2075, %v2077
      %v2079 = vrot.slane %v1388, 1
      %v2080 = vsel %vm968, %v2077, %v2079
      %v2081 = vrot.slane %v1389, 1
      %v2082 = vsel %vm968, %v2079, %v2081
      %v2083 = vrot.slane %v1390, 1
      %v2084 = vsel %vm968, %v2081, %v2083
      %v2085 = vrot.slane %v1391, 1
      %v2086 = vsel %vm968, %v2083, %v2085
      %v2087 = vrot.slane %v1392, 1
      %v2088 = vsel %vm968, %v2085, %v2087
      %v2089 = vrot.slane %v1393, 1
      %v2090 = vsel %vm968, %v2087, %v2089
      %v2091 = vrot.slane %v2057, 1
      %v2092 = vsel %vm968, %v2089, %v2091
      %v2097 = vunpack.c.l.b16 %v2048
      %v2098 = vunpack.c.l.b16 %v2049
      %v2099 = vunpack.c.l.b16 %v2050
      %v2100 = vunpack.c.l.b16 %v2051
      %v2101 = vpack.c.b16 %v2098, %v2097
      %v2102 = vpack.c.b16 %v2100, %v2099
      %v2106 = vsel %vm517, %v2060, 0
      %v2109 = vsel %vm517, %v2062, 0
      %v2112 = vsel %vm517, %v2064, 0
      %v2115 = vsel %vm517, %v2066, 0
      %v2118 = vsel %vm517, %v2068, 0
      %v2121 = vsel %vm517, %v2070, 0
      %v2124 = vsel %vm517, %v2072, 0
      %v2127 = vsel %vm517, %v2074, 0
      %v2130 = vsel %vm517, %v2076, 0
      %v2133 = vsel %vm517, %v2078, 0
      %v2136 = vsel %vm517, %v2080, 0
      %v2139 = vsel %vm517, %v2082, 0
      %v2142 = vsel %vm517, %v2084, 0
      %v2145 = vsel %vm517, %v2086, 0
      %v2148 = vsel %vm517, %v2088, 0
      %v2151 = vsel %vm517, %v2090, 0
      %v2154 = vsel %vm517, %v2092, 0
      %v2157 = vsel %vm517, %v2091, 0
      %2159 = vmatprep.subr.bf16.mxu0 0
      %2160 = vmatpush1.bf16.msra.mxu0 %v2101
      %2161 = vmatprep.subr.bf16.mxu0 0
      %2162 = vmatpush1.bf16.msra.mxu0 %v2102
      %2163 = vmatprep.subr.bf16.mxu0 0
      %2164 = vmatpush1.bf16.msra.mxu0 0
      %2165 = vmatprep.subr.bf16.mxu0 0
      %2166 = vmatpush1.bf16.msra.mxu0 0
      %2167 = vmatprep.subr.bf16.mxu0 0
      %2168 = vmatpush1.bf16.msra.mxu0 0
      %2169 = vmatprep.subr.bf16.mxu0 0
      %2170 = vmatpush1.bf16.msra.mxu0 0
      %2171 = vmatprep.subr.bf16.mxu0 0
      %2172 = vmatpush1.bf16.msra.mxu0 0
      %2173 = vmatprep.subr.bf16.mxu0 0
      %2174 = vmatpush1.bf16.msra.mxu0 0
      %2175 = vmatprep.subr.bf16.mxu0 0
      %2176 = vmatpush1.bf16.msra.mxu0 0
      %2177 = vmatprep.subr.bf16.mxu0 0
      %2178 = vmatpush1.bf16.msra.mxu0 0
      %2179 = vmatprep.subr.bf16.mxu0 0
      %2180 = vmatpush1.bf16.msra.mxu0 0
      %2181 = vmatprep.subr.bf16.mxu0 0
      %2182 = vmatpush1.bf16.msra.mxu0 0
      %2183 = vmatprep.subr.bf16.mxu0 0
      %2184 = vmatpush1.bf16.msra.mxu0 0
      %2185 = vmatprep.subr.bf16.mxu0 0
      %2186 = vmatpush1.bf16.msra.mxu0 0
      %2187 = vmatprep.subr.bf16.mxu0 0
      %2188 = vmatpush1.bf16.msra.mxu0 0
      %2189 = vmatprep.subr.bf16.mxu0 0
      %2190 = vmatpush1.bf16.msra.mxu0 0
      %2191 = vmatprep.mubr.bf16.mxu0 0
      %2192 = vmatmul.mubr.bf16.gmra.mrb[0].mxu0 %v2106
      %v2193 = vpop.f32.mrb[0].mxu0
      %v2194 = vadd.f32 0.0, %v2193
      %v2195 = vpop.f32.mrb[0].mxu0
      %v2196 = vpop.f32.mrb[0].mxu0
      %v2197 = vpop.f32.mrb[0].mxu0
      %2198 = vmatprep.mubr.bf16.mxu0 0
      %2199 = vmatmul.mubr.bf16.gmra.mrb[0].mxu0 %v2109
      %v2200 = vpop.f32.mrb[0].mxu0
      %v2201 = vadd.f32 0.0, %v2200
      %v2202 = vpop.f32.mrb[0].mxu0
      %v2203 = vpop.f32.mrb[0].mxu0
      %v2204 = vpop.f32.mrb[0].mxu0
      %2205 = vmatprep.mubr.bf16.mxu0 0
      %2206 = vmatmul.mubr.bf16.gmra.mrb[0].mxu0 %v2112
      %v2207 = vpop.f32.mrb[0].mxu0
      %v2208 = vadd.f32 0.0, %v2207
      %v2209 = vpop.f32.mrb[0].mxu0
      %v2210 = vpop.f32.mrb[0].mxu0
      %v2211 = vpop.f32.mrb[0].mxu0
      %2212 = vmatprep.mubr.bf16.mxu0 0
      %2213 = vmatmul.mubr.bf16.gmra.mrb[0].mxu0 %v2115
      %v2214 = vpop.f32.mrb[0].mxu0
      %v2215 = vadd.f32 0.0, %v2214
      %v2216 = vpop.f32.mrb[0].mxu0
      %v2217 = vpop.f32.mrb[0].mxu0
      %v2218 = vpop.f32.mrb[0].mxu0
      %2219 = vmatprep.mubr.bf16.mxu0 0
      %2220 = vmatmul.mubr.bf16.gmra.mrb[0].mxu0 %v2118
      %v2221 = vpop.f32.mrb[0].mxu0
      %v2222 = vadd.f32 0.0, %v2221
      %v2223 = vpop.f32.mrb[0].mxu0
      %v2224 = vpop.f32.mrb[0].mxu0
      %v2225 = vpop.f32.mrb[0].mxu0
      %2226 = vmatprep.mubr.bf16.mxu0 0
      %2227 = vmatmul.mubr.bf16.gmra.mrb[0].mxu0 %v2121
      %v2228 = vpop.f32.mrb[0].mxu0
      %v2229 = vpop.f32.mrb[0].mxu0
      %v2230 = vpop.f32.mrb[0].mxu0
      %v2231 = vpop.f32.mrb[0].mxu0
      %2232 = vmatprep.mubr.bf16.mxu0 0
      %2233 = vmatmul.mubr.bf16.gmra.mrb[0].mxu0 %v2124
      %v2234 = vpop.f32.mrb[0].mxu0
      %v2235 = vpop.f32.mrb[0].mxu0
      %v2236 = vpop.f32.mrb[0].mxu0
      %v2237 = vpop.f32.mrb[0].mxu0
      %2238 = vmatprep.mubr.bf16.mxu0 0
      %2239 = vmatmul.mubr.bf16.gmra.mrb[0].mxu0 %v2127
      %v2240 = vpop.f32.mrb[0].mxu0
      %v2241 = vadd.f32 0.0, %v2240
      %v2242 = vpop.f32.mrb[0].mxu0
      %v2243 = vpop.f32.mrb[0].mxu0
      %v2244 = vadd.f32 0.0, %v2243
      %v2245 = vpop.f32.mrb[0].mxu0
      %2246 = vmatprep.mubr.bf16.mxu0 0
      %2247 = vmatmul.mubr.bf16.gmra.mrb[0].mxu0 %v2130
      %v2248 = vpop.f32.mrb[0].mxu0
      %v2249 = vadd.f32 0.0, %v2248
      %v2250 = vpop.f32.mrb[0].mxu0
      %v2251 = vpop.f32.mrb[0].mxu0
      %v2252 = vadd.f32 0.0, %v2251
      %v2253 = vpop.f32.mrb[0].mxu0
      %2254 = vmatprep.mubr.bf16.mxu0 0
      %2255 = vmatmul.mubr.bf16.gmra.mrb[0].mxu0 %v2133
      %v2256 = vpop.f32.mrb[0].mxu0
      %v2257 = vadd.f32 0.0, %v2256
      %v2258 = vpop.f32.mrb[0].mxu0
      %v2259 = vpop.f32.mrb[0].mxu0
      %v2260 = vadd.f32 0.0, %v2259
      %v2261 = vpop.f32.mrb[0].mxu0
      %2262 = vmatprep.mubr.bf16.mxu0 0
      %2263 = vmatmul.mubr.bf16.gmra.mrb[0].mxu0 %v2136
      %v2264 = vpop.f32.mrb[0].mxu0
      %v2265 = vadd.f32 0.0, %v2264
      %v2266 = vpop.f32.mrb[0].mxu0
      %v2267 = vpop.f32.mrb[0].mxu0
      %v2268 = vadd.f32 0.0, %v2267
      %v2269 = vpop.f32.mrb[0].mxu0
      %2270 = vmatprep.mubr.bf16.mxu0 0
      %2271 = vmatmul.mubr.bf16.gmra.mrb[0].mxu0 %v2139
      %v2272 = vpop.f32.mrb[0].mxu0
      %v2273 = vadd.f32 0.0, %v2272
      %v2274 = vpop.f32.mrb[0].mxu0
      %v2275 = vpop.f32.mrb[0].mxu0
      %v2276 = vadd.f32 0.0, %v2275
      %v2277 = vpop.f32.mrb[0].mxu0
      %2278 = vmatprep.mubr.bf16.mxu0 0
      %2279 = vmatmul.mubr.bf16.gmra.mrb[0].mxu0 %v2142
      %v2280 = vpop.f32.mrb[0].mxu0
      %v2281 = vadd.f32 0.0, %v2280
      %v2282 = vpop.f32.mrb[0].mxu0
      %v2283 = vpop.f32.mrb[0].mxu0
      %v2284 = vadd.f32 0.0, %v2283
      %v2285 = vpop.f32.mrb[0].mxu0
      %2286 = vmatprep.mubr.bf16.mxu0 0
      %2287 = vmatmul.mubr.bf16.gmra.mrb[0].mxu0 %v2145
      %v2288 = vpop.f32.mrb[0].mxu0
      %v2289 = vadd.f32 0.0, %v2288
      %v2290 = vpop.f32.mrb[0].mxu0
      %v2291 = vpop.f32.mrb[0].mxu0
      %v2292 = vadd.f32 0.0, %v2291
      %v2293 = vpop.f32.mrb[0].mxu0
      %2294 = vmatprep.mubr.bf16.mxu0 0
      %2295 = vmatmul.mubr.bf16.gmra.mrb[0].mxu0 %v2148
      %v2296 = vpop.f32.mrb[0].mxu0
      %v2297 = vadd.f32 0.0, %v2296
      %v2298 = vpop.f32.mrb[0].mxu0
      %v2299 = vpop.f32.mrb[0].mxu0
      %v2300 = vadd.f32 0.0, %v2299
      %v2301 = vpop.f32.mrb[0].mxu0
      %2302 = vmatprep.mubr.bf16.mxu0 0
      %2303 = vmatmul.mubr.bf16.gmra.mrb[0].mxu0 %v2151
      %v2304 = vpop.f32.mrb[0].mxu0
      %v2305 = vadd.f32 0.0, %v2304
      %v2306 = vpop.f32.mrb[0].mxu0
      %v2307 = vpop.f32.mrb[0].mxu0
      %v2308 = vadd.f32 0.0, %v2307
      %v2309 = vpop.f32.mrb[0].mxu0
      %2310 = vmatprep.mubr.bf16.mxu0 0
      %2311 = vmatmul.mubr.bf16.gmra.mrb[0].mxu0 %v2154
      %v2312 = vpop.f32.mrb[0].mxu0
      %v2313 = vadd.f32 0.0, %v2312
      %v2314 = vpop.f32.mrb[0].mxu0
      %v2315 = vpop.f32.mrb[0].mxu0
      %v2316 = vadd.f32 0.0, %v2315
      %v2317 = vpop.f32.mrb[0].mxu0
      %2318 = vmatprep.mubr.bf16.mxu0 0
      %2319 = vmatmul.mubr.bf16.gmra.mrb[0].mxu0 %v2157
      %v2320 = vpop.f32.mrb[0].mxu0
      %v2321 = vadd.f32 0.0, %v2320
      %v2322 = vpop.f32.mrb[0].mxu0
      %v2323 = vpop.f32.mrb[0].mxu0
      %v2324 = vadd.f32 0.0, %v2323
      %v2325 = vpop.f32.mrb[0].mxu0
      %2326 = vdwg.mxu0
      %v2327 = vadd.f32 %v2019, %v2194
      %v2328 = vadd.f32 %v2020, %v2201
      %v2329 = vadd.f32 %v2021, %v2208
      %v2330 = vadd.f32 %v2022, %v2215
      %v2331 = vadd.f32 %v2023, %v2222
      %v2332 = vadd.f32 %v2024, %v2241
      %v2333 = vadd.f32 %v2025, %v2244
      %v2334 = vadd.f32 %v2026, %v2249
      %v2335 = vadd.f32 %v2027, %v2252
      %v2336 = vadd.f32 %v2028, %v2257
      %v2337 = vadd.f32 %v2029, %v2260
      %v2338 = vadd.f32 %v2030, %v2265
      %v2339 = vadd.f32 %v2031, %v2268
      %v2340 = vadd.f32 %v2032, %v2273
      %v2341 = vadd.f32 %v2033, %v2276
      %v2342 = vadd.f32 %v2034, %v2281
      %v2343 = vadd.f32 %v2035, %v2284
      %v2344 = vadd.f32 %v2036, %v2289
      %v2345 = vadd.f32 %v2037, %v2292
      %v2346 = vadd.f32 %v2038, %v2297
      %v2347 = vadd.f32 %v2039, %v2300
      %v2348 = vadd.f32 %v2040, %v2305
      %v2349 = vadd.f32 %v2041, %v2308
      %v2350 = vadd.f32 %v2042, %v2313
      %v2351 = vadd.f32 %v2043, %v2316
      %v2352 = vadd.f32 %v2044, %v2321
      %v2353 = vadd.f32 %v2045, %v2324
      %v2354 = vld [vmem:[%s219 + $0x10] sm:$0xf]
      %v2355 = vld [vmem:[%s219 + $0x14] sm:$0xf]
      %v2356 = vld [vmem:[%s219 + $0x18] sm:$0xf]
      %v2357 = vld [vmem:[%s219 + $0x1c] sm:$0xf]
      %v2358 = vld [vmem:[%s219 + $0x20] sm:$0xf]
      %v2359 = vld [vmem:[%s219 + $0x24] sm:$0xf]
      %v2360 = vld [vmem:[%s219 + $0x28] sm:$0xf]
      %v2361 = vld [vmem:[%s219 + $0x2c] sm:$0xf]
      %v2362 = vld [vmem:[%s219 + $0x30] sm:$0xf]
      %v2363 = vld [vmem:[%s219 + $0x34] sm:$0xf]
      %v2364 = vld [vmem:[%s219 + $0x38] sm:$0xf]
      %v2365 = vld [vmem:[%s219 + $0x3c] sm:$0xf]
      %v2366 = vld [vmem:[%s219 + $0x40] sm:$0xf]
      %v2367 = vld [vmem:[%s219 + $0x44] sm:$0xf]
      %v2368 = vld [vmem:[%s219 + $0x48] sm:$0xf]
      %v2369 = vld [vmem:[%s219 + $0x4c] sm:$0xf]
      %v2370 = vld [vmem:[%s219 + $0x50] sm:$0xf]
      %v2371 = vld [vmem:[%s219 + $0x54] sm:$0xf]
      %v2372 = vld [vmem:[%s219 + $0x58] sm:$0xf]
      %v2373 = vld [vmem:[%s219 + $0x5c] sm:$0xf]
      %v2374 = vld [vmem:[%s219 + $0x60] sm:$0xf]
      %v2375 = vld [vmem:[%s219 + $0x64] sm:$0xf]
      %v2376 = vld [vmem:[%s219 + $0x68] sm:$0xf]
      %v2377 = vld [vmem:[%s219 + $0x6c] sm:$0xf]
      %v2378 = vld [vmem:[%s219 + $0x70] sm:$0xf]
      %v2379 = vld [vmem:[%s219 + $0x74] sm:$0xf]
      %v2380 = vld [vmem:[%s219 + $0x78] sm:$0xf]
      %v2381 = vld [vmem:[%s219 + $0x7c] sm:$0xf]
      %v2382 = vld [vmem:[%s219 + $0x80] sm:$0xf]
      %v2383 = vld [vmem:[%s219 + $0x84] sm:$0xf]
      %v2384 = vld [vmem:[%s219 + $0x88] sm:$0xf]
      %v2385 = vld [vmem:[%s219 + $0x8c] sm:$0xf]
      %v2386 = vld [vmem:[%s219 + $0x90] sm:$0xf]
      %v2387 = vld [vmem:[%s219 + $0x94] sm:$0xf]
      %v2388 = vld [vmem:[%s219 + $0x98] sm:$0xf]
      %v2389 = vld [vmem:[%s219 + $0x9c] sm:$0x3]
      %v2390 = vld [vmem:[%s1 + $0x60] sm:$0xf]
      %v2391 = vld [vmem:[%s1 + $0x64] sm:$0xf]
      %v2392 = vld [vmem:[%s1 + $0x68] sm:$0xf]
      %v2393 = vld [vmem:[%s1 + $0x6c] sm:$0xf]
      %v2430 = vunpack.c.l.b16 %v2354
      %v2431 = vunpack.c.l.b16 %v2355
      %v2432 = vunpack.c.l.b16 %v2356
      %v2433 = vunpack.c.l.b16 %v2357
      %v2434 = vunpack.c.l.b16 %v2358
      %v2435 = vunpack.c.l.b16 %v2359
      %v2436 = vunpack.c.l.b16 %v2360
      %v2437 = vunpack.c.l.b16 %v2361
      %v2438 = vunpack.c.l.b16 %v2362
      %v2439 = vunpack.c.l.b16 %v2363
      %v2440 = vunpack.c.l.b16 %v2364
      %v2441 = vunpack.c.l.b16 %v2365
      %v2442 = vunpack.c.l.b16 %v2366
      %v2443 = vunpack.c.l.b16 %v2367
      %v2444 = vunpack.c.l.b16 %v2368
      %v2445 = vunpack.c.l.b16 %v2369
      %v2446 = vunpack.c.l.b16 %v2370
      %v2447 = vunpack.c.l.b16 %v2371
      %v2448 = vunpack.c.l.b16 %v2372
      %v2449 = vunpack.c.l.b16 %v2373
      %v2450 = vunpack.c.l.b16 %v2374
      %v2451 = vunpack.c.l.b16 %v2375
      %v2452 = vunpack.c.l.b16 %v2376
      %v2453 = vunpack.c.l.b16 %v2377
      %v2454 = vunpack.c.l.b16 %v2378
      %v2455 = vunpack.c.l.b16 %v2379
      %v2456 = vunpack.c.l.b16 %v2380
      %v2457 = vunpack.c.l.b16 %v2381
      %v2458 = vunpack.c.l.b16 %v2382
      %v2459 = vunpack.c.l.b16 %v2383
      %v2460 = vunpack.c.l.b16 %v2384
      %v2461 = vunpack.c.l.b16 %v2385
      %v2462 = vunpack.c.l.b16 %v2386
      %v2463 = vunpack.c.l.b16 %v2387
      %v2464 = vunpack.c.l.b16 %v2388
      %v2465 = vunpack.c.l.b16 %v2389
      %v2466 = vpack.c.b16 %v2431, %v2430
      %v2467 = vpack.c.b16 %v2433, %v2432
      %v2468 = vpack.c.b16 %v2435, %v2434
      %v2469 = vpack.c.b16 %v2437, %v2436
      %v2470 = vpack.c.b16 %v2439, %v2438
      %v2471 = vpack.c.b16 %v2441, %v2440
      %v2472 = vpack.c.b16 %v2443, %v2442
      %v2473 = vpack.c.b16 %v2445, %v2444
      %v2474 = vpack.c.b16 %v2447, %v2446
      %v2475 = vpack.c.b16 %v2449, %v2448
      %v2476 = vpack.c.b16 %v2451, %v2450
      %v2477 = vpack.c.b16 %v2453, %v2452
      %v2478 = vpack.c.b16 %v2455, %v2454
      %v2479 = vpack.c.b16 %v2457, %v2456
      %v2480 = vpack.c.b16 %v2459, %v2458
      %v2481 = vpack.c.b16 %v2461, %v2460
      %v2482 = vpack.c.b16 %v2463, %v2462
      %v2483 = vpack.c.b16 %v2465, %v2464
      %v2488 = vunpack.c.l.b16 %v2390
      %v2489 = vunpack.c.l.b16 %v2391
      %v2490 = vunpack.c.l.b16 %v2392
      %v2491 = vunpack.c.l.b16 %v2393
      %v2492 = vpack.c.b16 %v2489, %v2488
      %v2493 = vpack.c.b16 %v2491, %v2490
      %v2497 = vsel %vm517, %v2466, 0
      %v2500 = vsel %vm517, %v2467, 0
      %v2503 = vsel %vm517, %v2468, 0
      %v2506 = vsel %vm517, %v2469, 0
      %v2509 = vsel %vm517, %v2470, 0
      %v2512 = vsel %vm517, %v2471, 0
      %v2515 = vsel %vm517, %v2472, 0
      %v2518 = vsel %vm517, %v2473, 0
      %v2521 = vsel %vm517, %v2474, 0
      %v2524 = vsel %vm517, %v2475, 0
      %v2527 = vsel %vm517, %v2476, 0
      %v2530 = vsel %vm517, %v2477, 0
      %v2533 = vsel %vm517, %v2478, 0
      %v2536 = vsel %vm517, %v2479, 0
      %v2539 = vsel %vm517, %v2480, 0
      %v2542 = vsel %vm517, %v2481, 0
      %v2545 = vsel %vm517, %v2482, 0
      %v2548 = vsel %vm517, %v2483, 0
      %2550 = vmatprep.subr.bf16.mxu0 0
      %2551 = vmatpush1.bf16.msra.mxu0 %v2492
      %2552 = vmatprep.subr.bf16.mxu0 0
      %2553 = vmatpush1.bf16.msra.mxu0 %v2493
      %2554 = vmatprep.subr.bf16.mxu0 0
      %2555 = vmatpush1.bf16.msra.mxu0 0
      %2556 = vmatprep.subr.bf16.mxu0 0
      %2557 = vmatpush1.bf16.msra.mxu0 0
      %2558 = vmatprep.subr.bf16.mxu0 0
      %2559 = vmatpush1.bf16.msra.mxu0 0
      %2560 = vmatprep.subr.bf16.mxu0 0
      %2561 = vmatpush1.bf16.msra.mxu0 0
      %2562 = vmatprep.subr.bf16.mxu0 0
      %2563 = vmatpush1.bf16.msra.mxu0 0
      %2564 = vmatprep.subr.bf16.mxu0 0
      %2565 = vmatpush1.bf16.msra.mxu0 0
      %2566 = vmatprep.subr.bf16.mxu0 0
      %2567 = vmatpush1.bf16.msra.mxu0 0
      %2568 = vmatprep.subr.bf16.mxu0 0
      %2569 = vmatpush1.bf16.msra.mxu0 0
      %2570 = vmatprep.subr.bf16.mxu0 0
      %2571 = vmatpush1.bf16.msra.mxu0 0
      %2572 = vmatprep.subr.bf16.mxu0 0
      %2573 = vmatpush1.bf16.msra.mxu0 0
      %2574 = vmatprep.subr.bf16.mxu0 0
      %2575 = vmatpush1.bf16.msra.mxu0 0
      %2576 = vmatprep.subr.bf16.mxu0 0
      %2577 = vmatpush1.bf16.msra.mxu0 0
      %2578 = vmatprep.subr.bf16.mxu0 0
      %2579 = vmatpush1.bf16.msra.mxu0 0
      %2580 = vmatprep.subr.bf16.mxu0 0
      %2581 = vmatpush1.bf16.msra.mxu0 0
      %2582 = vmatprep.mubr.bf16.mxu0 0
      %2583 = vmatmul.mubr.bf16.gmra.mrb[0].mxu0 %v2497
      %v2584 = vpop.f32.mrb[0].mxu0
      %v2585 = vadd.f32 0.0, %v2584
      %v2586 = vpop.f32.mrb[0].mxu0
      %v2587 = vpop.f32.mrb[0].mxu0
      %v2588 = vpop.f32.mrb[0].mxu0
      %2589 = vmatprep.mubr.bf16.mxu0 0
      %2590 = vmatmul.mubr.bf16.gmra.mrb[0].mxu0 %v2500
      %v2591 = vpop.f32.mrb[0].mxu0
      %v2592 = vadd.f32 0.0, %v2591
      %v2593 = vpop.f32.mrb[0].mxu0
      %v2594 = vpop.f32.mrb[0].mxu0
      %v2595 = vpop.f32.mrb[0].mxu0
      %2596 = vmatprep.mubr.bf16.mxu0 0
      %2597 = vmatmul.mubr.bf16.gmra.mrb[0].mxu0 %v2503
      %v2598 = vpop.f32.mrb[0].mxu0
      %v2599 = vadd.f32 0.0, %v2598
      %v2600 = vpop.f32.mrb[0].mxu0
      %v2601 = vpop.f32.mrb[0].mxu0
      %v2602 = vpop.f32.mrb[0].mxu0
      %2603 = vmatprep.mubr.bf16.mxu0 0
      %2604 = vmatmul.mubr.bf16.gmra.mrb[0].mxu0 %v2506
      %v2605 = vpop.f32.mrb[0].mxu0
      %v2606 = vadd.f32 0.0, %v2605
      %v2607 = vpop.f32.mrb[0].mxu0
      %v2608 = vpop.f32.mrb[0].mxu0
      %v2609 = vpop.f32.mrb[0].mxu0
      %2610 = vmatprep.mubr.bf16.mxu0 0
      %2611 = vmatmul.mubr.bf16.gmra.mrb[0].mxu0 %v2509
      %v2612 = vpop.f32.mrb[0].mxu0
      %v2613 = vadd.f32 0.0, %v2612
      %v2614 = vpop.f32.mrb[0].mxu0
      %v2615 = vpop.f32.mrb[0].mxu0
      %v2616 = vpop.f32.mrb[0].mxu0
      %2617 = vmatprep.mubr.bf16.mxu0 0
      %2618 = vmatmul.mubr.bf16.gmra.mrb[0].mxu0 %v2512
      %v2619 = vpop.f32.mrb[0].mxu0
      %v2620 = vpop.f32.mrb[0].mxu0
      %v2621 = vpop.f32.mrb[0].mxu0
      %v2622 = vpop.f32.mrb[0].mxu0
      %2623 = vmatprep.mubr.bf16.mxu0 0
      %2624 = vmatmul.mubr.bf16.gmra.mrb[0].mxu0 %v2515
      %v2625 = vpop.f32.mrb[0].mxu0
      %v2626 = vpop.f32.mrb[0].mxu0
      %v2627 = vpop.f32.mrb[0].mxu0
      %v2628 = vpop.f32.mrb[0].mxu0
      %2629 = vmatprep.mubr.bf16.mxu0 0
      %2630 = vmatmul.mubr.bf16.gmra.mrb[0].mxu0 %v2518
      %v2631 = vpop.f32.mrb[0].mxu0
      %v2632 = vadd.f32 0.0, %v2631
      %v2633 = vpop.f32.mrb[0].mxu0
      %v2634 = vpop.f32.mrb[0].mxu0
      %v2635 = vadd.f32 0.0, %v2634
      %v2636 = vpop.f32.mrb[0].mxu0
      %2637 = vmatprep.mubr.bf16.mxu0 0
      %2638 = vmatmul.mubr.bf16.gmra.mrb[0].mxu0 %v2521
      %v2639 = vpop.f32.mrb[0].mxu0
      %v2640 = vadd.f32 0.0, %v2639
      %v2641 = vpop.f32.mrb[0].mxu0
      %v2642 = vpop.f32.mrb[0].mxu0
      %v2643 = vadd.f32 0.0, %v2642
      %v2644 = vpop.f32.mrb[0].mxu0
      %2645 = vmatprep.mubr.bf16.mxu0 0
      %2646 = vmatmul.mubr.bf16.gmra.mrb[0].mxu0 %v2524
      %v2647 = vpop.f32.mrb[0].mxu0
      %v2648 = vadd.f32 0.0, %v2647
      %v2649 = vpop.f32.mrb[0].mxu0
      %v2650 = vpop.f32.mrb[0].mxu0
      %v2651 = vadd.f32 0.0, %v2650
      %v2652 = vpop.f32.mrb[0].mxu0
      %2653 = vmatprep.mubr.bf16.mxu0 0
      %2654 = vmatmul.mubr.bf16.gmra.mrb[0].mxu0 %v2527
      %v2655 = vpop.f32.mrb[0].mxu0
      %v2656 = vadd.f32 0.0, %v2655
      %v2657 = vpop.f32.mrb[0].mxu0
      %v2658 = vpop.f32.mrb[0].mxu0
      %v2659 = vadd.f32 0.0, %v2658
      %v2660 = vpop.f32.mrb[0].mxu0
      %2661 = vmatprep.mubr.bf16.mxu0 0
      %2662 = vmatmul.mubr.bf16.gmra.mrb[0].mxu0 %v2530
      %v2663 = vpop.f32.mrb[0].mxu0
      %v2664 = vadd.f32 0.0, %v2663
      %v2665 = vpop.f32.mrb[0].mxu0
      %v2666 = vpop.f32.mrb[0].mxu0
      %v2667 = vadd.f32 0.0, %v2666
      %v2668 = vpop.f32.mrb[0].mxu0
      %2669 = vmatprep.mubr.bf16.mxu0 0
      %2670 = vmatmul.mubr.bf16.gmra.mrb[0].mxu0 %v2533
      %v2671 = vpop.f32.mrb[0].mxu0
      %v2672 = vadd.f32 0.0, %v2671
      %v2673 = vpop.f32.mrb[0].mxu0
      %v2674 = vpop.f32.mrb[0].mxu0
      %v2675 = vadd.f32 0.0, %v2674
      %v2676 = vpop.f32.mrb[0].mxu0
      %2677 = vmatprep.mubr.bf16.mxu0 0
      %2678 = vmatmul.mubr.bf16.gmra.mrb[0].mxu0 %v2536
      %v2679 = vpop.f32.mrb[0].mxu0
      %v2680 = vadd.f32 0.0, %v2679
      %v2681 = vpop.f32.mrb[0].mxu0
      %v2682 = vpop.f32.mrb[0].mxu0
      %v2683 = vadd.f32 0.0, %v2682
      %v2684 = vpop.f32.mrb[0].mxu0
      %2685 = vmatprep.mubr.bf16.mxu0 0
      %2686 = vmatmul.mubr.bf16.gmra.mrb[0].mxu0 %v2539
      %v2687 = vpop.f32.mrb[0].mxu0
      %v2688 = vadd.f32 0.0, %v2687
      %v2689 = vpop.f32.mrb[0].mxu0
      %v2690 = vpop.f32.mrb[0].mxu0
      %v2691 = vadd.f32 0.0, %v2690
      %v2692 = vpop.f32.mrb[0].mxu0
      %2693 = vmatprep.mubr.bf16.mxu0 0
      %2694 = vmatmul.mubr.bf16.gmra.mrb[0].mxu0 %v2542
      %v2695 = vpop.f32.mrb[0].mxu0
      %v2696 = vadd.f32 0.0, %v2695
      %v2697 = vpop.f32.mrb[0].mxu0
      %v2698 = vpop.f32.mrb[0].mxu0
      %v2699 = vadd.f32 0.0, %v2698
      %v2700 = vpop.f32.mrb[0].mxu0
      %2701 = vmatprep.mubr.bf16.mxu0 0
      %2702 = vmatmul.mubr.bf16.gmra.mrb[0].mxu0 %v2545
      %v2703 = vpop.f32.mrb[0].mxu0
      %v2704 = vadd.f32 0.0, %v2703
      %v2705 = vpop.f32.mrb[0].mxu0
      %v2706 = vpop.f32.mrb[0].mxu0
      %v2707 = vadd.f32 0.0, %v2706
      %v2708 = vpop.f32.mrb[0].mxu0
      %2709 = vmatprep.mubr.bf16.mxu0 0
      %2710 = vmatmul.mubr.bf16.gmra.mrb[0].mxu0 %v2548
      %v2711 = vpop.f32.mrb[0].mxu0
      %v2712 = vadd.f32 0.0, %v2711
      %v2713 = vpop.f32.mrb[0].mxu0
      %v2714 = vpop.f32.mrb[0].mxu0
      %v2715 = vadd.f32 0.0, %v2714
      %v2716 = vpop.f32.mrb[0].mxu0
      %2717 = vdwg.mxu0
      %v2718 = vadd.f32 %v2327, %v2585
      %v2719 = vadd.f32 %v2328, %v2592
      %v2720 = vadd.f32 %v2329, %v2599
      %v2721 = vadd.f32 %v2330, %v2606
      %v2722 = vadd.f32 %v2331, %v2613
      %v2723 = vadd.f32 %v2332, %v2632
      %v2724 = vadd.f32 %v2333, %v2635
      %v2725 = vadd.f32 %v2334, %v2640
      %v2726 = vadd.f32 %v2335, %v2643
      %v2727 = vadd.f32 %v2336, %v2648
      %v2728 = vadd.f32 %v2337, %v2651
      %v2729 = vadd.f32 %v2338, %v2656
      %v2730 = vadd.f32 %v2339, %v2659
      %v2731 = vadd.f32 %v2340, %v2664
      %v2732 = vadd.f32 %v2341, %v2667
      %v2733 = vadd.f32 %v2342, %v2672
      %v2734 = vadd.f32 %v2343, %v2675
      %v2735 = vadd.f32 %v2344, %v2680
      %v2736 = vadd.f32 %v2345, %v2683
      %v2737 = vadd.f32 %v2346, %v2688
      %v2738 = vadd.f32 %v2347, %v2691
      %v2739 = vadd.f32 %v2348, %v2696
      %v2740 = vadd.f32 %v2349, %v2699
      %v2741 = vadd.f32 %v2350, %v2704
      %v2742 = vadd.f32 %v2351, %v2707
      %v2743 = vadd.f32 %v2352, %v2712
      %v2744 = vadd.f32 %v2353, %v2715
      %v2745 = vld [vmem:[%s1 + $0x70] sm:$0xf]
      %v2746 = vld [vmem:[%s1 + $0x74] sm:$0xf]
      %v2747 = vld [vmem:[%s1 + $0x78] sm:$0xf]
      %v2748 = vld [vmem:[%s1 + $0x7c] sm:$0xf]
      %v2749 = vshrl.u32 %v2466, 16
      %v2751 = vshll.u32 %v2466, 16
      %v2753 = vrot.slane %v2751, 1
      %v2754 = vor.u32 %v2749, %v2753
      %v2755 = vshll.u32 %v2467, 16
      %v2757 = vrot.slane %v2755, 1
      %v2758 = vsel %vm361, %v2754, %v2757
      %v2759 = vshrl.u32 %v2467, 16
      %v2761 = vor.u32 %v2759, %v2757
      %v2762 = vshll.u32 %v2468, 16
      %v2764 = vrot.slane %v2762, 1
      %v2765 = vsel %vm361, %v2761, %v2764
      %v2766 = vshrl.u32 %v2468, 16
      %v2768 = vor.u32 %v2766, %v2764
      %v2769 = vshll.u32 %v2469, 16
      %v2771 = vrot.slane %v2769, 1
      %v2772 = vsel %vm361, %v2768, %v2771
      %v2773 = vshrl.u32 %v2469, 16
      %v2775 = vor.u32 %v2773, %v2771
      %v2776 = vshll.u32 %v2470, 16
      %v2778 = vrot.slane %v2776, 1
      %v2779 = vsel %vm361, %v2775, %v2778
      %v2780 = vshrl.u32 %v2470, 16
      %v2782 = vor.u32 %v2780, %v2778
      %v2783 = vshll.u32 %v2471, 16
      %v2785 = vrot.slane %v2783, 1
      %v2786 = vsel %vm361, %v2782, %v2785
      %v2787 = vshrl.u32 %v2471, 16
      %v2789 = vor.u32 %v2787, %v2785
      %v2790 = vshll.u32 %v2472, 16
      %v2792 = vrot.slane %v2790, 1
      %v2793 = vsel %vm361, %v2789, %v2792
      %v2794 = vshrl.u32 %v2472, 16
      %v2796 = vor.u32 %v2794, %v2792
      %v2797 = vshll.u32 %v2473, 16
      %v2799 = vrot.slane %v2797, 1
      %v2800 = vsel %vm361, %v2796, %v2799
      %v2801 = vshrl.u32 %v2473, 16
      %v2803 = vor.u32 %v2801, %v2799
      %v2804 = vshll.u32 %v2474, 16
      %v2806 = vrot.slane %v2804, 1
      %v2807 = vsel %vm361, %v2803, %v2806
      %v2808 = vshrl.u32 %v2474, 16
      %v2810 = vor.u32 %v2808, %v2806
      %v2811 = vshll.u32 %v2475, 16
      %v2813 = vrot.slane %v2811, 1
      %v2814 = vsel %vm361, %v2810, %v2813
      %v2815 = vshrl.u32 %v2475, 16
      %v2817 = vor.u32 %v2815, %v2813
      %v2818 = vshll.u32 %v2476, 16
      %v2820 = vrot.slane %v2818, 1
      %v2821 = vsel %vm361, %v2817, %v2820
      %v2822 = vshrl.u32 %v2476, 16
      %v2824 = vor.u32 %v2822, %v2820
      %v2825 = vshll.u32 %v2477, 16
      %v2827 = vrot.slane %v2825, 1
      %v2828 = vsel %vm361, %v2824, %v2827
      %v2829 = vshrl.u32 %v2477, 16
      %v2831 = vor.u32 %v2829, %v2827
      %v2832 = vshll.u32 %v2478, 16
      %v2834 = vrot.slane %v2832, 1
      %v2835 = vsel %vm361, %v2831, %v2834
      %v2836 = vshrl.u32 %v2478, 16
      %v2838 = vor.u32 %v2836, %v2834
      %v2839 = vshll.u32 %v2479, 16
      %v2841 = vrot.slane %v2839, 1
      %v2842 = vsel %vm361, %v2838, %v2841
      %v2843 = vshrl.u32 %v2479, 16
      %v2845 = vor.u32 %v2843, %v2841
      %v2846 = vshll.u32 %v2480, 16
      %v2848 = vrot.slane %v2846, 1
      %v2849 = vsel %vm361, %v2845, %v2848
      %v2850 = vshrl.u32 %v2480, 16
      %v2852 = vor.u32 %v2850, %v2848
      %v2853 = vshll.u32 %v2481, 16
      %v2855 = vrot.slane %v2853, 1
      %v2856 = vsel %vm361, %v2852, %v2855
      %v2857 = vshrl.u32 %v2481, 16
      %v2859 = vor.u32 %v2857, %v2855
      %v2860 = vshll.u32 %v2482, 16
      %v2862 = vrot.slane %v2860, 1
      %v2863 = vsel %vm361, %v2859, %v2862
      %v2864 = vshrl.u32 %v2482, 16
      %v2866 = vor.u32 %v2864, %v2862
      %v2867 = vshll.u32 %v2483, 16
      %v2869 = vrot.slane %v2867, 1
      %v2870 = vsel %vm361, %v2866, %v2869
      %v2871 = vshrl.u32 %v2483, 16
      %v2873 = vor.u32 %v2871, %v2869
      %v2878 = vunpack.c.l.b16 %v2745
      %v2879 = vunpack.c.l.b16 %v2746
      %v2880 = vunpack.c.l.b16 %v2747
      %v2881 = vunpack.c.l.b16 %v2748
      %v2882 = vpack.c.b16 %v2879, %v2878
      %v2883 = vpack.c.b16 %v2881, %v2880
      %v2887 = vsel %vm517, %v2758, 0
      %v2890 = vsel %vm517, %v2765, 0
      %v2893 = vsel %vm517, %v2772, 0
      %v2896 = vsel %vm517, %v2779, 0
      %v2899 = vsel %vm517, %v2786, 0
      %v2902 = vsel %vm517, %v2793, 0
      %v2905 = vsel %vm517, %v2800, 0
      %v2908 = vsel %vm517, %v2807, 0
      %v2911 = vsel %vm517, %v2814, 0
      %v2914 = vsel %vm517, %v2821, 0
      %v2917 = vsel %vm517, %v2828, 0
      %v2920 = vsel %vm517, %v2835, 0
      %v2923 = vsel %vm517, %v2842, 0
      %v2926 = vsel %vm517, %v2849, 0
      %v2929 = vsel %vm517, %v2856, 0
      %v2932 = vsel %vm517, %v2863, 0
      %v2935 = vsel %vm517, %v2870, 0
      %v2938 = vsel %vm517, %v2873, 0
      %2940 = vmatprep.subr.bf16.mxu0 0
      %2941 = vmatpush1.bf16.msra.mxu0 %v2882
      %2942 = vmatprep.subr.bf16.mxu0 0
      %2943 = vmatpush1.bf16.msra.mxu0 %v2883
      %2944 = vmatprep.subr.bf16.mxu0 0
      %2945 = vmatpush1.bf16.msra.mxu0 0
      %2946 = vmatprep.subr.bf16.mxu0 0
      %2947 = vmatpush1.bf16.msra.mxu0 0
      %2948 = vmatprep.subr.bf16.mxu0 0
      %2949 = vmatpush1.bf16.msra.mxu0 0
      %2950 = vmatprep.subr.bf16.mxu0 0
      %2951 = vmatpush1.bf16.msra.mxu0 0
      %2952 = vmatprep.subr.bf16.mxu0 0
      %2953 = vmatpush1.bf16.msra.mxu0 0
      %2954 = vmatprep.subr.bf16.mxu0 0
      %2955 = vmatpush1.bf16.msra.mxu0 0
      %2956 = vmatprep.subr.bf16.mxu0 0
      %2957 = vmatpush1.bf16.msra.mxu0 0
      %2958 = vmatprep.subr.bf16.mxu0 0
      %2959 = vmatpush1.bf16.msra.mxu0 0
      %2960 = vmatprep.subr.bf16.mxu0 0
      %2961 = vmatpush1.bf16.msra.mxu0 0
      %2962 = vmatprep.subr.bf16.mxu0 0
      %2963 = vmatpush1.bf16.msra.mxu0 0
      %2964 = vmatprep.subr.bf16.mxu0 0
      %2965 = vmatpush1.bf16.msra.mxu0 0
      %2966 = vmatprep.subr.bf16.mxu0 0
      %2967 = vmatpush1.bf16.msra.mxu0 0
      %2968 = vmatprep.subr.bf16.mxu0 0
      %2969 = vmatpush1.bf16.msra.mxu0 0
      %2970 = vmatprep.subr.bf16.mxu0 0
      %2971 = vmatpush1.bf16.msra.mxu0 0
      %2972 = vmatprep.mubr.bf16.mxu0 0
      %2973 = vmatmul.mubr.bf16.gmra.mrb[0].mxu0 %v2887
      %v2974 = vpop.f32.mrb[0].mxu0
      %v2975 = vadd.f32 0.0, %v2974
      %v2976 = vpop.f32.mrb[0].mxu0
      %v2977 = vpop.f32.mrb[0].mxu0
      %v2978 = vpop.f32.mrb[0].mxu0
      %2979 = vmatprep.mubr.bf16.mxu0 0
      %2980 = vmatmul.mubr.bf16.gmra.mrb[0].mxu0 %v2890
      %v2981 = vpop.f32.mrb[0].mxu0
      %v2982 = vadd.f32 0.0, %v2981
      %v2983 = vpop.f32.mrb[0].mxu0
      %v2984 = vpop.f32.mrb[0].mxu0
      %v2985 = vpop.f32.mrb[0].mxu0
      %2986 = vmatprep.mubr.bf16.mxu0 0
      %2987 = vmatmul.mubr.bf16.gmra.mrb[0].mxu0 %v2893
      %v2988 = vpop.f32.mrb[0].mxu0
      %v2989 = vadd.f32 0.0, %v2988
      %v2990 = vpop.f32.mrb[0].mxu0
      %v2991 = vpop.f32.mrb[0].mxu0
      %v2992 = vpop.f32.mrb[0].mxu0
      %2993 = vmatprep.mubr.bf16.mxu0 0
      %2994 = vmatmul.mubr.bf16.gmra.mrb[0].mxu0 %v2896
      %v2995 = vpop.f32.mrb[0].mxu0
      %v2996 = vadd.f32 0.0, %v2995
      %v2997 = vpop.f32.mrb[0].mxu0
      %v2998 = vpop.f32.mrb[0].mxu0
      %v2999 = vpop.f32.mrb[0].mxu0
      %3000 = vmatprep.mubr.bf16.mxu0 0
      %3001 = vmatmul.mubr.bf16.gmra.mrb[0].mxu0 %v2899
      %v3002 = vpop.f32.mrb[0].mxu0
      %v3003 = vadd.f32 0.0, %v3002
      %v3004 = vpop.f32.mrb[0].mxu0
      %v3005 = vpop.f32.mrb[0].mxu0
      %v3006 = vpop.f32.mrb[0].mxu0
      %3007 = vmatprep.mubr.bf16.mxu0 0
      %3008 = vmatmul.mubr.bf16.gmra.mrb[0].mxu0 %v2902
      %v3009 = vpop.f32.mrb[0].mxu0
      %v3010 = vpop.f32.mrb[0].mxu0
      %v3011 = vpop.f32.mrb[0].mxu0
      %v3012 = vpop.f32.mrb[0].mxu0
      %3013 = vmatprep.mubr.bf16.mxu0 0
      %3014 = vmatmul.mubr.bf16.gmra.mrb[0].mxu0 %v2905
      %v3015 = vpop.f32.mrb[0].mxu0
      %v3016 = vpop.f32.mrb[0].mxu0
      %v3017 = vpop.f32.mrb[0].mxu0
      %v3018 = vpop.f32.mrb[0].mxu0
      %3019 = vmatprep.mubr.bf16.mxu0 0
      %3020 = vmatmul.mubr.bf16.gmra.mrb[0].mxu0 %v2908
      %v3021 = vpop.f32.mrb[0].mxu0
      %v3022 = vadd.f32 0.0, %v3021
      %v3023 = vpop.f32.mrb[0].mxu0
      %v3024 = vpop.f32.mrb[0].mxu0
      %v3025 = vadd.f32 0.0, %v3024
      %v3026 = vpop.f32.mrb[0].mxu0
      %3027 = vmatprep.mubr.bf16.mxu0 0
      %3028 = vmatmul.mubr.bf16.gmra.mrb[0].mxu0 %v2911
      %v3029 = vpop.f32.mrb[0].mxu0
      %v3030 = vadd.f32 0.0, %v3029
      %v3031 = vpop.f32.mrb[0].mxu0
      %v3032 = vpop.f32.mrb[0].mxu0
      %v3033 = vadd.f32 0.0, %v3032
      %v3034 = vpop.f32.mrb[0].mxu0
      %3035 = vmatprep.mubr.bf16.mxu0 0
      %3036 = vmatmul.mubr.bf16.gmra.mrb[0].mxu0 %v2914
      %v3037 = vpop.f32.mrb[0].mxu0
      %v3038 = vadd.f32 0.0, %v3037
      %v3039 = vpop.f32.mrb[0].mxu0
      %v3040 = vpop.f32.mrb[0].mxu0
      %v3041 = vadd.f32 0.0, %v3040
      %v3042 = vpop.f32.mrb[0].mxu0
      %3043 = vmatprep.mubr.bf16.mxu0 0
      %3044 = vmatmul.mubr.bf16.gmra.mrb[0].mxu0 %v2917
      %v3045 = vpop.f32.mrb[0].mxu0
      %v3046 = vadd.f32 0.0, %v3045
      %v3047 = vpop.f32.mrb[0].mxu0
      %v3048 = vpop.f32.mrb[0].mxu0
      %v3049 = vadd.f32 0.0, %v3048
      %v3050 = vpop.f32.mrb[0].mxu0
      %3051 = vmatprep.mubr.bf16.mxu0 0
      %3052 = vmatmul.mubr.bf16.gmra.mrb[0].mxu0 %v2920
      %v3053 = vpop.f32.mrb[0].mxu0
      %v3054 = vadd.f32 0.0, %v3053
      %v3055 = vpop.f32.mrb[0].mxu0
      %v3056 = vpop.f32.mrb[0].mxu0
      %v3057 = vadd.f32 0.0, %v3056
      %v3058 = vpop.f32.mrb[0].mxu0
      %3059 = vmatprep.mubr.bf16.mxu0 0
      %3060 = vmatmul.mubr.bf16.gmra.mrb[0].mxu0 %v2923
      %v3061 = vpop.f32.mrb[0].mxu0
      %v3062 = vadd.f32 0.0, %v3061
      %v3063 = vpop.f32.mrb[0].mxu0
      %v3064 = vpop.f32.mrb[0].mxu0
      %v3065 = vadd.f32 0.0, %v3064
      %v3066 = vpop.f32.mrb[0].mxu0
      %3067 = vmatprep.mubr.bf16.mxu0 0
      %3068 = vmatmul.mubr.bf16.gmra.mrb[0].mxu0 %v2926
      %v3069 = vpop.f32.mrb[0].mxu0
      %v3070 = vadd.f32 0.0, %v3069
      %v3071 = vpop.f32.mrb[0].mxu0
      %v3072 = vpop.f32.mrb[0].mxu0
      %v3073 = vadd.f32 0.0, %v3072
      %v3074 = vpop.f32.mrb[0].mxu0
      %3075 = vmatprep.mubr.bf16.mxu0 0
      %3076 = vmatmul.mubr.bf16.gmra.mrb[0].mxu0 %v2929
      %v3077 = vpop.f32.mrb[0].mxu0
      %v3078 = vadd.f32 0.0, %v3077
      %v3079 = vpop.f32.mrb[0].mxu0
      %v3080 = vpop.f32.mrb[0].mxu0
      %v3081 = vadd.f32 0.0, %v3080
      %v3082 = vpop.f32.mrb[0].mxu0
      %3083 = vmatprep.mubr.bf16.mxu0 0
      %3084 = vmatmul.mubr.bf16.gmra.mrb[0].mxu0 %v2932
      %v3085 = vpop.f32.mrb[0].mxu0
      %v3086 = vadd.f32 0.0, %v3085
      %v3087 = vpop.f32.mrb[0].mxu0
      %v3088 = vpop.f32.mrb[0].mxu0
      %v3089 = vadd.f32 0.0, %v3088
      %v3090 = vpop.f32.mrb[0].mxu0
      %3091 = vmatprep.mubr.bf16.mxu0 0
      %3092 = vmatmul.mubr.bf16.gmra.mrb[0].mxu0 %v2935
      %v3093 = vpop.f32.mrb[0].mxu0
      %v3094 = vadd.f32 0.0, %v3093
      %v3095 = vpop.f32.mrb[0].mxu0
      %v3096 = vpop.f32.mrb[0].mxu0
      %v3097 = vadd.f32 0.0, %v3096
      %v3098 = vpop.f32.mrb[0].mxu0
      %3099 = vmatprep.mubr.bf16.mxu0 0
      %3100 = vmatmul.mubr.bf16.gmra.mrb[0].mxu0 %v2938
      %v3101 = vpop.f32.mrb[0].mxu0
      %v3102 = vadd.f32 0.0, %v3101
      %v3103 = vpop.f32.mrb[0].mxu0
      %v3104 = vpop.f32.mrb[0].mxu0
      %v3105 = vadd.f32 0.0, %v3104
      %v3106 = vpop.f32.mrb[0].mxu0
      %3107 = vdwg.mxu0
      %v3108 = vadd.f32 %v2718, %v2975
      %v3109 = vadd.f32 %v2719, %v2982
      %v3110 = vadd.f32 %v2720, %v2989
      %v3111 = vadd.f32 %v2721, %v2996
      %v3112 = vadd.f32 %v2722, %v3003
      %v3113 = vadd.f32 %v2723, %v3022
      %v3114 = vadd.f32 %v2724, %v3025
      %v3115 = vadd.f32 %v2725, %v3030
      %v3116 = vadd.f32 %v2726, %v3033
      %v3117 = vadd.f32 %v2727, %v3038
      %v3118 = vadd.f32 %v2728, %v3041
      %v3119 = vadd.f32 %v2729, %v3046
      %v3120 = vadd.f32 %v2730, %v3049
      %v3121 = vadd.f32 %v2731, %v3054
      %v3122 = vadd.f32 %v2732, %v3057
      %v3123 = vadd.f32 %v2733, %v3062
      %v3124 = vadd.f32 %v2734, %v3065
      %v3125 = vadd.f32 %v2735, %v3070
      %v3126 = vadd.f32 %v2736, %v3073
      %v3127 = vadd.f32 %v2737, %v3078
      %v3128 = vadd.f32 %v2738, %v3081
      %v3129 = vadd.f32 %v2739, %v3086
      %v3130 = vadd.f32 %v2740, %v3089
      %v3131 = vadd.f32 %v2741, %v3094
      %v3132 = vadd.f32 %v2742, %v3097
      %v3133 = vadd.f32 %v2743, %v3102
      %v3134 = vadd.f32 %v2744, %v3105
      %v3135 = vld [vmem:[%s219 + $0x10] sm:$0xe]
      %v3136 = vld [vmem:[%s219 + $0x9c] sm:$0x7]
      %v3137 = vld [vmem:[%s1 + $0x80] sm:$0xf]
      %v3138 = vld [vmem:[%s1 + $0x84] sm:$0xf]
      %v3139 = vld [vmem:[%s1 + $0x88] sm:$0xf]
      %v3140 = vld [vmem:[%s1 + $0x8c] sm:$0xf]
      %v3143 = vunpack.c.l.b16 %v3135
      %v3144 = vunpack.c.l.b16 %v3136
      %v3145 = vpack.c.b16 %v2431, %v3143
      %v3146 = vpack.c.b16 %v3144, %v2464
      %v3147 = vrot.slane %v3145, 1
      %v3148 = vrot.slane %v2467, 1
      %v3149 = vsel %vm968, %v3147, %v3148
      %v3150 = vrot.slane %v2468, 1
      %v3151 = vsel %vm968, %v3148, %v3150
      %v3152 = vrot.slane %v2469, 1
      %v3153 = vsel %vm968, %v3150, %v3152
      %v3154 = vrot.slane %v2470, 1
      %v3155 = vsel %vm968, %v3152, %v3154
      %v3156 = vrot.slane %v2471, 1
      %v3157 = vsel %vm968, %v3154, %v3156
      %v3158 = vrot.slane %v2472, 1
      %v3159 = vsel %vm968, %v3156, %v3158
      %v3160 = vrot.slane %v2473, 1
      %v3161 = vsel %vm968, %v3158, %v3160
      %v3162 = vrot.slane %v2474, 1
      %v3163 = vsel %vm968, %v3160, %v3162
      %v3164 = vrot.slane %v2475, 1
      %v3165 = vsel %vm968, %v3162, %v3164
      %v3166 = vrot.slane %v2476, 1
      %v3167 = vsel %vm968, %v3164, %v3166
      %v3168 = vrot.slane %v2477, 1
      %v3169 = vsel %vm968, %v3166, %v3168
      %v3170 = vrot.slane %v2478, 1
      %v3171 = vsel %vm968, %v3168, %v3170
      %v3172 = vrot.slane %v2479, 1
      %v3173 = vsel %vm968, %v3170, %v3172
      %v3174 = vrot.slane %v2480, 1
      %v3175 = vsel %vm968, %v3172, %v3174
      %v3176 = vrot.slane %v2481, 1
      %v3177 = vsel %vm968, %v3174, %v3176
      %v3178 = vrot.slane %v2482, 1
      %v3179 = vsel %vm968, %v3176, %v3178
      %v3180 = vrot.slane %v3146, 1
      %v3181 = vsel %vm968, %v3178, %v3180
      %v3186 = vunpack.c.l.b16 %v3137
      %v3187 = vunpack.c.l.b16 %v3138
      %v3188 = vunpack.c.l.b16 %v3139
      %v3189 = vunpack.c.l.b16 %v3140
      %v3190 = vpack.c.b16 %v3187, %v3186
      %v3191 = vpack.c.b16 %v3189, %v3188
      %v3195 = vsel %vm517, %v3149, 0
      %v3198 = vsel %vm517, %v3151, 0
      %v3201 = vsel %vm517, %v3153, 0
      %v3204 = vsel %vm517, %v3155, 0
      %v3207 = vsel %vm517, %v3157, 0
      %v3210 = vsel %vm517, %v3159, 0
      %v3213 = vsel %vm517, %v3161, 0
      %v3216 = vsel %vm517, %v3163, 0
      %v3219 = vsel %vm517, %v3165, 0
      %v3222 = vsel %vm517, %v3167, 0
      %v3225 = vsel %vm517, %v3169, 0
      %v3228 = vsel %vm517, %v3171, 0
      %v3231 = vsel %vm517, %v3173, 0
      %v3234 = vsel %vm517, %v3175, 0
      %v3237 = vsel %vm517, %v3177, 0
      %v3240 = vsel %vm517, %v3179, 0
      %v3243 = vsel %vm517, %v3181, 0
      %v3246 = vsel %vm517, %v3180, 0
      %3248 = vmatprep.subr.bf16.mxu0 0
      %3249 = vmatpush1.bf16.msra.mxu0 %v3190
      %3250 = vmatprep.subr.bf16.mxu0 0
      %3251 = vmatpush1.bf16.msra.mxu0 %v3191
      %3252 = vmatprep.subr.bf16.mxu0 0
      %3253 = vmatpush1.bf16.msra.mxu0 0
      %3254 = vmatprep.subr.bf16.mxu0 0
      %3255 = vmatpush1.bf16.msra.mxu0 0
      %3256 = vmatprep.subr.bf16.mxu0 0
      %3257 = vmatpush1.bf16.msra.mxu0 0
      %3258 = vmatprep.subr.bf16.mxu0 0
      %3259 = vmatpush1.bf16.msra.mxu0 0
      %3260 = vmatprep.subr.bf16.mxu0 0
      %3261 = vmatpush1.bf16.msra.mxu0 0
      %3262 = vmatprep.subr.bf16.mxu0 0
      %3263 = vmatpush1.bf16.msra.mxu0 0
      %3264 = vmatprep.subr.bf16.mxu0 0
      %3265 = vmatpush1.bf16.msra.mxu0 0
      %3266 = vmatprep.subr.bf16.mxu0 0
      %3267 = vmatpush1.bf16.msra.mxu0 0
      %3268 = vmatprep.subr.bf16.mxu0 0
      %3269 = vmatpush1.bf16.msra.mxu0 0
      %3270 = vmatprep.subr.bf16.mxu0 0
      %3271 = vmatpush1.bf16.msra.mxu0 0
      %3272 = vmatprep.subr.bf16.mxu0 0
      %3273 = vmatpush1.bf16.msra.mxu0 0
      %3274 = vmatprep.subr.bf16.mxu0 0
      %3275 = vmatpush1.bf16.msra.mxu0 0
      %3276 = vmatprep.subr.bf16.mxu0 0
      %3277 = vmatpush1.bf16.msra.mxu0 0
      %3278 = vmatprep.subr.bf16.mxu0 0
      %3279 = vmatpush1.bf16.msra.mxu0 0
      %3280 = vmatprep.mubr.bf16.mxu0 0
      %3281 = vmatmul.mubr.bf16.gmra.mrb[0].mxu0 %v3195
      %v3282 = vpop.f32.mrb[0].mxu0
      %v3283 = vadd.f32 0.0, %v3282
      %v3284 = vpop.f32.mrb[0].mxu0
      %v3285 = vpop.f32.mrb[0].mxu0
      %v3286 = vpop.f32.mrb[0].mxu0
      %3287 = vmatprep.mubr.bf16.mxu0 0
      %3288 = vmatmul.mubr.bf16.gmra.mrb[0].mxu0 %v3198
      %v3289 = vpop.f32.mrb[0].mxu0
      %v3290 = vadd.f32 0.0, %v3289
      %v3291 = vpop.f32.mrb[0].mxu0
      %v3292 = vpop.f32.mrb[0].mxu0
      %v3293 = vpop.f32.mrb[0].mxu0
      %3294 = vmatprep.mubr.bf16.mxu0 0
      %3295 = vmatmul.mubr.bf16.gmra.mrb[0].mxu0 %v3201
      %v3296 = vpop.f32.mrb[0].mxu0
      %v3297 = vadd.f32 0.0, %v3296
      %v3298 = vpop.f32.mrb[0].mxu0
      %v3299 = vpop.f32.mrb[0].mxu0
      %v3300 = vpop.f32.mrb[0].mxu0
      %3301 = vmatprep.mubr.bf16.mxu0 0
      %3302 = vmatmul.mubr.bf16.gmra.mrb[0].mxu0 %v3204
      %v3303 = vpop.f32.mrb[0].mxu0
      %v3304 = vadd.f32 0.0, %v3303
      %v3305 = vpop.f32.mrb[0].mxu0
      %v3306 = vpop.f32.mrb[0].mxu0
      %v3307 = vpop.f32.mrb[0].mxu0
      %3308 = vmatprep.mubr.bf16.mxu0 0
      %3309 = vmatmul.mubr.bf16.gmra.mrb[0].mxu0 %v3207
      %v3310 = vpop.f32.mrb[0].mxu0
      %v3311 = vadd.f32 0.0, %v3310
      %v3312 = vpop.f32.mrb[0].mxu0
      %v3313 = vpop.f32.mrb[0].mxu0
      %v3314 = vpop.f32.mrb[0].mxu0
      %3315 = vmatprep.mubr.bf16.mxu0 0
      %3316 = vmatmul.mubr.bf16.gmra.mrb[0].mxu0 %v3210
      %v3317 = vpop.f32.mrb[0].mxu0
      %v3318 = vpop.f32.mrb[0].mxu0
      %v3319 = vpop.f32.mrb[0].mxu0
      %v3320 = vpop.f32.mrb[0].mxu0
      %3321 = vmatprep.mubr.bf16.mxu0 0
      %3322 = vmatmul.mubr.bf16.gmra.mrb[0].mxu0 %v3213
      %v3323 = vpop.f32.mrb[0].mxu0
      %v3324 = vpop.f32.mrb[0].mxu0
      %v3325 = vpop.f32.mrb[0].mxu0
      %v3326 = vpop.f32.mrb[0].mxu0
      %3327 = vmatprep.mubr.bf16.mxu0 0
      %3328 = vmatmul.mubr.bf16.gmra.mrb[0].mxu0 %v3216
      %v3329 = vpop.f32.mrb[0].mxu0
      %v3330 = vadd.f32 0.0, %v3329
      %v3331 = vpop.f32.mrb[0].mxu0
      %v3332 = vpop.f32.mrb[0].mxu0
      %v3333 = vadd.f32 0.0, %v3332
      %v3334 = vpop.f32.mrb[0].mxu0
      %3335 = vmatprep.mubr.bf16.mxu0 0
      %3336 = vmatmul.mubr.bf16.gmra.mrb[0].mxu0 %v3219
      %v3337 = vpop.f32.mrb[0].mxu0
      %v3338 = vadd.f32 0.0, %v3337
      %v3339 = vpop.f32.mrb[0].mxu0
      %v3340 = vpop.f32.mrb[0].mxu0
      %v3341 = vadd.f32 0.0, %v3340
      %v3342 = vpop.f32.mrb[0].mxu0
      %3343 = vmatprep.mubr.bf16.mxu0 0
      %3344 = vmatmul.mubr.bf16.gmra.mrb[0].mxu0 %v3222
      %v3345 = vpop.f32.mrb[0].mxu0
      %v3346 = vadd.f32 0.0, %v3345
      %v3347 = vpop.f32.mrb[0].mxu0
      %v3348 = vpop.f32.mrb[0].mxu0
      %v3349 = vadd.f32 0.0, %v3348
      %v3350 = vpop.f32.mrb[0].mxu0
      %3351 = vmatprep.mubr.bf16.mxu0 0
      %3352 = vmatmul.mubr.bf16.gmra.mrb[0].mxu0 %v3225
      %v3353 = vpop.f32.mrb[0].mxu0
      %v3354 = vadd.f32 0.0, %v3353
      %v3355 = vpop.f32.mrb[0].mxu0
      %v3356 = vpop.f32.mrb[0].mxu0
      %v3357 = vadd.f32 0.0, %v3356
      %v3358 = vpop.f32.mrb[0].mxu0
      %3359 = vmatprep.mubr.bf16.mxu0 0
      %3360 = vmatmul.mubr.bf16.gmra.mrb[0].mxu0 %v3228
      %v3361 = vpop.f32.mrb[0].mxu0
      %v3362 = vadd.f32 0.0, %v3361
      %v3363 = vpop.f32.mrb[0].mxu0
      %v3364 = vpop.f32.mrb[0].mxu0
      %v3365 = vadd.f32 0.0, %v3364
      %v3366 = vpop.f32.mrb[0].mxu0
      %3367 = vmatprep.mubr.bf16.mxu0 0
      %3368 = vmatmul.mubr.bf16.gmra.mrb[0].mxu0 %v3231
      %v3369 = vpop.f32.mrb[0].mxu0
      %v3370 = vadd.f32 0.0, %v3369
      %v3371 = vpop.f32.mrb[0].mxu0
      %v3372 = vpop.f32.mrb[0].mxu0
      %v3373 = vadd.f32 0.0, %v3372
      %v3374 = vpop.f32.mrb[0].mxu0
      %3375 = vmatprep.mubr.bf16.mxu0 0
      %3376 = vmatmul.mubr.bf16.gmra.mrb[0].mxu0 %v3234
      %v3377 = vpop.f32.mrb[0].mxu0
      %v3378 = vadd.f32 0.0, %v3377
      %v3379 = vpop.f32.mrb[0].mxu0
      %v3380 = vpop.f32.mrb[0].mxu0
      %v3381 = vadd.f32 0.0, %v3380
      %v3382 = vpop.f32.mrb[0].mxu0
      %3383 = vmatprep.mubr.bf16.mxu0 0
      %3384 = vmatmul.mubr.bf16.gmra.mrb[0].mxu0 %v3237
      %v3385 = vpop.f32.mrb[0].mxu0
      %v3386 = vadd.f32 0.0, %v3385
      %v3387 = vpop.f32.mrb[0].mxu0
      %v3388 = vpop.f32.mrb[0].mxu0
      %v3389 = vadd.f32 0.0, %v3388
      %v3390 = vpop.f32.mrb[0].mxu0
      %3391 = vmatprep.mubr.bf16.mxu0 0
      %3392 = vmatmul.mubr.bf16.gmra.mrb[0].mxu0 %v3240
      %v3393 = vpop.f32.mrb[0].mxu0
      %v3394 = vadd.f32 0.0, %v3393
      %v3395 = vpop.f32.mrb[0].mxu0
      %v3396 = vpop.f32.mrb[0].mxu0
      %v3397 = vadd.f32 0.0, %v3396
      %v3398 = vpop.f32.mrb[0].mxu0
      %3399 = vmatprep.mubr.bf16.mxu0 0
      %3400 = vmatmul.mubr.bf16.gmra.mrb[0].mxu0 %v3243
      %v3401 = vpop.f32.mrb[0].mxu0
      %v3402 = vadd.f32 0.0, %v3401
      %v3403 = vpop.f32.mrb[0].mxu0
      %v3404 = vpop.f32.mrb[0].mxu0
      %v3405 = vadd.f32 0.0, %v3404
      %v3406 = vpop.f32.mrb[0].mxu0
      %3407 = vmatprep.mubr.bf16.mxu0 0
      %3408 = vmatmul.mubr.bf16.gmra.mrb[0].mxu0 %v3246
      %v3409 = vpop.f32.mrb[0].mxu0
      %v3410 = vadd.f32 0.0, %v3409
      %v3411 = vpop.f32.mrb[0].mxu0
      %v3412 = vpop.f32.mrb[0].mxu0
      %v3413 = vadd.f32 0.0, %v3412
      %v3414 = vpop.f32.mrb[0].mxu0
      %3415 = vdwg.mxu0
      %v3416 = vadd.f32 %v3108, %v3283
      %v3417 = vadd.f32 %v3109, %v3290
      %v3418 = vadd.f32 %v3110, %v3297
      %v3419 = vadd.f32 %v3111, %v3304
      %v3420 = vadd.f32 %v3112, %v3311
      %v3421 = vadd.f32 %v3113, %v3330
      %v3422 = vadd.f32 %v3114, %v3333
      %v3423 = vadd.f32 %v3115, %v3338
      %v3424 = vadd.f32 %v3116, %v3341
      %v3425 = vadd.f32 %v3117, %v3346
      %v3426 = vadd.f32 %v3118, %v3349
      %v3427 = vadd.f32 %v3119, %v3354
      %v3428 = vadd.f32 %v3120, %v3357
      %v3429 = vadd.f32 %v3121, %v3362
      %v3430 = vadd.f32 %v3122, %v3365
      %v3431 = vadd.f32 %v3123, %v3370
      %v3432 = vadd.f32 %v3124, %v3373
      %v3433 = vadd.f32 %v3125, %v3378
      %v3434 = vadd.f32 %v3126, %v3381
      %v3435 = vadd.f32 %v3127, %v3386
      %v3436 = vadd.f32 %v3128, %v3389
      %v3437 = vadd.f32 %v3129, %v3394
      %v3438 = vadd.f32 %v3130, %v3397
      %v3439 = vadd.f32 %v3131, %v3402
      %v3440 = vadd.f32 %v3132, %v3405
      %v3441 = vadd.f32 %v3133, %v3410
      %v3442 = vadd.f32 %v3134, %v3413
      %v3443 = vlaneseq
      %v3444 = vshrl.u32 %v3443, 7
      %v3445 = vsub.s32 0, %v3444
      %v3446 = vrot.slane %v226, %v3445
      %v3447 = vmul.f32 %v3416, %v3446
      %v3448 = vmul.f32 %v3417, %v3446
      %v3449 = vmul.f32 %v3418, %v3446
      %v3450 = vmul.f32 %v3419, %v3446
      %v3451 = vmul.f32 %v3420, %v3446
      %v3452 = vmul.f32 %v3421, %v3446
      %v3453 = vmul.f32 %v3422, %v3446
      %v3454 = vmul.f32 %v3423, %v3446
      %v3455 = vmul.f32 %v3424, %v3446
      %v3456 = vmul.f32 %v3425, %v3446
      %v3457 = vmul.f32 %v3426, %v3446
      %v3458 = vmul.f32 %v3427, %v3446
      %v3459 = vmul.f32 %v3428, %v3446
      %v3460 = vmul.f32 %v3429, %v3446
      %v3461 = vmul.f32 %v3430, %v3446
      %v3462 = vmul.f32 %v3431, %v3446
      %v3463 = vmul.f32 %v3432, %v3446
      %v3464 = vmul.f32 %v3433, %v3446
      %v3465 = vmul.f32 %v3434, %v3446
      %v3466 = vmul.f32 %v3435, %v3446
      %v3467 = vmul.f32 %v3436, %v3446
      %v3468 = vmul.f32 %v3437, %v3446
      %v3469 = vmul.f32 %v3438, %v3446
      %v3470 = vmul.f32 %v3439, %v3446
      %v3471 = vmul.f32 %v3440, %v3446
      %v3472 = vmul.f32 %v3441, %v3446
      %v3473 = vmul.f32 %v3442, %v3446
      %v3474 = vlaneseq
      %v3475 = vshrl.u32 %v3474, 7
      %v3476 = vsub.s32 1, %v3475
      %v3477 = vrot.slane %v226, %v3476
      %v3478 = vadd.f32 %v3447, %v3477
      %v3479 = vadd.f32 %v3448, %v3477
      %v3480 = vadd.f32 %v3449, %v3477
      %v3481 = vadd.f32 %v3450, %v3477
      %v3482 = vadd.f32 %v3451, %v3477
      %v3483 = vadd.f32 %v3452, %v3477
      %v3484 = vadd.f32 %v3453, %v3477
      %v3485 = vadd.f32 %v3454, %v3477
      %v3486 = vadd.f32 %v3455, %v3477
      %v3487 = vadd.f32 %v3456, %v3477
      %v3488 = vadd.f32 %v3457, %v3477
      %v3489 = vadd.f32 %v3458, %v3477
      %v3490 = vadd.f32 %v3459, %v3477
      %v3491 = vadd.f32 %v3460, %v3477
      %v3492 = vadd.f32 %v3461, %v3477
      %v3493 = vadd.f32 %v3462, %v3477
      %v3494 = vadd.f32 %v3463, %v3477
      %v3495 = vadd.f32 %v3464, %v3477
      %v3496 = vadd.f32 %v3465, %v3477
      %v3497 = vadd.f32 %v3466, %v3477
      %v3498 = vadd.f32 %v3467, %v3477
      %v3499 = vadd.f32 %v3468, %v3477
      %v3500 = vadd.f32 %v3469, %v3477
      %v3501 = vadd.f32 %v3470, %v3477
      %v3502 = vadd.f32 %v3471, %v3477
      %v3503 = vadd.f32 %v3472, %v3477
      %v3504 = vadd.f32 %v3473, %v3477
      %v3505 = vmax.f32 %v3478, 0.0
      %v3506 = vmax.f32 %v3479, 0.0
      %v3507 = vmax.f32 %v3480, 0.0
      %v3508 = vmax.f32 %v3481, 0.0
      %v3509 = vmax.f32 %v3482, 0.0
      %v3510 = vmax.f32 %v3483, 0.0
      %v3511 = vmax.f32 %v3484, 0.0
      %v3512 = vmax.f32 %v3485, 0.0
      %v3513 = vmax.f32 %v3486, 0.0
      %v3514 = vmax.f32 %v3487, 0.0
      %v3515 = vmax.f32 %v3488, 0.0
      %v3516 = vmax.f32 %v3489, 0.0
      %v3517 = vmax.f32 %v3490, 0.0
      %v3518 = vmax.f32 %v3491, 0.0
      %v3519 = vmax.f32 %v3492, 0.0
      %v3520 = vmax.f32 %v3493, 0.0
      %v3521 = vmax.f32 %v3494, 0.0
      %v3522 = vmax.f32 %v3495, 0.0
      %v3523 = vmax.f32 %v3496, 0.0
      %v3524 = vmax.f32 %v3497, 0.0
      %v3525 = vmax.f32 %v3498, 0.0
      %v3526 = vmax.f32 %v3499, 0.0
      %v3527 = vmax.f32 %v3500, 0.0
      %v3528 = vmax.f32 %v3501, 0.0
      %v3529 = vmax.f32 %v3502, 0.0
      %v3530 = vmax.f32 %v3503, 0.0
      %v3531 = vmax.f32 %v3504, 0.0
      %3532 = vrot.lane.b32.xlu0 %v3505, 64
      %v3533 = vpop.permute.xlu0 %3532
      %3534 = vrot.lane.b32.xlu0 %v3506, 64
      %v3535 = vpop.permute.xlu0 %3534
      %3536 = vrot.lane.b32.xlu0 %v3507, 64
      %v3537 = vpop.permute.xlu0 %3536
      %3538 = vrot.lane.b32.xlu0 %v3508, 64
      %v3539 = vpop.permute.xlu0 %3538
      %3540 = vrot.lane.b32.xlu0 %v3509, 64
      %v3541 = vpop.permute.xlu0 %3540
      %v3542 = vlaneseq
      %v3543 = vshrl.u32 %v3542, 7
      %v3544 = vsub.s32 0, %v3543
      %v3545 = vrot.slane %v3533, %v3544
      %v3546 = vmul.f32 %v3510, %v3545
      %v3547 = vmul.f32 %v3511, %v3545
      %v3548 = vmul.f32 %v3512, %v3545
      %v3549 = vmul.f32 %v3513, %v3545
      %v3550 = vmul.f32 %v3514, %v3545
      %v3551 = vmul.f32 %v3515, %v3545
      %v3552 = vmul.f32 %v3516, %v3545
      %v3553 = vmul.f32 %v3517, %v3545
      %v3554 = vmul.f32 %v3518, %v3545
      %v3555 = vmul.f32 %v3519, %v3545
      %v3556 = vmul.f32 %v3520, %v3545
      %v3557 = vmul.f32 %v3521, %v3545
      %v3558 = vmul.f32 %v3522, %v3545
      %v3559 = vlaneseq
      %v3560 = vshrl.u32 %v3559, 7
      %v3561 = vsub.s32 1, %v3560
      %v3562 = vrot.slane %v3533, %v3561
      %v3563 = vmul.f32 %v3510, %v3562
      %v3564 = vmul.f32 %v3511, %v3562
      %v3565 = vmul.f32 %v3512, %v3562
      %v3566 = vmul.f32 %v3513, %v3562
      %v3567 = vmul.f32 %v3514, %v3562
      %v3568 = vmul.f32 %v3515, %v3562
      %v3569 = vmul.f32 %v3516, %v3562
      %v3570 = vmul.f32 %v3517, %v3562
      %v3571 = vmul.f32 %v3518, %v3562
      %v3572 = vmul.f32 %v3519, %v3562
      %v3573 = vmul.f32 %v3520, %v3562
      %v3574 = vmul.f32 %v3521, %v3562
      %v3575 = vmul.f32 %v3522, %v3562
      %vm3589 = vcmask 1046528
      %v3590 = vrot.slane %v3563, 1
      %v3591 = vrot.slane %v3564, 1
      %v3592 = vsel %vm3589, %v3590, %v3591
      %v3593 = vrot.slane %v3565, 1
      %v3594 = vsel %vm3589, %v3591, %v3593
      %v3595 = vrot.slane %v3566, 1
      %v3596 = vsel %vm3589, %v3593, %v3595
      %v3597 = vrot.slane %v3567, 1
      %v3598 = vsel %vm3589, %v3595, %v3597
      %v3599 = vrot.slane %v3568, 1
      %v3600 = vsel %vm3589, %v3597, %v3599
      %v3601 = vrot.slane %v3569, 1
      %v3602 = vsel %vm3589, %v3599, %v3601
      %v3603 = vrot.slane %v3570, 1
      %v3604 = vsel %vm3589, %v3601, %v3603
      %v3605 = vrot.slane %v3571, 1
      %v3606 = vsel %vm3589, %v3603, %v3605
      %v3607 = vrot.slane %v3572, 1
      %v3608 = vsel %vm3589, %v3605, %v3607
      %v3609 = vrot.slane %v3573, 1
      %v3610 = vsel %vm3589, %v3607, %v3609
      %v3611 = vrot.slane %v3574, 1
      %v3612 = vsel %vm3589, %v3609, %v3611
      %v3613 = vrot.slane %v3575, 1
      %v3614 = vsel %vm3589, %v3611, %v3613
      %v3628 = vadd.f32 %v3546, %v3592
      %v3629 = vadd.f32 %v3547, %v3594
      %v3630 = vadd.f32 %v3548, %v3596
      %v3631 = vadd.f32 %v3549, %v3598
      %v3632 = vadd.f32 %v3550, %v3600
      %v3633 = vadd.f32 %v3551, %v3602
      %v3634 = vadd.f32 %v3552, %v3604
      %v3635 = vadd.f32 %v3553, %v3606
      %v3636 = vadd.f32 %v3554, %v3608
      %v3637 = vadd.f32 %v3555, %v3610
      %v3638 = vadd.f32 %v3556, %v3612
      %v3639 = vadd.f32 %v3557, %v3614
      %v3640 = vadd.f32 %v3558, %v3613
      %v3641 = vlaneseq
      %v3642 = vshrl.u32 %v3641, 7
      %v3643 = vsub.s32 2, %v3642
      %v3644 = vrot.slane %v3533, %v3643
      %v3645 = vmul.f32 %v3510, %v3644
      %v3646 = vmul.f32 %v3511, %v3644
      %v3647 = vmul.f32 %v3512, %v3644
      %v3648 = vmul.f32 %v3513, %v3644
      %v3649 = vmul.f32 %v3514, %v3644
      %v3650 = vmul.f32 %v3515, %v3644
      %v3651 = vmul.f32 %v3516, %v3644
      %v3652 = vmul.f32 %v3517, %v3644
      %v3653 = vmul.f32 %v3518, %v3644
      %v3654 = vmul.f32 %v3519, %v3644
      %v3655 = vmul.f32 %v3520, %v3644
      %v3656 = vmul.f32 %v3521, %v3644
      %v3657 = vmul.f32 %v3522, %v3644
      %v3658 = vmul.f32 %v3523, %v3644
      %vm3673 = vcmask 1045504
      %v3674 = vrot.slane %v3645, 2
      %v3675 = vrot.slane %v3646, 2
      %v3676 = vsel %vm3673, %v3674, %v3675
      %v3677 = vrot.slane %v3647, 2
      %v3678 = vsel %vm3673, %v3675, %v3677
      %v3679 = vrot.slane %v3648, 2
      %v3680 = vsel %vm3673, %v3677, %v3679
      %v3681 = vrot.slane %v3649, 2
      %v3682 = vsel %vm3673, %v3679, %v3681
      %v3683 = vrot.slane %v3650, 2
      %v3684 = vsel %vm3673, %v3681, %v3683
      %v3685 = vrot.slane %v3651, 2
      %v3686 = vsel %vm3673, %v3683, %v3685
      %v3687 = vrot.slane %v3652, 2
      %v3688 = vsel %vm3673, %v3685, %v3687
      %v3689 = vrot.slane %v3653, 2
      %v3690 = vsel %vm3673, %v3687, %v3689
      %v3691 = vrot.slane %v3654, 2
      %v3692 = vsel %vm3673, %v3689, %v3691
      %v3693 = vrot.slane %v3655, 2
      %v3694 = vsel %vm3673, %v3691, %v3693
      %v3695 = vrot.slane %v3656, 2
      %v3696 = vsel %vm3673, %v3693, %v3695
      %v3697 = vrot.slane %v3657, 2
      %v3698 = vsel %vm3673, %v3695, %v3697
      %v3699 = vrot.slane %v3658, 2
      %v3700 = vsel %vm3673, %v3697, %v3699
      %v3714 = vadd.f32 %v3628, %v3676
      %v3715 = vadd.f32 %v3629, %v3678
      %v3716 = vadd.f32 %v3630, %v3680
      %v3717 = vadd.f32 %v3631, %v3682
      %v3718 = vadd.f32 %v3632, %v3684
      %v3719 = vadd.f32 %v3633, %v3686
      %v3720 = vadd.f32 %v3634, %v3688
      %v3721 = vadd.f32 %v3635, %v3690
      %v3722 = vadd.f32 %v3636, %v3692
      %v3723 = vadd.f32 %v3637, %v3694
      %v3724 = vadd.f32 %v3638, %v3696
      %v3725 = vadd.f32 %v3639, %v3698
      %v3726 = vadd.f32 %v3640, %v3700
      %v3727 = vlaneseq
      %v3728 = vshrl.u32 %v3727, 7
      %v3729 = vsub.s32 3, %v3728
      %v3730 = vrot.slane %v3533, %v3729
      %v3731 = vmul.f32 %v3510, %v3730
      %v3732 = vmul.f32 %v3511, %v3730
      %v3733 = vmul.f32 %v3512, %v3730
      %v3734 = vmul.f32 %v3513, %v3730
      %v3735 = vmul.f32 %v3514, %v3730
      %v3736 = vmul.f32 %v3515, %v3730
      %v3737 = vmul.f32 %v3516, %v3730
      %v3738 = vmul.f32 %v3517, %v3730
      %v3739 = vmul.f32 %v3518, %v3730
      %v3740 = vmul.f32 %v3519, %v3730
      %v3741 = vmul.f32 %v3520, %v3730
      %v3742 = vmul.f32 %v3521, %v3730
      %v3743 = vmul.f32 %v3522, %v3730
      %v3744 = vmul.f32 %v3523, %v3730
      %vm3759 = vcmask 1044480
      %v3760 = vrot.slane %v3731, 3
      %v3761 = vrot.slane %v3732, 3
      %v3762 = vsel %vm3759, %v3760, %v3761
      %v3763 = vrot.slane %v3733, 3
      %v3764 = vsel %vm3759, %v3761, %v3763
      %v3765 = vrot.slane %v3734, 3
      %v3766 = vsel %vm3759, %v3763, %v3765
      %v3767 = vrot.slane %v3735, 3
      %v3768 = vsel %vm3759, %v3765, %v3767
      %v3769 = vrot.slane %v3736, 3
      %v3770 = vsel %vm3759, %v3767, %v3769
      %v3771 = vrot.slane %v3737, 3
      %v3772 = vsel %vm3759, %v3769, %v3771
      %v3773 = vrot.slane %v3738, 3
      %v3774 = vsel %vm3759, %v3771, %v3773
      %v3775 = vrot.slane %v3739, 3
      %v3776 = vsel %vm3759, %v3773, %v3775
      %v3777 = vrot.slane %v3740, 3
      %v3778 = vsel %vm3759, %v3775, %v3777
      %v3779 = vrot.slane %v3741, 3
      %v3780 = vsel %vm3759, %v3777, %v3779
      %v3781 = vrot.slane %v3742, 3
      %v3782 = vsel %vm3759, %v3779, %v3781
      %v3783 = vrot.slane %v3743, 3
      %v3784 = vsel %vm3759, %v3781, %v3783
      %v3785 = vrot.slane %v3744, 3
      %v3786 = vsel %vm3759, %v3783, %v3785
      %v3800 = vadd.f32 %v3714, %v3762
      %v3801 = vadd.f32 %v3715, %v3764
      %v3802 = vadd.f32 %v3716, %v3766
      %v3803 = vadd.f32 %v3717, %v3768
      %v3804 = vadd.f32 %v3718, %v3770
      %v3805 = vadd.f32 %v3719, %v3772
      %v3806 = vadd.f32 %v3720, %v3774
      %v3807 = vadd.f32 %v3721, %v3776
      %v3808 = vadd.f32 %v3722, %v3778
      %v3809 = vadd.f32 %v3723, %v3780
      %v3810 = vadd.f32 %v3724, %v3782
      %v3811 = vadd.f32 %v3725, %v3784
      %v3812 = vadd.f32 %v3726, %v3786
      %v3813 = vlaneseq
      %v3814 = vshrl.u32 %v3813, 7
      %v3815 = vsub.s32 4, %v3814
      %v3816 = vrot.slane %v3533, %v3815
      %v3817 = vmul.f32 %v3510, %v3816
      %v3818 = vmul.f32 %v3511, %v3816
      %v3819 = vmul.f32 %v3512, %v3816
      %v3820 = vmul.f32 %v3513, %v3816
      %v3821 = vmul.f32 %v3514, %v3816
      %v3822 = vmul.f32 %v3515, %v3816
      %v3823 = vmul.f32 %v3516, %v3816
      %v3824 = vmul.f32 %v3517, %v3816
      %v3825 = vmul.f32 %v3518, %v3816
      %v3826 = vmul.f32 %v3519, %v3816
      %v3827 = vmul.f32 %v3520, %v3816
      %v3828 = vmul.f32 %v3521, %v3816
      %v3829 = vmul.f32 %v3522, %v3816
      %v3830 = vmul.f32 %v3523, %v3816
      %vm3845 = vcmask 1043456
      %v3846 = vrot.slane %v3817, 4
      %v3847 = vrot.slane %v3818, 4
      %v3848 = vsel %vm3845, %v3846, %v3847
      %v3849 = vrot.slane %v3819, 4
      %v3850 = vsel %vm3845, %v3847, %v3849
      %v3851 = vrot.slane %v3820, 4
      %v3852 = vsel %vm3845, %v3849, %v3851
      %v3853 = vrot.slane %v3821, 4
      %v3854 = vsel %vm3845, %v3851, %v3853
      %v3855 = vrot.slane %v3822, 4
      %v3856 = vsel %vm3845, %v3853, %v3855
      %v3857 = vrot.slane %v3823, 4
      %v3858 = vsel %vm3845, %v3855, %v3857
      %v3859 = vrot.slane %v3824, 4
      %v3860 = vsel %vm3845, %v3857, %v3859
      %v3861 = vrot.slane %v3825, 4
      %v3862 = vsel %vm3845, %v3859, %v3861
      %v3863 = vrot.slane %v3826, 4
      %v3864 = vsel %vm3845, %v3861, %v3863
      %v3865 = vrot.slane %v3827, 4
      %v3866 = vsel %vm3845, %v3863, %v3865
      %v3867 = vrot.slane %v3828, 4
      %v3868 = vsel %vm3845, %v3865, %v3867
      %v3869 = vrot.slane %v3829, 4
      %v3870 = vsel %vm3845, %v3867, %v3869
      %v3871 = vrot.slane %v3830, 4
      %v3872 = vsel %vm3845, %v3869, %v3871
      %v3886 = vadd.f32 %v3800, %v3848
      %v3887 = vadd.f32 %v3801, %v3850
      %v3888 = vadd.f32 %v3802, %v3852
      %v3889 = vadd.f32 %v3803, %v3854
      %v3890 = vadd.f32 %v3804, %v3856
      %v3891 = vadd.f32 %v3805, %v3858
      %v3892 = vadd.f32 %v3806, %v3860
      %v3893 = vadd.f32 %v3807, %v3862
      %v3894 = vadd.f32 %v3808, %v3864
      %v3895 = vadd.f32 %v3809, %v3866
      %v3896 = vadd.f32 %v3810, %v3868
      %v3897 = vadd.f32 %v3811, %v3870
      %v3898 = vadd.f32 %v3812, %v3872
      %v3899 = vlaneseq
      %v3900 = vshrl.u32 %v3899, 7
      %v3901 = vsub.s32 0, %v3900
      %v3902 = vrot.slane %v3535, %v3901
      %v3903 = vmul.f32 %v3512, %v3902
      %v3904 = vmul.f32 %v3513, %v3902
      %v3905 = vmul.f32 %v3514, %v3902
      %v3906 = vmul.f32 %v3515, %v3902
      %v3907 = vmul.f32 %v3516, %v3902
      %v3908 = vmul.f32 %v3517, %v3902
      %v3909 = vmul.f32 %v3518, %v3902
      %v3910 = vmul.f32 %v3519, %v3902
      %v3911 = vmul.f32 %v3520, %v3902
      %v3912 = vmul.f32 %v3521, %v3902
      %v3913 = vmul.f32 %v3522, %v3902
      %v3914 = vmul.f32 %v3523, %v3902
      %v3915 = vmul.f32 %v3524, %v3902
      %v3916 = vadd.f32 %v3886, %v3903
      %v3917 = vadd.f32 %v3887, %v3904
      %v3918 = vadd.f32 %v3888, %v3905
      %v3919 = vadd.f32 %v3889, %v3906
      %v3920 = vadd.f32 %v3890, %v3907
      %v3921 = vadd.f32 %v3891, %v3908
      %v3922 = vadd.f32 %v3892, %v3909
      %v3923 = vadd.f32 %v3893, %v3910
      %v3924 = vadd.f32 %v3894, %v3911
      %v3925 = vadd.f32 %v3895, %v3912
      %v3926 = vadd.f32 %v3896, %v3913
      %v3927 = vadd.f32 %v3897, %v3914
      %v3928 = vadd.f32 %v3898, %v3915
      %v3929 = vlaneseq
      %v3930 = vshrl.u32 %v3929, 7
      %v3931 = vsub.s32 1, %v3930
      %v3932 = vrot.slane %v3535, %v3931
      %v3933 = vmul.f32 %v3512, %v3932
      %v3934 = vmul.f32 %v3513, %v3932
      %v3935 = vmul.f32 %v3514, %v3932
      %v3936 = vmul.f32 %v3515, %v3932
      %v3937 = vmul.f32 %v3516, %v3932
      %v3938 = vmul.f32 %v3517, %v3932
      %v3939 = vmul.f32 %v3518, %v3932
      %v3940 = vmul.f32 %v3519, %v3932
      %v3941 = vmul.f32 %v3520, %v3932
      %v3942 = vmul.f32 %v3521, %v3932
      %v3943 = vmul.f32 %v3522, %v3932
      %v3944 = vmul.f32 %v3523, %v3932
      %v3945 = vmul.f32 %v3524, %v3932
      %v3959 = vrot.slane %v3933, 1
      %v3960 = vrot.slane %v3934, 1
      %v3961 = vsel %vm3589, %v3959, %v3960
      %v3962 = vrot.slane %v3935, 1
      %v3963 = vsel %vm3589, %v3960, %v3962
      %v3964 = vrot.slane %v3936, 1
      %v3965 = vsel %vm3589, %v3962, %v3964
      %v3966 = vrot.slane %v3937, 1
      %v3967 = vsel %vm3589, %v3964, %v3966
      %v3968 = vrot.slane %v3938, 1
      %v3969 = vsel %vm3589, %v3966, %v3968
      %v3970 = vrot.slane %v3939, 1
      %v3971 = vsel %vm3589, %v3968, %v3970
      %v3972 = vrot.slane %v3940, 1
      %v3973 = vsel %vm3589, %v3970, %v3972
      %v3974 = vrot.slane %v3941, 1
      %v3975 = vsel %vm3589, %v3972, %v3974
      %v3976 = vrot.slane %v3942, 1
      %v3977 = vsel %vm3589, %v3974, %v3976
      %v3978 = vrot.slane %v3943, 1
      %v3979 = vsel %vm3589, %v3976, %v3978
      %v3980 = vrot.slane %v3944, 1
      %v3981 = vsel %vm3589, %v3978, %v3980
      %v3982 = vrot.slane %v3945, 1
      %v3983 = vsel %vm3589, %v3980, %v3982
      %v3997 = vadd.f32 %v3916, %v3961
      %v3998 = vadd.f32 %v3917, %v3963
      %v3999 = vadd.f32 %v3918, %v3965
      %v4000 = vadd.f32 %v3919, %v3967
      %v4001 = vadd.f32 %v3920, %v3969
      %v4002 = vadd.f32 %v3921, %v3971
      %v4003 = vadd.f32 %v3922, %v3973
      %v4004 = vadd.f32 %v3923, %v3975
      %v4005 = vadd.f32 %v3924, %v3977
      %v4006 = vadd.f32 %v3925, %v3979
      %v4007 = vadd.f32 %v3926, %v3981
      %v4008 = vadd.f32 %v3927, %v3983
      %v4009 = vadd.f32 %v3928, %v3982
      %v4010 = vlaneseq
      %v4011 = vshrl.u32 %v4010, 7
      %v4012 = vsub.s32 2, %v4011
      %v4013 = vrot.slane %v3535, %v4012
      %v4014 = vmul.f32 %v3512, %v4013
      %v4015 = vmul.f32 %v3513, %v4013
      %v4016 = vmul.f32 %v3514, %v4013
      %v4017 = vmul.f32 %v3515, %v4013
      %v4018 = vmul.f32 %v3516, %v4013
      %v4019 = vmul.f32 %v3517, %v4013
      %v4020 = vmul.f32 %v3518, %v4013
      %v4021 = vmul.f32 %v3519, %v4013
      %v4022 = vmul.f32 %v3520, %v4013
      %v4023 = vmul.f32 %v3521, %v4013
      %v4024 = vmul.f32 %v3522, %v4013
      %v4025 = vmul.f32 %v3523, %v4013
      %v4026 = vmul.f32 %v3524, %v4013
      %v4027 = vmul.f32 %v3525, %v4013
      %v4042 = vrot.slane %v4014, 2
      %v4043 = vrot.slane %v4015, 2
      %v4044 = vsel %vm3673, %v4042, %v4043
      %v4045 = vrot.slane %v4016, 2
      %v4046 = vsel %vm3673, %v4043, %v4045
      %v4047 = vrot.slane %v4017, 2
      %v4048 = vsel %vm3673, %v4045, %v4047
      %v4049 = vrot.slane %v4018, 2
      %v4050 = vsel %vm3673, %v4047, %v4049
      %v4051 = vrot.slane %v4019, 2
      %v4052 = vsel %vm3673, %v4049, %v4051
      %v4053 = vrot.slane %v4020, 2
      %v4054 = vsel %vm3673, %v4051, %v4053
      %v4055 = vrot.slane %v4021, 2
      %v4056 = vsel %vm3673, %v4053, %v4055
      %v4057 = vrot.slane %v4022, 2
      %v4058 = vsel %vm3673, %v4055, %v4057
      %v4059 = vrot.slane %v4023, 2
      %v4060 = vsel %vm3673, %v4057, %v4059
      %v4061 = vrot.slane %v4024, 2
      %v4062 = vsel %vm3673, %v4059, %v4061
      %v4063 = vrot.slane %v4025, 2
      %v4064 = vsel %vm3673, %v4061, %v4063
      %v4065 = vrot.slane %v4026, 2
      %v4066 = vsel %vm3673, %v4063, %v4065
      %v4067 = vrot.slane %v4027, 2
      %v4068 = vsel %vm3673, %v4065, %v4067
      %v4082 = vadd.f32 %v3997, %v4044
      %v4083 = vadd.f32 %v3998, %v4046
      %v4084 = vadd.f32 %v3999, %v4048
      %v4085 = vadd.f32 %v4000, %v4050
      %v4086 = vadd.f32 %v4001, %v4052
      %v4087 = vadd.f32 %v4002, %v4054
      %v4088 = vadd.f32 %v4003, %v4056
      %v4089 = vadd.f32 %v4004, %v4058
      %v4090 = vadd.f32 %v4005, %v4060
      %v4091 = vadd.f32 %v4006, %v4062
      %v4092 = vadd.f32 %v4007, %v4064
      %v4093 = vadd.f32 %v4008, %v4066
      %v4094 = vadd.f32 %v4009, %v4068
      %v4095 = vlaneseq
      %v4096 = vshrl.u32 %v4095, 7
      %v4097 = vsub.s32 3, %v4096
      %v4098 = vrot.slane %v3535, %v4097
      %v4099 = vmul.f32 %v3512, %v4098
      %v4100 = vmul.f32 %v3513, %v4098
      %v4101 = vmul.f32 %v3514, %v4098
      %v4102 = vmul.f32 %v3515, %v4098
      %v4103 = vmul.f32 %v3516, %v4098
      %v4104 = vmul.f32 %v3517, %v4098
      %v4105 = vmul.f32 %v3518, %v4098
      %v4106 = vmul.f32 %v3519, %v4098
      %v4107 = vmul.f32 %v3520, %v4098
      %v4108 = vmul.f32 %v3521, %v4098
      %v4109 = vmul.f32 %v3522, %v4098
      %v4110 = vmul.f32 %v3523, %v4098
      %v4111 = vmul.f32 %v3524, %v4098
      %v4112 = vmul.f32 %v3525, %v4098
      %v4127 = vrot.slane %v4099, 3
      %v4128 = vrot.slane %v4100, 3
      %v4129 = vsel %vm3759, %v4127, %v4128
      %v4130 = vrot.slane %v4101, 3
      %v4131 = vsel %vm3759, %v4128, %v4130
      %v4132 = vrot.slane %v4102, 3
      %v4133 = vsel %vm3759, %v4130, %v4132
      %v4134 = vrot.slane %v4103, 3
      %v4135 = vsel %vm3759, %v4132, %v4134
      %v4136 = vrot.slane %v4104, 3
      %v4137 = vsel %vm3759, %v4134, %v4136
      %v4138 = vrot.slane %v4105, 3
      %v4139 = vsel %vm3759, %v4136, %v4138
      %v4140 = vrot.slane %v4106, 3
      %v4141 = vsel %vm3759, %v4138, %v4140
      %v4142 = vrot.slane %v4107, 3
      %v4143 = vsel %vm3759, %v4140, %v4142
      %v4144 = vrot.slane %v4108, 3
      %v4145 = vsel %vm3759, %v4142, %v4144
      %v4146 = vrot.slane %v4109, 3
      %v4147 = vsel %vm3759, %v4144, %v4146
      %v4148 = vrot.slane %v4110, 3
      %v4149 = vsel %vm3759, %v4146, %v4148
      %v4150 = vrot.slane %v4111, 3
      %v4151 = vsel %vm3759, %v4148, %v4150
      %v4152 = vrot.slane %v4112, 3
      %v4153 = vsel %vm3759, %v4150, %v4152
      %v4167 = vadd.f32 %v4082, %v4129
      %v4168 = vadd.f32 %v4083, %v4131
      %v4169 = vadd.f32 %v4084, %v4133
      %v4170 = vadd.f32 %v4085, %v4135
      %v4171 = vadd.f32 %v4086, %v4137
      %v4172 = vadd.f32 %v4087, %v4139
      %v4173 = vadd.f32 %v4088, %v4141
      %v4174 = vadd.f32 %v4089, %v4143
      %v4175 = vadd.f32 %v4090, %v4145
      %v4176 = vadd.f32 %v4091, %v4147
      %v4177 = vadd.f32 %v4092, %v4149
      %v4178 = vadd.f32 %v4093, %v4151
      %v4179 = vadd.f32 %v4094, %v4153
      %v4180 = vlaneseq
      %v4181 = vshrl.u32 %v4180, 7
      %v4182 = vsub.s32 4, %v4181
      %v4183 = vrot.slane %v3535, %v4182
      %v4184 = vmul.f32 %v3512, %v4183
      %v4185 = vmul.f32 %v3513, %v4183
      %v4186 = vmul.f32 %v3514, %v4183
      %v4187 = vmul.f32 %v3515, %v4183
      %v4188 = vmul.f32 %v3516, %v4183
      %v4189 = vmul.f32 %v3517, %v4183
      %v4190 = vmul.f32 %v3518, %v4183
      %v4191 = vmul.f32 %v3519, %v4183
      %v4192 = vmul.f32 %v3520, %v4183
      %v4193 = vmul.f32 %v3521, %v4183
      %v4194 = vmul.f32 %v3522, %v4183
      %v4195 = vmul.f32 %v3523, %v4183
      %v4196 = vmul.f32 %v3524, %v4183
      %v4197 = vmul.f32 %v3525, %v4183
      %v4212 = vrot.slane %v4184, 4
      %v4213 = vrot.slane %v4185, 4
      %v4214 = vsel %vm3845, %v4212, %v4213
      %v4215 = vrot.slane %v4186, 4
      %v4216 = vsel %vm3845, %v4213, %v4215
      %v4217 = vrot.slane %v4187, 4
      %v4218 = vsel %vm3845, %v4215, %v4217
      %v4219 = vrot.slane %v4188, 4
      %v4220 = vsel %vm3845, %v4217, %v4219
      %v4221 = vrot.slane %v4189, 4
      %v4222 = vsel %vm3845, %v4219, %v4221
      %v4223 = vrot.slane %v4190, 4
      %v4224 = vsel %vm3845, %v4221, %v4223
      %v4225 = vrot.slane %v4191, 4
      %v4226 = vsel %vm3845, %v4223, %v4225
      %v4227 = vrot.slane %v4192, 4
      %v4228 = vsel %vm3845, %v4225, %v4227
      %v4229 = vrot.slane %v4193, 4
      %v4230 = vsel %vm3845, %v4227, %v4229
      %v4231 = vrot.slane %v4194, 4
      %v4232 = vsel %vm3845, %v4229, %v4231
      %v4233 = vrot.slane %v4195, 4
      %v4234 = vsel %vm3845, %v4231, %v4233
      %v4235 = vrot.slane %v4196, 4
      %v4236 = vsel %vm3845, %v4233, %v4235
      %v4237 = vrot.slane %v4197, 4
      %v4238 = vsel %vm3845, %v4235, %v4237
      %v4252 = vadd.f32 %v4167, %v4214
      %v4253 = vadd.f32 %v4168, %v4216
      %v4254 = vadd.f32 %v4169, %v4218
      %v4255 = vadd.f32 %v4170, %v4220
      %v4256 = vadd.f32 %v4171, %v4222
      %v4257 = vadd.f32 %v4172, %v4224
      %v4258 = vadd.f32 %v4173, %v4226
      %v4259 = vadd.f32 %v4174, %v4228
      %v4260 = vadd.f32 %v4175, %v4230
      %v4261 = vadd.f32 %v4176, %v4232
      %v4262 = vadd.f32 %v4177, %v4234
      %v4263 = vadd.f32 %v4178, %v4236
      %v4264 = vadd.f32 %v4179, %v4238
      %v4265 = vlaneseq
      %v4266 = vshrl.u32 %v4265, 7
      %v4267 = vsub.s32 0, %v4266
      %v4268 = vrot.slane %v3537, %v4267
      %v4269 = vmul.f32 %v3514, %v4268
      %v4270 = vmul.f32 %v3515, %v4268
      %v4271 = vmul.f32 %v3516, %v4268
      %v4272 = vmul.f32 %v3517, %v4268
      %v4273 = vmul.f32 %v3518, %v4268
      %v4274 = vmul.f32 %v3519, %v4268
      %v4275 = vmul.f32 %v3520, %v4268
      %v4276 = vmul.f32 %v3521, %v4268
      %v4277 = vmul.f32 %v3522, %v4268
      %v4278 = vmul.f32 %v3523, %v4268
      %v4279 = vmul.f32 %v3524, %v4268
      %v4280 = vmul.f32 %v3525, %v4268
      %v4281 = vmul.f32 %v3526, %v4268
      %v4282 = vadd.f32 %v4252, %v4269
      %v4283 = vadd.f32 %v4253, %v4270
      %v4284 = vadd.f32 %v4254, %v4271
      %v4285 = vadd.f32 %v4255, %v4272
      %v4286 = vadd.f32 %v4256, %v4273
      %v4287 = vadd.f32 %v4257, %v4274
      %v4288 = vadd.f32 %v4258, %v4275
      %v4289 = vadd.f32 %v4259, %v4276
      %v4290 = vadd.f32 %v4260, %v4277
      %v4291 = vadd.f32 %v4261, %v4278
      %v4292 = vadd.f32 %v4262, %v4279
      %v4293 = vadd.f32 %v4263, %v4280
      %v4294 = vadd.f32 %v4264, %v4281
      %v4295 = vlaneseq
      %v4296 = vshrl.u32 %v4295, 7
      %v4297 = vsub.s32 1, %v4296
      %v4298 = vrot.slane %v3537, %v4297
      %v4299 = vmul.f32 %v3514, %v4298
      %v4300 = vmul.f32 %v3515, %v4298
      %v4301 = vmul.f32 %v3516, %v4298
      %v4302 = vmul.f32 %v3517, %v4298
      %v4303 = vmul.f32 %v3518, %v4298
      %v4304 = vmul.f32 %v3519, %v4298
      %v4305 = vmul.f32 %v3520, %v4298
      %v4306 = vmul.f32 %v3521, %v4298
      %v4307 = vmul.f32 %v3522, %v4298
      %v4308 = vmul.f32 %v3523, %v4298
      %v4309 = vmul.f32 %v3524, %v4298
      %v4310 = vmul.f32 %v3525, %v4298
      %v4311 = vmul.f32 %v3526, %v4298
      %v4325 = vrot.slane %v4299, 1
      %v4326 = vrot.slane %v4300, 1
      %v4327 = vsel %vm3589, %v4325, %v4326
      %v4328 = vrot.slane %v4301, 1
      %v4329 = vsel %vm3589, %v4326, %v4328
      %v4330 = vrot.slane %v4302, 1
      %v4331 = vsel %vm3589, %v4328, %v4330
      %v4332 = vrot.slane %v4303, 1
      %v4333 = vsel %vm3589, %v4330, %v4332
      %v4334 = vrot.slane %v4304, 1
      %v4335 = vsel %vm3589, %v4332, %v4334
      %v4336 = vrot.slane %v4305, 1
      %v4337 = vsel %vm3589, %v4334, %v4336
      %v4338 = vrot.slane %v4306, 1
      %v4339 = vsel %vm3589, %v4336, %v4338
      %v4340 = vrot.slane %v4307, 1
      %v4341 = vsel %vm3589, %v4338, %v4340
      %v4342 = vrot.slane %v4308, 1
      %v4343 = vsel %vm3589, %v4340, %v4342
      %v4344 = vrot.slane %v4309, 1
      %v4345 = vsel %vm3589, %v4342, %v4344
      %v4346 = vrot.slane %v4310, 1
      %v4347 = vsel %vm3589, %v4344, %v4346
      %v4348 = vrot.slane %v4311, 1
      %v4349 = vsel %vm3589, %v4346, %v4348
      %v4363 = vadd.f32 %v4282, %v4327
      %v4364 = vadd.f32 %v4283, %v4329
      %v4365 = vadd.f32 %v4284, %v4331
      %v4366 = vadd.f32 %v4285, %v4333
      %v4367 = vadd.f32 %v4286, %v4335
      %v4368 = vadd.f32 %v4287, %v4337
      %v4369 = vadd.f32 %v4288, %v4339
      %v4370 = vadd.f32 %v4289, %v4341
      %v4371 = vadd.f32 %v4290, %v4343
      %v4372 = vadd.f32 %v4291, %v4345
      %v4373 = vadd.f32 %v4292, %v4347
      %v4374 = vadd.f32 %v4293, %v4349
      %v4375 = vadd.f32 %v4294, %v4348
      %v4376 = vlaneseq
      %v4377 = vshrl.u32 %v4376, 7
      %v4378 = vsub.s32 2, %v4377
      %v4379 = vrot.slane %v3537, %v4378
      %v4380 = vmul.f32 %v3514, %v4379
      %v4381 = vmul.f32 %v3515, %v4379
      %v4382 = vmul.f32 %v3516, %v4379
      %v4383 = vmul.f32 %v3517, %v4379
      %v4384 = vmul.f32 %v3518, %v4379
      %v4385 = vmul.f32 %v3519, %v4379
      %v4386 = vmul.f32 %v3520, %v4379
      %v4387 = vmul.f32 %v3521, %v4379
      %v4388 = vmul.f32 %v3522, %v4379
      %v4389 = vmul.f32 %v3523, %v4379
      %v4390 = vmul.f32 %v3524, %v4379
      %v4391 = vmul.f32 %v3525, %v4379
      %v4392 = vmul.f32 %v3526, %v4379
      %v4393 = vmul.f32 %v3527, %v4379
      %v4408 = vrot.slane %v4380, 2
      %v4409 = vrot.slane %v4381, 2
      %v4410 = vsel %vm3673, %v4408, %v4409
      %v4411 = vrot.slane %v4382, 2
      %v4412 = vsel %vm3673, %v4409, %v4411
      %v4413 = vrot.slane %v4383, 2
      %v4414 = vsel %vm3673, %v4411, %v4413
      %v4415 = vrot.slane %v4384, 2
      %v4416 = vsel %vm3673, %v4413, %v4415
      %v4417 = vrot.slane %v4385, 2
      %v4418 = vsel %vm3673, %v4415, %v4417
      %v4419 = vrot.slane %v4386, 2
      %v4420 = vsel %vm3673, %v4417, %v4419
      %v4421 = vrot.slane %v4387, 2
      %v4422 = vsel %vm3673, %v4419, %v4421
      %v4423 = vrot.slane %v4388, 2
      %v4424 = vsel %vm3673, %v4421, %v4423
      %v4425 = vrot.slane %v4389, 2
      %v4426 = vsel %vm3673, %v4423, %v4425
      %v4427 = vrot.slane %v4390, 2
      %v4428 = vsel %vm3673, %v4425, %v4427
      %v4429 = vrot.slane %v4391, 2
      %v4430 = vsel %vm3673, %v4427, %v4429
      %v4431 = vrot.slane %v4392, 2
      %v4432 = vsel %vm3673, %v4429, %v4431
      %v4433 = vrot.slane %v4393, 2
      %v4434 = vsel %vm3673, %v4431, %v4433
      %v4448 = vadd.f32 %v4363, %v4410
      %v4449 = vadd.f32 %v4364, %v4412
      %v4450 = vadd.f32 %v4365, %v4414
      %v4451 = vadd.f32 %v4366, %v4416
      %v4452 = vadd.f32 %v4367, %v4418
      %v4453 = vadd.f32 %v4368, %v4420
      %v4454 = vadd.f32 %v4369, %v4422
      %v4455 = vadd.f32 %v4370, %v4424
      %v4456 = vadd.f32 %v4371, %v4426
      %v4457 = vadd.f32 %v4372, %v4428
      %v4458 = vadd.f32 %v4373, %v4430
      %v4459 = vadd.f32 %v4374, %v4432
      %v4460 = vadd.f32 %v4375, %v4434
      %v4461 = vlaneseq
      %v4462 = vshrl.u32 %v4461, 7
      %v4463 = vsub.s32 3, %v4462
      %v4464 = vrot.slane %v3537, %v4463
      %v4465 = vmul.f32 %v3514, %v4464
      %v4466 = vmul.f32 %v3515, %v4464
      %v4467 = vmul.f32 %v3516, %v4464
      %v4468 = vmul.f32 %v3517, %v4464
      %v4469 = vmul.f32 %v3518, %v4464
      %v4470 = vmul.f32 %v3519, %v4464
      %v4471 = vmul.f32 %v3520, %v4464
      %v4472 = vmul.f32 %v3521, %v4464
      %v4473 = vmul.f32 %v3522, %v4464
      %v4474 = vmul.f32 %v3523, %v4464
      %v4475 = vmul.f32 %v3524, %v4464
      %v4476 = vmul.f32 %v3525, %v4464
      %v4477 = vmul.f32 %v3526, %v4464
      %v4478 = vmul.f32 %v3527, %v4464
      %v4493 = vrot.slane %v4465, 3
      %v4494 = vrot.slane %v4466, 3
      %v4495 = vsel %vm3759, %v4493, %v4494
      %v4496 = vrot.slane %v4467, 3
      %v4497 = vsel %vm3759, %v4494, %v4496
      %v4498 = vrot.slane %v4468, 3
      %v4499 = vsel %vm3759, %v4496, %v4498
      %v4500 = vrot.slane %v4469, 3
      %v4501 = vsel %vm3759, %v4498, %v4500
      %v4502 = vrot.slane %v4470, 3
      %v4503 = vsel %vm3759, %v4500, %v4502
      %v4504 = vrot.slane %v4471, 3
      %v4505 = vsel %vm3759, %v4502, %v4504
      %v4506 = vrot.slane %v4472, 3
      %v4507 = vsel %vm3759, %v4504, %v4506
      %v4508 = vrot.slane %v4473, 3
      %v4509 = vsel %vm3759, %v4506, %v4508
      %v4510 = vrot.slane %v4474, 3
      %v4511 = vsel %vm3759, %v4508, %v4510
      %v4512 = vrot.slane %v4475, 3
      %v4513 = vsel %vm3759, %v4510, %v4512
      %v4514 = vrot.slane %v4476, 3
      %v4515 = vsel %vm3759, %v4512, %v4514
      %v4516 = vrot.slane %v4477, 3
      %v4517 = vsel %vm3759, %v4514, %v4516
      %v4518 = vrot.slane %v4478, 3
      %v4519 = vsel %vm3759, %v4516, %v4518
      %v4533 = vadd.f32 %v4448, %v4495
      %v4534 = vadd.f32 %v4449, %v4497
      %v4535 = vadd.f32 %v4450, %v4499
      %v4536 = vadd.f32 %v4451, %v4501
      %v4537 = vadd.f32 %v4452, %v4503
      %v4538 = vadd.f32 %v4453, %v4505
      %v4539 = vadd.f32 %v4454, %v4507
      %v4540 = vadd.f32 %v4455, %v4509
      %v4541 = vadd.f32 %v4456, %v4511
      %v4542 = vadd.f32 %v4457, %v4513
      %v4543 = vadd.f32 %v4458, %v4515
      %v4544 = vadd.f32 %v4459, %v4517
      %v4545 = vadd.f32 %v4460, %v4519
      %v4546 = vlaneseq
      %v4547 = vshrl.u32 %v4546, 7
      %v4548 = vsub.s32 4, %v4547
      %v4549 = vrot.slane %v3537, %v4548
      %v4550 = vmul.f32 %v3514, %v4549
      %v4551 = vmul.f32 %v3515, %v4549
      %v4552 = vmul.f32 %v3516, %v4549
      %v4553 = vmul.f32 %v3517, %v4549
      %v4554 = vmul.f32 %v3518, %v4549
      %v4555 = vmul.f32 %v3519, %v4549
      %v4556 = vmul.f32 %v3520, %v4549
      %v4557 = vmul.f32 %v3521, %v4549
      %v4558 = vmul.f32 %v3522, %v4549
      %v4559 = vmul.f32 %v3523, %v4549
      %v4560 = vmul.f32 %v3524, %v4549
      %v4561 = vmul.f32 %v3525, %v4549
      %v4562 = vmul.f32 %v3526, %v4549
      %v4563 = vmul.f32 %v3527, %v4549
      %v4578 = vrot.slane %v4550, 4
      %v4579 = vrot.slane %v4551, 4
      %v4580 = vsel %vm3845, %v4578, %v4579
      %v4581 = vrot.slane %v4552, 4
      %v4582 = vsel %vm3845, %v4579, %v4581
      %v4583 = vrot.slane %v4553, 4
      %v4584 = vsel %vm3845, %v4581, %v4583
      %v4585 = vrot.slane %v4554, 4
      %v4586 = vsel %vm3845, %v4583, %v4585
      %v4587 = vrot.slane %v4555, 4
      %v4588 = vsel %vm3845, %v4585, %v4587
      %v4589 = vrot.slane %v4556, 4
      %v4590 = vsel %vm3845, %v4587, %v4589
      %v4591 = vrot.slane %v4557, 4
      %v4592 = vsel %vm3845, %v4589, %v4591
      %v4593 = vrot.slane %v4558, 4
      %v4594 = vsel %vm3845, %v4591, %v4593
      %v4595 = vrot.slane %v4559, 4
      %v4596 = vsel %vm3845, %v4593, %v4595
      %v4597 = vrot.slane %v4560, 4
      %v4598 = vsel %vm3845, %v4595, %v4597
      %v4599 = vrot.slane %v4561, 4
      %v4600 = vsel %vm3845, %v4597, %v4599
      %v4601 = vrot.slane %v4562, 4
      %v4602 = vsel %vm3845, %v4599, %v4601
      %v4603 = vrot.slane %v4563, 4
      %v4604 = vsel %vm3845, %v4601, %v4603
      %v4618 = vadd.f32 %v4533, %v4580
      %v4619 = vadd.f32 %v4534, %v4582
      %v4620 = vadd.f32 %v4535, %v4584
      %v4621 = vadd.f32 %v4536, %v4586
      %v4622 = vadd.f32 %v4537, %v4588
      %v4623 = vadd.f32 %v4538, %v4590
      %v4624 = vadd.f32 %v4539, %v4592
      %v4625 = vadd.f32 %v4540, %v4594
      %v4626 = vadd.f32 %v4541, %v4596
      %v4627 = vadd.f32 %v4542, %v4598
      %v4628 = vadd.f32 %v4543, %v4600
      %v4629 = vadd.f32 %v4544, %v4602
      %v4630 = vadd.f32 %v4545, %v4604
      %v4631 = vlaneseq
      %v4632 = vshrl.u32 %v4631, 7
      %v4633 = vsub.s32 0, %v4632
      %v4634 = vrot.slane %v3539, %v4633
      %v4635 = vmul.f32 %v3516, %v4634
      %v4636 = vmul.f32 %v3517, %v4634
      %v4637 = vmul.f32 %v3518, %v4634
      %v4638 = vmul.f32 %v3519, %v4634
      %v4639 = vmul.f32 %v3520, %v4634
      %v4640 = vmul.f32 %v3521, %v4634
      %v4641 = vmul.f32 %v3522, %v4634
      %v4642 = vmul.f32 %v3523, %v4634
      %v4643 = vmul.f32 %v3524, %v4634
      %v4644 = vmul.f32 %v3525, %v4634
      %v4645 = vmul.f32 %v3526, %v4634
      %v4646 = vmul.f32 %v3527, %v4634
      %v4647 = vmul.f32 %v3528, %v4634
      %v4648 = vadd.f32 %v4618, %v4635
      %v4649 = vadd.f32 %v4619, %v4636
      %v4650 = vadd.f32 %v4620, %v4637
      %v4651 = vadd.f32 %v4621, %v4638
      %v4652 = vadd.f32 %v4622, %v4639
      %v4653 = vadd.f32 %v4623, %v4640
      %v4654 = vadd.f32 %v4624, %v4641
      %v4655 = vadd.f32 %v4625, %v4642
      %v4656 = vadd.f32 %v4626, %v4643
      %v4657 = vadd.f32 %v4627, %v4644
      %v4658 = vadd.f32 %v4628, %v4645
      %v4659 = vadd.f32 %v4629, %v4646
      %v4660 = vadd.f32 %v4630, %v4647
      %v4661 = vlaneseq
      %v4662 = vshrl.u32 %v4661, 7
      %v4663 = vsub.s32 1, %v4662
      %v4664 = vrot.slane %v3539, %v4663
      %v4665 = vmul.f32 %v3516, %v4664
      %v4666 = vmul.f32 %v3517, %v4664
      %v4667 = vmul.f32 %v3518, %v4664
      %v4668 = vmul.f32 %v3519, %v4664
      %v4669 = vmul.f32 %v3520, %v4664
      %v4670 = vmul.f32 %v3521, %v4664
      %v4671 = vmul.f32 %v3522, %v4664
      %v4672 = vmul.f32 %v3523, %v4664
      %v4673 = vmul.f32 %v3524, %v4664
      %v4674 = vmul.f32 %v3525, %v4664
      %v4675 = vmul.f32 %v3526, %v4664
      %v4676 = vmul.f32 %v3527, %v4664
      %v4677 = vmul.f32 %v3528, %v4664
      %v4691 = vrot.slane %v4665, 1
      %v4692 = vrot.slane %v4666, 1
      %v4693 = vsel %vm3589, %v4691, %v4692
      %v4694 = vrot.slane %v4667, 1
      %v4695 = vsel %vm3589, %v4692, %v4694
      %v4696 = vrot.slane %v4668, 1
      %v4697 = vsel %vm3589, %v4694, %v4696
      %v4698 = vrot.slane %v4669, 1
      %v4699 = vsel %vm3589, %v4696, %v4698
      %v4700 = vrot.slane %v4670, 1
      %v4701 = vsel %vm3589, %v4698, %v4700
      %v4702 = vrot.slane %v4671, 1
      %v4703 = vsel %vm3589, %v4700, %v4702
      %v4704 = vrot.slane %v4672, 1
      %v4705 = vsel %vm3589, %v4702, %v4704
      %v4706 = vrot.slane %v4673, 1
      %v4707 = vsel %vm3589, %v4704, %v4706
      %v4708 = vrot.slane %v4674, 1
      %v4709 = vsel %vm3589, %v4706, %v4708
      %v4710 = vrot.slane %v4675, 1
      %v4711 = vsel %vm3589, %v4708, %v4710
      %v4712 = vrot.slane %v4676, 1
      %v4713 = vsel %vm3589, %v4710, %v4712
      %v4714 = vrot.slane %v4677, 1
      %v4715 = vsel %vm3589, %v4712, %v4714
      %v4729 = vadd.f32 %v4648, %v4693
      %v4730 = vadd.f32 %v4649, %v4695
      %v4731 = vadd.f32 %v4650, %v4697
      %v4732 = vadd.f32 %v4651, %v4699
      %v4733 = vadd.f32 %v4652, %v4701
      %v4734 = vadd.f32 %v4653, %v4703
      %v4735 = vadd.f32 %v4654, %v4705
      %v4736 = vadd.f32 %v4655, %v4707
      %v4737 = vadd.f32 %v4656, %v4709
      %v4738 = vadd.f32 %v4657, %v4711
      %v4739 = vadd.f32 %v4658, %v4713
      %v4740 = vadd.f32 %v4659, %v4715
      %v4741 = vadd.f32 %v4660, %v4714
      %v4742 = vlaneseq
      %v4743 = vshrl.u32 %v4742, 7
      %v4744 = vsub.s32 2, %v4743
      %v4745 = vrot.slane %v3539, %v4744
      %v4746 = vmul.f32 %v3516, %v4745
      %v4747 = vmul.f32 %v3517, %v4745
      %v4748 = vmul.f32 %v3518, %v4745
      %v4749 = vmul.f32 %v3519, %v4745
      %v4750 = vmul.f32 %v3520, %v4745
      %v4751 = vmul.f32 %v3521, %v4745
      %v4752 = vmul.f32 %v3522, %v4745
      %v4753 = vmul.f32 %v3523, %v4745
      %v4754 = vmul.f32 %v3524, %v4745
      %v4755 = vmul.f32 %v3525, %v4745
      %v4756 = vmul.f32 %v3526, %v4745
      %v4757 = vmul.f32 %v3527, %v4745
      %v4758 = vmul.f32 %v3528, %v4745
      %v4759 = vmul.f32 %v3529, %v4745
      %v4774 = vrot.slane %v4746, 2
      %v4775 = vrot.slane %v4747, 2
      %v4776 = vsel %vm3673, %v4774, %v4775
      %v4777 = vrot.slane %v4748, 2
      %v4778 = vsel %vm3673, %v4775, %v4777
      %v4779 = vrot.slane %v4749, 2
      %v4780 = vsel %vm3673, %v4777, %v4779
      %v4781 = vrot.slane %v4750, 2
      %v4782 = vsel %vm3673, %v4779, %v4781
      %v4783 = vrot.slane %v4751, 2
      %v4784 = vsel %vm3673, %v4781, %v4783
      %v4785 = vrot.slane %v4752, 2
      %v4786 = vsel %vm3673, %v4783, %v4785
      %v4787 = vrot.slane %v4753, 2
      %v4788 = vsel %vm3673, %v4785, %v4787
      %v4789 = vrot.slane %v4754, 2
      %v4790 = vsel %vm3673, %v4787, %v4789
      %v4791 = vrot.slane %v4755, 2
      %v4792 = vsel %vm3673, %v4789, %v4791
      %v4793 = vrot.slane %v4756, 2
      %v4794 = vsel %vm3673, %v4791, %v4793
      %v4795 = vrot.slane %v4757, 2
      %v4796 = vsel %vm3673, %v4793, %v4795
      %v4797 = vrot.slane %v4758, 2
      %v4798 = vsel %vm3673, %v4795, %v4797
      %v4799 = vrot.slane %v4759, 2
      %v4800 = vsel %vm3673, %v4797, %v4799
      %v4814 = vadd.f32 %v4729, %v4776
      %v4815 = vadd.f32 %v4730, %v4778
      %v4816 = vadd.f32 %v4731, %v4780
      %v4817 = vadd.f32 %v4732, %v4782
      %v4818 = vadd.f32 %v4733, %v4784
      %v4819 = vadd.f32 %v4734, %v4786
      %v4820 = vadd.f32 %v4735, %v4788
      %v4821 = vadd.f32 %v4736, %v4790
      %v4822 = vadd.f32 %v4737, %v4792
      %v4823 = vadd.f32 %v4738, %v4794
      %v4824 = vadd.f32 %v4739, %v4796
      %v4825 = vadd.f32 %v4740, %v4798
      %v4826 = vadd.f32 %v4741, %v4800
      %v4827 = vlaneseq
      %v4828 = vshrl.u32 %v4827, 7
      %v4829 = vsub.s32 3, %v4828
      %v4830 = vrot.slane %v3539, %v4829
      %v4831 = vmul.f32 %v3516, %v4830
      %v4832 = vmul.f32 %v3517, %v4830
      %v4833 = vmul.f32 %v3518, %v4830
      %v4834 = vmul.f32 %v3519, %v4830
      %v4835 = vmul.f32 %v3520, %v4830
      %v4836 = vmul.f32 %v3521, %v4830
      %v4837 = vmul.f32 %v3522, %v4830
      %v4838 = vmul.f32 %v3523, %v4830
      %v4839 = vmul.f32 %v3524, %v4830
      %v4840 = vmul.f32 %v3525, %v4830
      %v4841 = vmul.f32 %v3526, %v4830
      %v4842 = vmul.f32 %v3527, %v4830
      %v4843 = vmul.f32 %v3528, %v4830
      %v4844 = vmul.f32 %v3529, %v4830
      %v4859 = vrot.slane %v4831, 3
      %v4860 = vrot.slane %v4832, 3
      %v4861 = vsel %vm3759, %v4859, %v4860
      %v4862 = vrot.slane %v4833, 3
      %v4863 = vsel %vm3759, %v4860, %v4862
      %v4864 = vrot.slane %v4834, 3
      %v4865 = vsel %vm3759, %v4862, %v4864
      %v4866 = vrot.slane %v4835, 3
      %v4867 = vsel %vm3759, %v4864, %v4866
      %v4868 = vrot.slane %v4836, 3
      %v4869 = vsel %vm3759, %v4866, %v4868
      %v4870 = vrot.slane %v4837, 3
      %v4871 = vsel %vm3759, %v4868, %v4870
      %v4872 = vrot.slane %v4838, 3
      %v4873 = vsel %vm3759, %v4870, %v4872
      %v4874 = vrot.slane %v4839, 3
      %v4875 = vsel %vm3759, %v4872, %v4874
      %v4876 = vrot.slane %v4840, 3
      %v4877 = vsel %vm3759, %v4874, %v4876
      %v4878 = vrot.slane %v4841, 3
      %v4879 = vsel %vm3759, %v4876, %v4878
      %v4880 = vrot.slane %v4842, 3
      %v4881 = vsel %vm3759, %v4878, %v4880
      %v4882 = vrot.slane %v4843, 3
      %v4883 = vsel %vm3759, %v4880, %v4882
      %v4884 = vrot.slane %v4844, 3
      %v4885 = vsel %vm3759, %v4882, %v4884
      %v4899 = vadd.f32 %v4814, %v4861
      %v4900 = vadd.f32 %v4815, %v4863
      %v4901 = vadd.f32 %v4816, %v4865
      %v4902 = vadd.f32 %v4817, %v4867
      %v4903 = vadd.f32 %v4818, %v4869
      %v4904 = vadd.f32 %v4819, %v4871
      %v4905 = vadd.f32 %v4820, %v4873
      %v4906 = vadd.f32 %v4821, %v4875
      %v4907 = vadd.f32 %v4822, %v4877
      %v4908 = vadd.f32 %v4823, %v4879
      %v4909 = vadd.f32 %v4824, %v4881
      %v4910 = vadd.f32 %v4825, %v4883
      %v4911 = vadd.f32 %v4826, %v4885
      %v4912 = vlaneseq
      %v4913 = vshrl.u32 %v4912, 7
      %v4914 = vsub.s32 4, %v4913
      %v4915 = vrot.slane %v3539, %v4914
      %v4916 = vmul.f32 %v3516, %v4915
      %v4917 = vmul.f32 %v3517, %v4915
      %v4918 = vmul.f32 %v3518, %v4915
      %v4919 = vmul.f32 %v3519, %v4915
      %v4920 = vmul.f32 %v3520, %v4915
      %v4921 = vmul.f32 %v3521, %v4915
      %v4922 = vmul.f32 %v3522, %v4915
      %v4923 = vmul.f32 %v3523, %v4915
      %v4924 = vmul.f32 %v3524, %v4915
      %v4925 = vmul.f32 %v3525, %v4915
      %v4926 = vmul.f32 %v3526, %v4915
      %v4927 = vmul.f32 %v3527, %v4915
      %v4928 = vmul.f32 %v3528, %v4915
      %v4929 = vmul.f32 %v3529, %v4915
      %v4944 = vrot.slane %v4916, 4
      %v4945 = vrot.slane %v4917, 4
      %v4946 = vsel %vm3845, %v4944, %v4945
      %v4947 = vrot.slane %v4918, 4
      %v4948 = vsel %vm3845, %v4945, %v4947
      %v4949 = vrot.slane %v4919, 4
      %v4950 = vsel %vm3845, %v4947, %v4949
      %v4951 = vrot.slane %v4920, 4
      %v4952 = vsel %vm3845, %v4949, %v4951
      %v4953 = vrot.slane %v4921, 4
      %v4954 = vsel %vm3845, %v4951, %v4953
      %v4955 = vrot.slane %v4922, 4
      %v4956 = vsel %vm3845, %v4953, %v4955
      %v4957 = vrot.slane %v4923, 4
      %v4958 = vsel %vm3845, %v4955, %v4957
      %v4959 = vrot.slane %v4924, 4
      %v4960 = vsel %vm3845, %v4957, %v4959
      %v4961 = vrot.slane %v4925, 4
      %v4962 = vsel %vm3845, %v4959, %v4961
      %v4963 = vrot.slane %v4926, 4
      %v4964 = vsel %vm3845, %v4961, %v4963
      %v4965 = vrot.slane %v4927, 4
      %v4966 = vsel %vm3845, %v4963, %v4965
      %v4967 = vrot.slane %v4928, 4
      %v4968 = vsel %vm3845, %v4965, %v4967
      %v4969 = vrot.slane %v4929, 4
      %v4970 = vsel %vm3845, %v4967, %v4969
      %v4984 = vadd.f32 %v4899, %v4946
      %v4985 = vadd.f32 %v4900, %v4948
      %v4986 = vadd.f32 %v4901, %v4950
      %v4987 = vadd.f32 %v4902, %v4952
      %v4988 = vadd.f32 %v4903, %v4954
      %v4989 = vadd.f32 %v4904, %v4956
      %v4990 = vadd.f32 %v4905, %v4958
      %v4991 = vadd.f32 %v4906, %v4960
      %v4992 = vadd.f32 %v4907, %v4962
      %v4993 = vadd.f32 %v4908, %v4964
      %v4994 = vadd.f32 %v4909, %v4966
      %v4995 = vadd.f32 %v4910, %v4968
      %v4996 = vadd.f32 %v4911, %v4970
      %v4997 = vlaneseq
      %v4998 = vshrl.u32 %v4997, 7
      %v4999 = vsub.s32 0, %v4998
      %v5000 = vrot.slane %v3541, %v4999
      %v5001 = vmul.f32 %v3518, %v5000
      %v5002 = vmul.f32 %v3519, %v5000
      %v5003 = vmul.f32 %v3520, %v5000
      %v5004 = vmul.f32 %v3521, %v5000
      %v5005 = vmul.f32 %v3522, %v5000
      %v5006 = vmul.f32 %v3523, %v5000
      %v5007 = vmul.f32 %v3524, %v5000
      %v5008 = vmul.f32 %v3525, %v5000
      %v5009 = vmul.f32 %v3526, %v5000
      %v5010 = vmul.f32 %v3527, %v5000
      %v5011 = vmul.f32 %v3528, %v5000
      %v5012 = vmul.f32 %v3529, %v5000
      %v5013 = vmul.f32 %v3530, %v5000
      %v5014 = vadd.f32 %v4984, %v5001
      %v5015 = vadd.f32 %v4985, %v5002
      %v5016 = vadd.f32 %v4986, %v5003
      %v5017 = vadd.f32 %v4987, %v5004
      %v5018 = vadd.f32 %v4988, %v5005
      %v5019 = vadd.f32 %v4989, %v5006
      %v5020 = vadd.f32 %v4990, %v5007
      %v5021 = vadd.f32 %v4991, %v5008
      %v5022 = vadd.f32 %v4992, %v5009
      %v5023 = vadd.f32 %v4993, %v5010
      %v5024 = vadd.f32 %v4994, %v5011
      %v5025 = vadd.f32 %v4995, %v5012
      %v5026 = vadd.f32 %v4996, %v5013
      %v5027 = vlaneseq
      %v5028 = vshrl.u32 %v5027, 7
      %v5029 = vsub.s32 1, %v5028
      %v5030 = vrot.slane %v3541, %v5029
      %v5031 = vmul.f32 %v3518, %v5030
      %v5032 = vmul.f32 %v3519, %v5030
      %v5033 = vmul.f32 %v3520, %v5030
      %v5034 = vmul.f32 %v3521, %v5030
      %v5035 = vmul.f32 %v3522, %v5030
      %v5036 = vmul.f32 %v3523, %v5030
      %v5037 = vmul.f32 %v3524, %v5030
      %v5038 = vmul.f32 %v3525, %v5030
      %v5039 = vmul.f32 %v3526, %v5030
      %v5040 = vmul.f32 %v3527, %v5030
      %v5041 = vmul.f32 %v3528, %v5030
      %v5042 = vmul.f32 %v3529, %v5030
      %v5043 = vmul.f32 %v3530, %v5030
      %v5057 = vrot.slane %v5031, 1
      %v5058 = vrot.slane %v5032, 1
      %v5059 = vsel %vm3589, %v5057, %v5058
      %v5060 = vrot.slane %v5033, 1
      %v5061 = vsel %vm3589, %v5058, %v5060
      %v5062 = vrot.slane %v5034, 1
      %v5063 = vsel %vm3589, %v5060, %v5062
      %v5064 = vrot.slane %v5035, 1
      %v5065 = vsel %vm3589, %v5062, %v5064
      %v5066 = vrot.slane %v5036, 1
      %v5067 = vsel %vm3589, %v5064, %v5066
      %v5068 = vrot.slane %v5037, 1
      %v5069 = vsel %vm3589, %v5066, %v5068
      %v5070 = vrot.slane %v5038, 1
      %v5071 = vsel %vm3589, %v5068, %v5070
      %v5072 = vrot.slane %v5039, 1
      %v5073 = vsel %vm3589, %v5070, %v5072
      %v5074 = vrot.slane %v5040, 1
      %v5075 = vsel %vm3589, %v5072, %v5074
      %v5076 = vrot.slane %v5041, 1
      %v5077 = vsel %vm3589, %v5074, %v5076
      %v5078 = vrot.slane %v5042, 1
      %v5079 = vsel %vm3589, %v5076, %v5078
      %v5080 = vrot.slane %v5043, 1
      %v5081 = vsel %vm3589, %v5078, %v5080
      %v5095 = vadd.f32 %v5014, %v5059
      %v5096 = vadd.f32 %v5015, %v5061
      %v5097 = vadd.f32 %v5016, %v5063
      %v5098 = vadd.f32 %v5017, %v5065
      %v5099 = vadd.f32 %v5018, %v5067
      %v5100 = vadd.f32 %v5019, %v5069
      %v5101 = vadd.f32 %v5020, %v5071
      %v5102 = vadd.f32 %v5021, %v5073
      %v5103 = vadd.f32 %v5022, %v5075
      %v5104 = vadd.f32 %v5023, %v5077
      %v5105 = vadd.f32 %v5024, %v5079
      %v5106 = vadd.f32 %v5025, %v5081
      %v5107 = vadd.f32 %v5026, %v5080
      %v5108 = vlaneseq
      %v5109 = vshrl.u32 %v5108, 7
      %v5110 = vsub.s32 2, %v5109
      %v5111 = vrot.slane %v3541, %v5110
      %v5112 = vmul.f32 %v3518, %v5111
      %v5113 = vmul.f32 %v3519, %v5111
      %v5114 = vmul.f32 %v3520, %v5111
      %v5115 = vmul.f32 %v3521, %v5111
      %v5116 = vmul.f32 %v3522, %v5111
      %v5117 = vmul.f32 %v3523, %v5111
      %v5118 = vmul.f32 %v3524, %v5111
      %v5119 = vmul.f32 %v3525, %v5111
      %v5120 = vmul.f32 %v3526, %v5111
      %v5121 = vmul.f32 %v3527, %v5111
      %v5122 = vmul.f32 %v3528, %v5111
      %v5123 = vmul.f32 %v3529, %v5111
      %v5124 = vmul.f32 %v3530, %v5111
      %v5125 = vmul.f32 %v3531, %v5111
      %v5140 = vrot.slane %v5112, 2
      %v5141 = vrot.slane %v5113, 2
      %v5142 = vsel %vm3673, %v5140, %v5141
      %v5143 = vrot.slane %v5114, 2
      %v5144 = vsel %vm3673, %v5141, %v5143
      %v5145 = vrot.slane %v5115, 2
      %v5146 = vsel %vm3673, %v5143, %v5145
      %v5147 = vrot.slane %v5116, 2
      %v5148 = vsel %vm3673, %v5145, %v5147
      %v5149 = vrot.slane %v5117, 2
      %v5150 = vsel %vm3673, %v5147, %v5149
      %v5151 = vrot.slane %v5118, 2
      %v5152 = vsel %vm3673, %v5149, %v5151
      %v5153 = vrot.slane %v5119, 2
      %v5154 = vsel %vm3673, %v5151, %v5153
      %v5155 = vrot.slane %v5120, 2
      %v5156 = vsel %vm3673, %v5153, %v5155
      %v5157 = vrot.slane %v5121, 2
      %v5158 = vsel %vm3673, %v5155, %v5157
      %v5159 = vrot.slane %v5122, 2
      %v5160 = vsel %vm3673, %v5157, %v5159
      %v5161 = vrot.slane %v5123, 2
      %v5162 = vsel %vm3673, %v5159, %v5161
      %v5163 = vrot.slane %v5124, 2
      %v5164 = vsel %vm3673, %v5161, %v5163
      %v5165 = vrot.slane %v5125, 2
      %v5166 = vsel %vm3673, %v5163, %v5165
      %v5180 = vadd.f32 %v5095, %v5142
      %v5181 = vadd.f32 %v5096, %v5144
      %v5182 = vadd.f32 %v5097, %v5146
      %v5183 = vadd.f32 %v5098, %v5148
      %v5184 = vadd.f32 %v5099, %v5150
      %v5185 = vadd.f32 %v5100, %v5152
      %v5186 = vadd.f32 %v5101, %v5154
      %v5187 = vadd.f32 %v5102, %v5156
      %v5188 = vadd.f32 %v5103, %v5158
      %v5189 = vadd.f32 %v5104, %v5160
      %v5190 = vadd.f32 %v5105, %v5162
      %v5191 = vadd.f32 %v5106, %v5164
      %v5192 = vadd.f32 %v5107, %v5166
      %v5193 = vlaneseq
      %v5194 = vshrl.u32 %v5193, 7
      %v5195 = vsub.s32 3, %v5194
      %v5196 = vrot.slane %v3541, %v5195
      %v5197 = vmul.f32 %v3518, %v5196
      %v5198 = vmul.f32 %v3519, %v5196
      %v5199 = vmul.f32 %v3520, %v5196
      %v5200 = vmul.f32 %v3521, %v5196
      %v5201 = vmul.f32 %v3522, %v5196
      %v5202 = vmul.f32 %v3523, %v5196
      %v5203 = vmul.f32 %v3524, %v5196
      %v5204 = vmul.f32 %v3525, %v5196
      %v5205 = vmul.f32 %v3526, %v5196
      %v5206 = vmul.f32 %v3527, %v5196
      %v5207 = vmul.f32 %v3528, %v5196
      %v5208 = vmul.f32 %v3529, %v5196
      %v5209 = vmul.f32 %v3530, %v5196
      %v5210 = vmul.f32 %v3531, %v5196
      %v5225 = vrot.slane %v5197, 3
      %v5226 = vrot.slane %v5198, 3
      %v5227 = vsel %vm3759, %v5225, %v5226
      %v5228 = vrot.slane %v5199, 3
      %v5229 = vsel %vm3759, %v5226, %v5228
      %v5230 = vrot.slane %v5200, 3
      %v5231 = vsel %vm3759, %v5228, %v5230
      %v5232 = vrot.slane %v5201, 3
      %v5233 = vsel %vm3759, %v5230, %v5232
      %v5234 = vrot.slane %v5202, 3
      %v5235 = vsel %vm3759, %v5232, %v5234
      %v5236 = vrot.slane %v5203, 3
      %v5237 = vsel %vm3759, %v5234, %v5236
      %v5238 = vrot.slane %v5204, 3
      %v5239 = vsel %vm3759, %v5236, %v5238
      %v5240 = vrot.slane %v5205, 3
      %v5241 = vsel %vm3759, %v5238, %v5240
      %v5242 = vrot.slane %v5206, 3
      %v5243 = vsel %vm3759, %v5240, %v5242
      %v5244 = vrot.slane %v5207, 3
      %v5245 = vsel %vm3759, %v5242, %v5244
      %v5246 = vrot.slane %v5208, 3
      %v5247 = vsel %vm3759, %v5244, %v5246
      %v5248 = vrot.slane %v5209, 3
      %v5249 = vsel %vm3759, %v5246, %v5248
      %v5250 = vrot.slane %v5210, 3
      %v5251 = vsel %vm3759, %v5248, %v5250
      %v5265 = vadd.f32 %v5180, %v5227
      %v5266 = vadd.f32 %v5181, %v5229
      %v5267 = vadd.f32 %v5182, %v5231
      %v5268 = vadd.f32 %v5183, %v5233
      %v5269 = vadd.f32 %v5184, %v5235
      %v5270 = vadd.f32 %v5185, %v5237
      %v5271 = vadd.f32 %v5186, %v5239
      %v5272 = vadd.f32 %v5187, %v5241
      %v5273 = vadd.f32 %v5188, %v5243
      %v5274 = vadd.f32 %v5189, %v5245
      %v5275 = vadd.f32 %v5190, %v5247
      %v5276 = vadd.f32 %v5191, %v5249
      %v5277 = vadd.f32 %v5192, %v5251
      %v5278 = vlaneseq
      %v5279 = vshrl.u32 %v5278, 7
      %v5280 = vsub.s32 4, %v5279
      %v5281 = vrot.slane %v3541, %v5280
      %v5282 = vmul.f32 %v3518, %v5281
      %v5283 = vmul.f32 %v3519, %v5281
      %v5284 = vmul.f32 %v3520, %v5281
      %v5285 = vmul.f32 %v3521, %v5281
      %v5286 = vmul.f32 %v3522, %v5281
      %v5287 = vmul.f32 %v3523, %v5281
      %v5288 = vmul.f32 %v3524, %v5281
      %v5289 = vmul.f32 %v3525, %v5281
      %v5290 = vmul.f32 %v3526, %v5281
      %v5291 = vmul.f32 %v3527, %v5281
      %v5292 = vmul.f32 %v3528, %v5281
      %v5293 = vmul.f32 %v3529, %v5281
      %v5294 = vmul.f32 %v3530, %v5281
      %v5295 = vmul.f32 %v3531, %v5281
      %v5310 = vrot.slane %v5282, 4
      %v5311 = vrot.slane %v5283, 4
      %v5312 = vsel %vm3845, %v5310, %v5311
      %v5313 = vrot.slane %v5284, 4
      %v5314 = vsel %vm3845, %v5311, %v5313
      %v5315 = vrot.slane %v5285, 4
      %v5316 = vsel %vm3845, %v5313, %v5315
      %v5317 = vrot.slane %v5286, 4
      %v5318 = vsel %vm3845, %v5315, %v5317
      %v5319 = vrot.slane %v5287, 4
      %v5320 = vsel %vm3845, %v5317, %v5319
      %v5321 = vrot.slane %v5288, 4
      %v5322 = vsel %vm3845, %v5319, %v5321
      %v5323 = vrot.slane %v5289, 4
      %v5324 = vsel %vm3845, %v5321, %v5323
      %v5325 = vrot.slane %v5290, 4
      %v5326 = vsel %vm3845, %v5323, %v5325
      %v5327 = vrot.slane %v5291, 4
      %v5328 = vsel %vm3845, %v5325, %v5327
      %v5329 = vrot.slane %v5292, 4
      %v5330 = vsel %vm3845, %v5327, %v5329
      %v5331 = vrot.slane %v5293, 4
      %v5332 = vsel %vm3845, %v5329, %v5331
      %v5333 = vrot.slane %v5294, 4
      %v5334 = vsel %vm3845, %v5331, %v5333
      %v5335 = vrot.slane %v5295, 4
      %v5336 = vsel %vm3845, %v5333, %v5335
      %v5350 = vadd.f32 %v5265, %v5312
      %v5351 = vadd.f32 %v5266, %v5314
      %v5352 = vadd.f32 %v5267, %v5316
      %v5353 = vadd.f32 %v5268, %v5318
      %v5354 = vadd.f32 %v5269, %v5320
      %v5355 = vadd.f32 %v5270, %v5322
      %v5356 = vadd.f32 %v5271, %v5324
      %v5357 = vadd.f32 %v5272, %v5326
      %v5358 = vadd.f32 %v5273, %v5328
      %v5359 = vadd.f32 %v5274, %v5330
      %v5360 = vadd.f32 %v5275, %v5332
      %v5361 = vadd.f32 %v5276, %v5334
      %v5362 = vadd.f32 %v5277, %v5336
      %v5363 = vpack.c.bf16 %v5351, %v5350
      %v5364 = vpack.c.bf16 %v5353, %v5352
      %v5365 = vpack.c.bf16 %v5355, %v5354
      %v5366 = vpack.c.bf16 %v5357, %v5356
      %v5367 = vpack.c.bf16 %v5359, %v5358
      %v5368 = vpack.c.bf16 %v5361, %v5360
      %v5369 = vpack.c.bf16 %v5362, %v5362
      %v5370 = vld [vmem:[%s2] sm:$0xf]
      %v5371 = vld [vmem:[%s2 + $0x4] sm:$0xf]
      %v5372 = vld [vmem:[%s2 + $0x8] sm:$0xf]
      %v5373 = vld [vmem:[%s2 + $0xc] sm:$0xf]
      %v5374 = vld [vmem:[%s2 + $0x10] sm:$0xf]
      %v5375 = vld [vmem:[%s2 + $0x14] sm:$0xf]
      %v5376 = vld [vmem:[%s2 + $0x18] sm:$0xf]
      %v5377 = vld [vmem:[%s2 + $0x1c] sm:$0xf]
      %v5378 = vld [vmem:[%s2 + $0x20] sm:$0xf]
      %v5379 = vld [vmem:[%s2 + $0x24] sm:$0xf]
      %v5380 = vld [vmem:[%s2 + $0x28] sm:$0xf]
      %v5381 = vld [vmem:[%s2 + $0x2c] sm:$0xf]
      %v5382 = vld [vmem:[%s2 + $0x30] sm:$0xf]
      %v5383 = vld [vmem:[%s2 + $0x34] sm:$0xf]
      %v5384 = vld [vmem:[%s2 + $0x38] sm:$0xf]
      %v5385 = vld [vmem:[%s2 + $0x3c] sm:$0xf]
      %v5402 = vunpack.c.l.b16 %v5370
      %v5403 = vunpack.c.l.b16 %v5371
      %v5404 = vunpack.c.l.b16 %v5372
      %v5405 = vunpack.c.l.b16 %v5373
      %v5406 = vunpack.c.l.b16 %v5374
      %v5407 = vunpack.c.l.b16 %v5375
      %v5408 = vunpack.c.l.b16 %v5376
      %v5409 = vunpack.c.l.b16 %v5377
      %v5410 = vunpack.c.l.b16 %v5378
      %v5411 = vunpack.c.l.b16 %v5379
      %v5412 = vunpack.c.l.b16 %v5380
      %v5413 = vunpack.c.l.b16 %v5381
      %v5414 = vunpack.c.l.b16 %v5382
      %v5415 = vunpack.c.l.b16 %v5383
      %v5416 = vunpack.c.l.b16 %v5384
      %v5417 = vunpack.c.l.b16 %v5385
      %v5418 = vpack.c.b16 %v5403, %v5402
      %v5419 = vpack.c.b16 %v5405, %v5404
      %v5420 = vpack.c.b16 %v5407, %v5406
      %v5421 = vpack.c.b16 %v5409, %v5408
      %v5422 = vpack.c.b16 %v5411, %v5410
      %v5423 = vpack.c.b16 %v5413, %v5412
      %v5424 = vpack.c.b16 %v5415, %v5414
      %v5425 = vpack.c.b16 %v5417, %v5416
      %5434 = vmatprep.subr.bf16.mxu0 0
      %5435 = vmatpush1.bf16.msra.mxu0 %v5418
      %5436 = vmatprep.subr.bf16.mxu0 0
      %5437 = vmatpush1.bf16.msra.mxu0 %v5419
      %5438 = vmatprep.subr.bf16.mxu0 0
      %5439 = vmatpush1.bf16.msra.mxu0 %v5420
      %5440 = vmatprep.subr.bf16.mxu0 0
      %5441 = vmatpush1.bf16.msra.mxu0 %v5421
      %5442 = vmatprep.subr.bf16.mxu0 0
      %5443 = vmatpush1.bf16.msra.mxu0 %v5422
      %5444 = vmatprep.subr.bf16.mxu0 0
      %5445 = vmatpush1.bf16.msra.mxu0 %v5423
      %5446 = vmatprep.subr.bf16.mxu0 0
      %5447 = vmatpush1.bf16.msra.mxu0 %v5424
      %5448 = vmatprep.subr.bf16.mxu0 0
      %5449 = vmatpush1.bf16.msra.mxu0 %v5425
      %5450 = vmatprep.subr.bf16.mxu0 0
      %5451 = vmatpush1.bf16.msra.mxu0 0
      %5452 = vmatprep.subr.bf16.mxu0 0
      %5453 = vmatpush1.bf16.msra.mxu0 0
      %5454 = vmatprep.subr.bf16.mxu0 0
      %5455 = vmatpush1.bf16.msra.mxu0 0
      %5456 = vmatprep.subr.bf16.mxu0 0
      %5457 = vmatpush1.bf16.msra.mxu0 0
      %5458 = vmatprep.subr.bf16.mxu0 0
      %5459 = vmatpush1.bf16.msra.mxu0 0
      %5460 = vmatprep.subr.bf16.mxu0 0
      %5461 = vmatpush1.bf16.msra.mxu0 0
      %5462 = vmatprep.subr.bf16.mxu0 0
      %5463 = vmatpush1.bf16.msra.mxu0 0
      %5464 = vmatprep.subr.bf16.mxu0 0
      %5465 = vmatpush1.bf16.msra.mxu0 0
      %5466 = vmatprep.mubr.bf16.mxu0 0
      %5467 = vmatmul.mubr.bf16.gmra.mrb[0].mxu0 %v5363
      %v5468 = vpop.f32.mrb[0].mxu0
      %v5469 = vadd.f32 0.0, %v5468
      %v5470 = vpop.f32.mrb[0].mxu0
      %v5471 = vpop.f32.mrb[0].mxu0
      %v5472 = vadd.f32 0.0, %v5471
      %v5473 = vpop.f32.mrb[0].mxu0
      %5474 = vmatprep.mubr.bf16.mxu0 0
      %5475 = vmatmul.mubr.bf16.gmra.mrb[0].mxu0 %v5364
      %v5476 = vpop.f32.mrb[0].mxu0
      %v5477 = vadd.f32 0.0, %v5476
      %v5478 = vpop.f32.mrb[0].mxu0
      %v5479 = vpop.f32.mrb[0].mxu0
      %v5480 = vadd.f32 0.0, %v5479
      %v5481 = vpop.f32.mrb[0].mxu0
      %5482 = vmatprep.mubr.bf16.mxu0 0
      %5483 = vmatmul.mubr.bf16.gmra.mrb[0].mxu0 %v5365
      %v5484 = vpop.f32.mrb[0].mxu0
      %v5485 = vadd.f32 0.0, %v5484
      %v5486 = vpop.f32.mrb[0].mxu0
      %v5487 = vpop.f32.mrb[0].mxu0
      %v5488 = vadd.f32 0.0, %v5487
      %v5489 = vpop.f32.mrb[0].mxu0
      %5490 = vmatprep.mubr.bf16.mxu0 0
      %5491 = vmatmul.mubr.bf16.gmra.mrb[0].mxu0 %v5366
      %v5492 = vpop.f32.mrb[0].mxu0
      %v5493 = vadd.f32 0.0, %v5492
      %v5494 = vpop.f32.mrb[0].mxu0
      %v5495 = vpop.f32.mrb[0].mxu0
      %v5496 = vadd.f32 0.0, %v5495
      %v5497 = vpop.f32.mrb[0].mxu0
      %5498 = vmatprep.mubr.bf16.mxu0 0
      %5499 = vmatmul.mubr.bf16.gmra.mrb[0].mxu0 %v5367
      %v5500 = vpop.f32.mrb[0].mxu0
      %v5501 = vadd.f32 0.0, %v5500
      %v5502 = vpop.f32.mrb[0].mxu0
      %v5503 = vpop.f32.mrb[0].mxu0
      %v5504 = vadd.f32 0.0, %v5503
      %v5505 = vpop.f32.mrb[0].mxu0
      %5506 = vmatprep.mubr.bf16.mxu0 0
      %5507 = vmatmul.mubr.bf16.gmra.mrb[0].mxu0 %v5368
      %v5508 = vpop.f32.mrb[0].mxu0
      %v5509 = vadd.f32 0.0, %v5508
      %v5510 = vpop.f32.mrb[0].mxu0
      %v5511 = vpop.f32.mrb[0].mxu0
      %v5512 = vadd.f32 0.0, %v5511
      %v5513 = vpop.f32.mrb[0].mxu0
      %5514 = vmatprep.mubr.bf16.mxu0 0
      %5515 = vmatmul.mubr.bf16.gmra.mrb[0].mxu0 %v5369
      %v5516 = vpop.f32.mrb[0].mxu0
      %v5517 = vadd.f32 0.0, %v5516
      %v5518 = vpop.f32.mrb[0].mxu0
      %v5519 = vpop.f32.mrb[0].mxu0
      %v5520 = vpop.f32.mrb[0].mxu0
      %5521 = vdwg.mxu0
      %v5522 = vlaneseq
      %v5523 = vshrl.u32 %v5522, 7
      %v5524 = vsub.s32 2, %v5523
      %v5525 = vrot.slane %v226, %v5524
      %v5526 = vmul.f32 %v5469, %v5525
      %v5527 = vmul.f32 %v5472, %v5525
      %v5528 = vmul.f32 %v5477, %v5525
      %v5529 = vmul.f32 %v5480, %v5525
      %v5530 = vmul.f32 %v5485, %v5525
      %v5531 = vmul.f32 %v5488, %v5525
      %v5532 = vmul.f32 %v5493, %v5525
      %v5533 = vmul.f32 %v5496, %v5525
      %v5534 = vmul.f32 %v5501, %v5525
      %v5535 = vmul.f32 %v5504, %v5525
      %v5536 = vmul.f32 %v5509, %v5525
      %v5537 = vmul.f32 %v5512, %v5525
      %v5538 = vmul.f32 %v5517, %v5525
      %v5539 = vlaneseq
      %v5540 = vshrl.u32 %v5539, 7
      %v5541 = vsub.s32 3, %v5540
      %v5542 = vrot.slane %v226, %v5541
      %v5543 = vadd.f32 %v5526, %v5542
      %v5544 = vadd.f32 %v5527, %v5542
      %v5545 = vadd.f32 %v5528, %v5542
      %v5546 = vadd.f32 %v5529, %v5542
      %v5547 = vadd.f32 %v5530, %v5542
      %v5548 = vadd.f32 %v5531, %v5542
      %v5549 = vadd.f32 %v5532, %v5542
      %v5550 = vadd.f32 %v5533, %v5542
      %v5551 = vadd.f32 %v5534, %v5542
      %v5552 = vadd.f32 %v5535, %v5542
      %v5553 = vadd.f32 %v5536, %v5542
      %v5554 = vadd.f32 %v5537, %v5542
      %v5555 = vadd.f32 %v5538, %v5542
      %v5556 = vmax.f32 %v5543, 0.0
      %v5557 = vmax.f32 %v5544, 0.0
      %v5558 = vmax.f32 %v5545, 0.0
      %v5559 = vmax.f32 %v5546, 0.0
      %v5560 = vmax.f32 %v5547, 0.0
      %v5561 = vmax.f32 %v5548, 0.0
      %v5562 = vmax.f32 %v5549, 0.0
      %v5563 = vmax.f32 %v5550, 0.0
      %v5564 = vmax.f32 %v5551, 0.0
      %v5565 = vmax.f32 %v5552, 0.0
      %v5566 = vmax.f32 %v5553, 0.0
      %v5567 = vmax.f32 %v5554, 0.0
      %v5568 = vmax.f32 %v5555, 0.0
      %v5569 = vpack.c.bf16 %v5557, %v5556
      %v5570 = vpack.c.bf16 %v5559, %v5558
      %v5571 = vpack.c.bf16 %v5561, %v5560
      %v5572 = vpack.c.bf16 %v5563, %v5562
      %v5573 = vpack.c.bf16 %v5565, %v5564
      %v5574 = vpack.c.bf16 %v5567, %v5566
      %v5575 = vpack.c.bf16 %v5568, %v5568
      %v5576 = vld [vmem:[%s3] sm:$0xf]
      %v5577 = vld [vmem:[%s3 + $0x4] sm:$0xf]
      %v5578 = vld [vmem:[%s3 + $0x8] sm:$0xf]
      %v5579 = vld [vmem:[%s3 + $0xc] sm:$0xf]
      %v5580 = vld [vmem:[%s3 + $0x10] sm:$0xf]
      %v5581 = vld [vmem:[%s3 + $0x14] sm:$0xf]
      %v5582 = vld [vmem:[%s3 + $0x18] sm:$0xf]
      %v5583 = vld [vmem:[%s3 + $0x1c] sm:$0xf]
      %v5584 = vld [vmem:[%s3 + $0x20] sm:$0xf]
      %v5585 = vld [vmem:[%s3 + $0x24] sm:$0xf]
      %v5586 = vld [vmem:[%s3 + $0x28] sm:$0xf]
      %v5587 = vld [vmem:[%s3 + $0x2c] sm:$0xf]
      %v5588 = vld [vmem:[%s3 + $0x30] sm:$0xf]
      %v5589 = vld [vmem:[%s3 + $0x34] sm:$0xf]
      %v5590 = vld [vmem:[%s3 + $0x38] sm:$0xf]
      %v5591 = vld [vmem:[%s3 + $0x3c] sm:$0xf]
      %v5592 = vlaneseq
      %v5593 = vshrl.u32 %v5592, 7
      %v5594 = vsub.s32 4, %v5593
      %v5595 = vrot.slane %v226, %v5594
      %v5612 = vunpack.c.l.b16 %v5576
      %v5613 = vunpack.c.l.b16 %v5577
      %v5614 = vunpack.c.l.b16 %v5578
      %v5615 = vunpack.c.l.b16 %v5579
      %v5616 = vunpack.c.l.b16 %v5580
      %v5617 = vunpack.c.l.b16 %v5581
      %v5618 = vunpack.c.l.b16 %v5582
      %v5619 = vunpack.c.l.b16 %v5583
      %v5620 = vunpack.c.l.b16 %v5584
      %v5621 = vunpack.c.l.b16 %v5585
      %v5622 = vunpack.c.l.b16 %v5586
      %v5623 = vunpack.c.l.b16 %v5587
      %v5624 = vunpack.c.l.b16 %v5588
      %v5625 = vunpack.c.l.b16 %v5589
      %v5626 = vunpack.c.l.b16 %v5590
      %v5627 = vunpack.c.l.b16 %v5591
      %v5628 = vpack.c.b16 %v5613, %v5612
      %v5629 = vpack.c.b16 %v5615, %v5614
      %v5630 = vpack.c.b16 %v5617, %v5616
      %v5631 = vpack.c.b16 %v5619, %v5618
      %v5632 = vpack.c.b16 %v5621, %v5620
      %v5633 = vpack.c.b16 %v5623, %v5622
      %v5634 = vpack.c.b16 %v5625, %v5624
      %v5635 = vpack.c.b16 %v5627, %v5626
      %5644 = vmatprep.subr.bf16.mxu0 0
      %5645 = vmatpush1.bf16.msra.mxu0 %v5628
      %5646 = vmatprep.subr.bf16.mxu0 0
      %5647 = vmatpush1.bf16.msra.mxu0 %v5629
      %5648 = vmatprep.subr.bf16.mxu0 0
      %5649 = vmatpush1.bf16.msra.mxu0 %v5630
      %5650 = vmatprep.subr.bf16.mxu0 0
      %5651 = vmatpush1.bf16.msra.mxu0 %v5631
      %5652 = vmatprep.subr.bf16.mxu0 0
      %5653 = vmatpush1.bf16.msra.mxu0 %v5632
      %5654 = vmatprep.subr.bf16.mxu0 0
      %5655 = vmatpush1.bf16.msra.mxu0 %v5633
      %5656 = vmatprep.subr.bf16.mxu0 0
      %5657 = vmatpush1.bf16.msra.mxu0 %v5634
      %5658 = vmatprep.subr.bf16.mxu0 0
      %5659 = vmatpush1.bf16.msra.mxu0 %v5635
      %5660 = vmatprep.subr.bf16.mxu0 0
      %5661 = vmatpush1.bf16.msra.mxu0 0
      %5662 = vmatprep.subr.bf16.mxu0 0
      %5663 = vmatpush1.bf16.msra.mxu0 0
      %5664 = vmatprep.subr.bf16.mxu0 0
      %5665 = vmatpush1.bf16.msra.mxu0 0
      %5666 = vmatprep.subr.bf16.mxu0 0
      %5667 = vmatpush1.bf16.msra.mxu0 0
      %5668 = vmatprep.subr.bf16.mxu0 0
      %5669 = vmatpush1.bf16.msra.mxu0 0
      %5670 = vmatprep.subr.bf16.mxu0 0
      %5671 = vmatpush1.bf16.msra.mxu0 0
      %5672 = vmatprep.subr.bf16.mxu0 0
      %5673 = vmatpush1.bf16.msra.mxu0 0
      %5674 = vmatprep.subr.bf16.mxu0 0
      %5675 = vmatpush1.bf16.msra.mxu0 0
      %5676 = vmatprep.mubr.bf16.mxu0 0
      %5677 = vmatmul.mubr.bf16.gmra.mrb[0].mxu0 %v5569
      %v5678 = vpop.f32.mrb[0].mxu0
      %v5679 = vadd.f32 %v5595, %v5678
      %v5680 = vpop.f32.mrb[0].mxu0
      %v5681 = vpop.f32.mrb[0].mxu0
      %v5682 = vadd.f32 %v5595, %v5681
      %v5683 = vpop.f32.mrb[0].mxu0
      %5684 = vmatprep.mubr.bf16.mxu0 0
      %5685 = vmatmul.mubr.bf16.gmra.mrb[0].mxu0 %v5570
      %v5686 = vpop.f32.mrb[0].mxu0
      %v5687 = vadd.f32 %v5595, %v5686
      %v5688 = vpop.f32.mrb[0].mxu0
      %v5689 = vpop.f32.mrb[0].mxu0
      %v5690 = vadd.f32 %v5595, %v5689
      %v5691 = vpop.f32.mrb[0].mxu0
      %5692 = vmatprep.mubr.bf16.mxu0 0
      %5693 = vmatmul.mubr.bf16.gmra.mrb[0].mxu0 %v5571
      %v5694 = vpop.f32.mrb[0].mxu0
      %v5695 = vadd.f32 %v5595, %v5694
      %v5696 = vpop.f32.mrb[0].mxu0
      %v5697 = vpop.f32.mrb[0].mxu0
      %v5698 = vadd.f32 %v5595, %v5697
      %v5699 = vpop.f32.mrb[0].mxu0
      %5700 = vmatprep.mubr.bf16.mxu0 0
      %5701 = vmatmul.mubr.bf16.gmra.mrb[0].mxu0 %v5572
      %v5702 = vpop.f32.mrb[0].mxu0
      %v5703 = vadd.f32 %v5595, %v5702
      %v5704 = vpop.f32.mrb[0].mxu0
      %v5705 = vpop.f32.mrb[0].mxu0
      %v5706 = vadd.f32 %v5595, %v5705
      %v5707 = vpop.f32.mrb[0].mxu0
      %5708 = vmatprep.mubr.bf16.mxu0 0
      %5709 = vmatmul.mubr.bf16.gmra.mrb[0].mxu0 %v5573
      %v5710 = vpop.f32.mrb[0].mxu0
      %v5711 = vadd.f32 %v5595, %v5710
      %v5712 = vpop.f32.mrb[0].mxu0
      %v5713 = vpop.f32.mrb[0].mxu0
      %v5714 = vadd.f32 %v5595, %v5713
      %v5715 = vpop.f32.mrb[0].mxu0
      %5716 = vmatprep.mubr.bf16.mxu0 0
      %5717 = vmatmul.mubr.bf16.gmra.mrb[0].mxu0 %v5574
      %v5718 = vpop.f32.mrb[0].mxu0
      %v5719 = vadd.f32 %v5595, %v5718
      %v5720 = vpop.f32.mrb[0].mxu0
      %v5721 = vpop.f32.mrb[0].mxu0
      %v5722 = vadd.f32 %v5595, %v5721
      %v5723 = vpop.f32.mrb[0].mxu0
      %5724 = vmatprep.mubr.bf16.mxu0 0
      %5725 = vmatmul.mubr.bf16.gmra.mrb[0].mxu0 %v5575
      %v5726 = vpop.f32.mrb[0].mxu0
      %v5727 = vadd.f32 %v5595, %v5726
      %v5728 = vpop.f32.mrb[0].mxu0
      %v5729 = vpop.f32.mrb[0].mxu0
      %v5730 = vpop.f32.mrb[0].mxu0
      %5731 = vdwg.mxu0
      %5732 = vst [vmem:[%s224] sm:$0xff] %v5679
      %5733 = vst [vmem:[%s224 + $0x8] sm:$0xff] %v5682
      %5734 = vst [vmem:[%s224 + $0x10] sm:$0xff] %v5687
      %5735 = vst [vmem:[%s224 + $0x18] sm:$0xff] %v5690
      %5736 = vst [vmem:[%s224 + $0x20] sm:$0xff] %v5695
      %5737 = vst [vmem:[%s224 + $0x28] sm:$0xff] %v5698
      %5738 = vst [vmem:[%s224 + $0x30] sm:$0xff] %v5703
      %5739 = vst [vmem:[%s224 + $0x38] sm:$0xff] %v5706
      %5740 = vst [vmem:[%s224 + $0x40] sm:$0xff] %v5711
      %5741 = vst [vmem:[%s224 + $0x48] sm:$0xff] %v5714
      %5742 = vst [vmem:[%s224 + $0x50] sm:$0xff] %v5719
      %5743 = vst [vmem:[%s224 + $0x58] sm:$0xff] %v5722
      %5744 = vst [vmem:[%s224 + $0x60] sm:$0x7f] %v5727
      %p5745 = scmp.lt.s32.totalorder %s16, 1
      %s5746 = scalar_select %p5745, %s16, 1
      %s5747 = smul.addr %s5746, 13
      %s5748 = smul.addr %s5747, 8
      %s5749 = scalar_lea.vmem %s5, %s5748
      // Predicated region
      $region41: #{rpn_forward.1} parent=39 // pred_check
        %p5750 = pneg %p144
      $region42: #{rpn_forward.1} parent=39 // pred_check_branch
        %5752 = sbr.rel (%p5750) target = $region44
      $region43: #{rpn_forward.1} parent=39 // pred_region
        _
      $region44: #{rpn_forward.1} parent=39 // pred_fallthru
        _
    $region40: #{rpn_forward.1} parent=5 // pred_fallthru
      _
    %p5753 = scmp.le.s32.totalorder 2, %s11
    // Predicated region
    $region45: #{rpn_forward.1} parent=5 // pred_check
      %p5754 = pneg %p5753
    $region46: #{rpn_forward.1} parent=5 // pred_check_branch
      %5756 = sbr.rel (%p5754) target = $region48
    $region47: #{rpn_forward.1} parent=5 // pred_region
      %s5757 = ssub.s32 %s11, 2
      // Predicated region
      $region49: #{rpn_forward.1} parent=47 // pred_check
        %p5758 = pneg %p150
      $region50: #{rpn_forward.1} parent=47 // pred_check_branch
        %5760 = sbr.rel (%p5758) target = $region52
      $region51: #{rpn_forward.1} parent=47 // pred_region
        %p5761 = scmp.lt.s32.totalorder %s17, 1
        %s5762 = scalar_select %p5761, %s17, 1
        %s5763 = smul.addr %s5762, 13
        %s5764 = smul.addr %s5763, 8
        %s5765 = scalar_lea.vmem %s5, %s5764
      $region52: #{rpn_forward.1} parent=47 // pred_fallthru
        _
    $region48: #{rpn_forward.1} parent=5 // pred_fallthru
      _
  $region6: #{rpn_forward.1} parent=0 // loop_footer
    %s15 = sadd.s32 1, %s11
  $region7: #{rpn_forward.1} parent=0 // loop_footer_branch
    %10 = sbr.rel target = $region3
  $region8: #{rpn_forward.1} parent=0 // loop_exit
    _

</llo_original>
